<compile_context>
chip_gen: v5e
topology: v5e:2x2
jax: 0.10.0
libtpu: 0.0.40
codegen_flags: <defaults>
</compile_context>

<pallas_src>
import functools
import math

import jax
import jax.numpy as jnp
from jax.experimental import pallas as pl
from jax.experimental.pallas import tpu as pltpu


def _round_up(x, m):
    return ((x + m - 1) // m) * m


# ----------------------------------------------------------------------------
# Pallas kernel: one bidirectional GRU layer (both directions interleaved),
# recurrence only.  grid = (T_pad // C,) time chunks, sequential ("arbitrary").
# Hidden states for both directions are carried in VMEM scratch across chunks;
# W_hh^T / b_hn are resident VMEM inputs (tc-invariant index_map).
# ----------------------------------------------------------------------------
def _bigru_layer_kernel(gi_f_ref, gi_b_ref, whh_ref, bhn_ref,
                        out_f_ref, out_b_ref, hf_scr, hb_scr,
                        *, C, H_pad, pad_amt):
    tc = pl.program_id(0)
    H2 = 2 * H_pad
    B_pad = hf_scr.shape[0]

    @pl.when(tc == 0)
    def _():
        hf_scr[...] = jnp.zeros_like(hf_scr)
        hb_scr[...] = jnp.zeros_like(hb_scr)

    # Hoisted loop invariants (JAX does not CSE broadcast_in_dim).
    bhn_f = jnp.broadcast_to(bhn_ref[0], (B_pad, H_pad))
    bhn_b = jnp.broadcast_to(bhn_ref[1], (B_pad, H_pad))

    def gru_step(gi, h, whh_rz, whh_n, bhn_full):
        # gi = W_ih x + b_ih + [b_hr, b_hz, 0]  (hoisted, possibly bf16 stream)
        gi = gi.astype(jnp.float32)
        # Split r|z and n recurrent matmuls: the r/z sigmoids (EUP) overlap
        # with the n-column MXU drain.
        # TODO(synk): weight-stationary MXU driving (pltpu.matmul_push_rhs
        # per chunk, matmul_acc_lhs/matmul_pop per step) for M = B_pad = 8.
        gh_rz = jnp.dot(h, whh_rz, preferred_element_type=jnp.float32)
        r = jax.nn.sigmoid(gi[:, 0:H_pad] + gh_rz[:, 0:H_pad])
        z = jax.nn.sigmoid(gi[:, H_pad:H2] + gh_rz[:, H_pad:H2])
        gh_n = jnp.dot(h, whh_n, preferred_element_type=jnp.float32)
        n = jnp.tanh(gi[:, H2:] + r * (gh_n + bhn_full))
        return (1.0 - z) * n + z * h

    def step(s, carry):
        h_f, h_b = carry
        # RHS is fed from the VMEM ref inside the loop (keeps vreg pressure
        # low; the MXU push reads it either way).
        # ---- forward direction: chunk-local index s ----
        h_f = gru_step(gi_f_ref[s], h_f,
                       whh_ref[0, :, 0:H2], whh_ref[0, :, H2:], bhn_f)
        out_f_ref[s] = h_f.astype(out_f_ref.dtype)

        # ---- backward direction: reversed chunk order comes from the
        #      index_map; within the chunk walk C-1..0 ----
        sb = C - 1 - s
        h_b_new = gru_step(gi_b_ref[sb], h_b,
                           whh_ref[1, :, 0:H2], whh_ref[1, :, H2:], bhn_b)
        if pad_amt > 0:
            # Backward walks the padded tail of T first; keep h_b untouched
            # on those steps (scalar blend avoids a bool-vector broadcast).
            keep = ((tc * C + s) >= pad_amt).astype(jnp.float32)
            h_b_new = keep * h_b_new + (1.0 - keep) * h_b
        out_b_ref[sb] = h_b_new.astype(out_b_ref.dtype)
        return (h_f, h_b_new)

    h_f, h_b = jax.lax.fori_loop(0, C, step, (hf_scr[...], hb_scr[...]),
                                 unroll=min(C, 8))
    hf_scr[...] = h_f
    hb_scr[...] = h_b


def run_bigru_layer(gi_f, gi_b, whh, bhn, *, T, max_chunk=64):
    """Run both directions of one GRU layer (recurrence only).

    gi_f, gi_b: (T, B_pad, 3*H_pad) hoisted input projections (+ folded
                biases) for the forward / backward direction (original time
                order; may be bf16).
    whh:        (2, H_pad, 3*H_pad)  W_hh^T per direction, gate/row padded.
    bhn:        (2, 1, H_pad)        n-gate hidden bias per direction.
    Returns (out_f, out_b), each (T, B_pad, H_pad) f32, original time order.
    """
    _, B_pad, threeH = gi_f.shape
    H_pad = threeH // 3

    C = min(max_chunk, T)
    nT = pl.cdiv(T, C)
    T_pad = nT * C
    pad_amt = T_pad - T
    if pad_amt:
        pad_cfg = ((0, pad_amt), (0, 0), (0, 0))
        gi_f = jnp.pad(gi_f, pad_cfg)
        gi_b = jnp.pad(gi_b, pad_cfg)

    grid_spec = pltpu.PrefetchScalarGridSpec(
        num_scalar_prefetch=0,
        grid=(nT,),
        in_specs=[
            # forward gi: chunk tc in order
            pl.BlockSpec((C, B_pad, threeH), lambda tc: (tc, 0, 0)),
            # backward gi: reversed chunk order
            pl.BlockSpec((C, B_pad, threeH), lambda tc: (nT - 1 - tc, 0, 0)),
            # W_hh^T for both directions: tc-invariant -> resident in VMEM
            pl.BlockSpec((2, H_pad, threeH), lambda tc: (0, 0, 0)),
            # n-gate hidden bias: resident
            pl.BlockSpec((2, 1, H_pad), lambda tc: (0, 0, 0)),
        ],
        out_specs=[
            pl.BlockSpec((C, B_pad, H_pad), lambda tc: (tc, 0, 0)),
            pl.BlockSpec((C, B_pad, H_pad), lambda tc: (nT - 1 - tc, 0, 0)),
        ],
        scratch_shapes=[
            pltpu.VMEM((B_pad, H_pad), jnp.float32),   # carried h (forward)
            pltpu.VMEM((B_pad, H_pad), jnp.float32),   # carried h (backward)
        ],
    )

    kernel = functools.partial(_bigru_layer_kernel,
                               C=C, H_pad=H_pad, pad_amt=pad_amt)
    out_f, out_b = pl.pallas_call(
        kernel,
        out_shape=(jax.ShapeDtypeStruct((T_pad, B_pad, H_pad), jnp.float32),
                   jax.ShapeDtypeStruct((T_pad, B_pad, H_pad), jnp.float32)),
        grid_spec=grid_spec,
        compiler_params=pltpu.CompilerParams(
            dimension_semantics=("arbitrary",),          # time is sequential
            vmem_limit_bytes=48 * 1024 * 1024),          # v5e default is 16MiB
    )(gi_f, gi_b, whh, bhn)
    return out_f[:T], out_b[:T]


# ----------------------------------------------------------------------------
# Weight preparation (PyTorch GRU layout -> padded, kernel-friendly layout)
# ----------------------------------------------------------------------------
def _pad_gate_cols(m, H, H_pad):
    """Pad the last axis (size 3H, gate-major [r|z|n]) to 3*H_pad per gate."""
    pad = [(0, 0)] * (m.ndim - 1) + [(0, H_pad - H)]
    parts = [jnp.pad(m[..., g * H:(g + 1) * H], pad) for g in range(3)]
    return jnp.concatenate(parts, axis=-1)


def _prep_direction(wih, whh, bih, bhh, layer, H, H_pad):
    wih = jnp.asarray(wih, jnp.float32)
    whh = jnp.asarray(whh, jnp.float32)
    bih = jnp.asarray(bih, jnp.float32)
    bhh = jnp.asarray(bhh, jnp.float32)

    # Input projection weight W_ih^T with gate-padded columns.
    wih_t = _pad_gate_cols(wih.T, H, H_pad)               # (in_dim, 3*H_pad)
    if layer == 0:
        wparts = (wih_t,)
    else:
        # Deeper layers consume (out_fwd, out_bwd) separately (no concat):
        # split the 2H input rows into the fwd half and the bwd half, each
        # padded to H_pad rows.
        zeros = jnp.zeros((H_pad, wih_t.shape[1]), jnp.float32)
        w_f = zeros.at[:H].set(wih_t[0:H])
        w_b = zeros.at[:H].set(wih_t[H:2 * H])
        wparts = (w_f, w_b)

    # Fold b_ih and the r/z parts of b_hh into the hoisted projection; keep
    # only the n-gate hidden bias inside the recurrence.
    fold = bih + jnp.concatenate(
        [bhh[0:H], bhh[H:2 * H], jnp.zeros((H,), jnp.float32)])
    fold = _pad_gate_cols(fold, H, H_pad)                  # (3*H_pad,)

    whh_t = _pad_gate_cols(whh.T, H, H_pad)                # (H, 3*H_pad)
    whh_t = jnp.pad(whh_t, ((0, H_pad - H), (0, 0)))       # (H_pad, 3*H_pad)

    bhn = jnp.pad(bhh[2 * H:3 * H], (0, H_pad - H)).reshape(1, H_pad)
    return wparts, fold, whh_t, bhn


# ----------------------------------------------------------------------------
# Encoder parameters + forward (glue in plain JAX, recurrence in Pallas)
# ----------------------------------------------------------------------------
def init_encoder_params(key, input_size, embed_size, hidden_size, n_layers):
    params = {}
    k_embed, key = jax.random.split(key)
    params["embedding"] = jax.random.normal(
        k_embed, (input_size, embed_size), jnp.float32)

    stdv = 1.0 / math.sqrt(hidden_size)
    gru = []
    for layer in range(n_layers):
        in_dim = embed_size if layer == 0 else 2 * hidden_size
        layer_params = []
        for _direction in range(2):  # 0 = forward, 1 = reverse
            key, k1, k2, k3, k4 = jax.random.split(key, 5)
            wih = jax.random.uniform(k1, (3 * hidden_size, in_dim),
                                     jnp.float32, -stdv, stdv)
            whh = jax.random.uniform(k2, (3 * hidden_size, hidden_size),
                                     jnp.float32, -stdv, stdv)
            bih = jax.random.uniform(k3, (3 * hidden_size,),
                                     jnp.float32, -stdv, stdv)
            bhh = jax.random.uniform(k4, (3 * hidden_size,),
                                     jnp.float32, -stdv, stdv)
            layer_params.append((wih, whh, bih, bhh))
        gru.append(layer_params)
    params["gru"] = gru
    return params


def encoder_forward(params, src, hidden_size, n_layers, *,
                    stream_dtype=jnp.bfloat16, max_chunk=64):
    """src: (T, B) int32 token ids.  Matches PyTorch Encoder.forward:
       output: (T, B, hidden_size)      (fwd + bwd halves summed)
       hidden: (n_layers, B, hidden_size)
    stream_dtype: dtype of the hoisted gi stream fed to the recurrence kernel
    (bf16 halves the dominant HBM traffic; f32 is bit-accurate vs reference).
    """
    H = hidden_size
    H_pad = _round_up(H, 128)
    T, B = src.shape
    B_pad = _round_up(B, 8)

    # TODO(synk): dropout is identity here (eval-mode semantics); no RNG mask.
    embedded = jnp.take(params["embedding"], src, axis=0).astype(jnp.float32)
    emb_pad = jnp.pad(embedded, ((0, 0), (0, B_pad - B), (0, 0)))  # (T,B_pad,E)

    out_f = out_b = None
    finals = []   # PyTorch order: [l0_fwd, l0_bwd, l1_fwd, l1_bwd, ...]
    for layer in range(n_layers):
        gi_dirs, whh_dirs, bhn_dirs = [], [], []
        for direction in range(2):
            wih, whh, bih, bhh = params["gru"][layer][direction]
            wparts, fold, whh_t, bhn = _prep_direction(
                wih, whh, bih, bhh, layer, H, H_pad)
            # Hoisted input projection: one big matmul over all T*B positions.
            if layer == 0:
                gi = jnp.einsum("tbi,ij->tbj", emb_pad, wparts[0])
            else:
                gi = (jnp.einsum("tbi,ij->tbj", out_f, wparts[0]) +
                      jnp.einsum("tbi,ij->tbj", out_b, wparts[1]))
            gi = (gi + fold).astype(stream_dtype)
            gi_dirs.append(gi)
            whh_dirs.append(whh_t)
            bhn_dirs.append(bhn)

        whh_stk = jnp.stack(whh_dirs, axis=0)   # (2, H_pad, 3*H_pad)
        bhn_stk = jnp.stack(bhn_dirs, axis=0)   # (2, 1, H_pad)

        out_f, out_b = run_bigru_layer(
            gi_dirs[0], gi_dirs[1], whh_stk, bhn_stk, T=T, max_chunk=max_chunk)

        finals.append(out_f[T - 1, :B, :H])     # forward final hidden
        finals.append(out_b[0, :B, :H])         # backward final hidden

    output = out_f[:, :B, :H] + out_b[:, :B, :H]
    hidden_all = jnp.stack(finals, axis=0)                  # (2L, B, H)
    hidden = hidden_all[:n_layers] + hidden_all[n_layers:]  # (L, B, H)
    return output, hidden


# ----------------------------------------------------------------------------
# Pure-JAX reference (PyTorch GRU semantics) for a correctness cross-check
# ----------------------------------------------------------------------------
def _gru_cell_ref(x, h, wih, whh, bih, bhh, H):
    gi = x @ wih.T + bih
    gh = h @ whh.T + bhh
    r = jax.nn.sigmoid(gi[:, 0:H] + gh[:, 0:H])
    z = jax.nn.sigmoid(gi[:, H:2 * H] + gh[:, H:2 * H])
    n = jnp.tanh(gi[:, 2 * H:] + r * gh[:, 2 * H:])
    return (1.0 - z) * n + z * h


def encoder_forward_ref(params, src, hidden_size, n_layers):
    H = hidden_size
    embedded = jnp.take(params["embedding"], src, axis=0).astype(jnp.float32)
    layer_in = embedded
    finals = []
    for layer in range(n_layers):
        outs = []
        for direction in range(2):
            wih, whh, bih, bhh = [jnp.asarray(p, jnp.float32)
                                  for p in params["gru"][layer][direction]]
            xs = layer_in if direction == 0 else layer_in[::-1]

            def step(h, x, wih=wih, whh=whh, bih=bih, bhh=bhh):
                h2 = _gru_cell_ref(x, h, wih, whh, bih, bhh, H)
                return h2, h2

            h0 = jnp.zeros((layer_in.shape[1], H), jnp.float32)
            _, ys = jax.lax.scan(step, h0, xs)
            if direction == 1:
                ys = ys[::-1]
            outs.append(ys)
        finals.append(outs[0][-1])
        finals.append(outs[1][0])
        layer_in = jnp.concatenate(outs, axis=-1)
    output = layer_in[:, :, :H] + layer_in[:, :, H:]
    hidden_all = jnp.stack(finals, axis=0)
    return output, hidden_all[:n_layers] + hidden_all[n_layers:]


if __name__ == "__main__":
    INPUT_SIZE = 20     # vocab size
    EMBED_SIZE = 16
    HIDDEN_SIZE = 32
    N_LAYERS = 2
    SEQ_LEN = 8
    BATCH = 2

    key = jax.random.PRNGKey(0)
    k_params, k_src, k_src2 = jax.random.split(key, 3)

    params = init_encoder_params(
        k_params, INPUT_SIZE, EMBED_SIZE, HIDDEN_SIZE, N_LAYERS)
    src = jax.random.randint(k_src, (SEQ_LEN, BATCH), 0, INPUT_SIZE,
                             dtype=jnp.int32)

    # 1) Default perf mode: bf16 activation stream into the recurrence kernel.
    output, hidden = encoder_forward(params, src, HIDDEN_SIZE, N_LAYERS)
    output = jax.block_until_ready(output)
    hidden = jax.block_until_ready(hidden)
    assert output.shape == (SEQ_LEN, BATCH, HIDDEN_SIZE), output.shape
    assert hidden.shape == (N_LAYERS, BATCH, HIDDEN_SIZE), hidden.shape
    assert bool(jnp.all(jnp.isfinite(output)))
    assert bool(jnp.all(jnp.isfinite(hidden)))

    out_ref, hid_ref = encoder_forward_ref(params, src, HIDDEN_SIZE, N_LAYERS)
    err_o = float(jnp.max(jnp.abs(output - out_ref)))
    err_h = float(jnp.max(jnp.abs(hidden - hid_ref)))
    # bf16 gi stream trades ~1e-3 abs error for half the HBM traffic.
    assert err_o < 1e-1 and err_h < 1e-1, (err_o, err_h)

    # 2) Exact mode: f32 stream must match the pure-JAX reference tightly.
    out32, hid32 = encoder_forward(params, src, HIDDEN_SIZE, N_LAYERS,
                                   stream_dtype=jnp.float32)
    out32 = jax.block_until_ready(out32)
    err_o32 = float(jnp.max(jnp.abs(out32 - out_ref)))
    err_h32 = float(jnp.max(jnp.abs(hid32 - hid_ref)))
    assert err_o32 < 1e-4 and err_h32 < 1e-4, (err_o32, err_h32)

    # 3) Multi-chunk + padded-T path: T=11 with chunk 4 -> T_pad=12, masked
    #    backward head, hidden state carried across 3 chunks.
    src2 = jax.random.randint(k_src2, (11, BATCH), 0, INPUT_SIZE,
                              dtype=jnp.int32)
    out_c, hid_c = encoder_forward(params, src2, HIDDEN_SIZE, N_LAYERS,
                                   stream_dtype=jnp.float32, max_chunk=4)
    out_c = jax.block_until_ready(out_c)
    out_c_ref, hid_c_ref = encoder_forward_ref(params, src2, HIDDEN_SIZE,
                                               N_LAYERS)
    err_oc = float(jnp.max(jnp.abs(out_c - out_c_ref)))
    err_hc = float(jnp.max(jnp.abs(hid_c - hid_c_ref)))
    assert err_oc < 1e-4 and err_hc < 1e-4, (err_oc, err_hc)

    print("KERNEL_OK")
</pallas_src>

<mosaic_0001>
module attributes {stable_mosaic.version = 11 : i64} {
  func.func @_bigru_layer_kernel(%arg0: i32, %arg1: memref<8x8x384xbf16, #tpu.memory_space<vmem>>, %arg2: memref<8x8x384xbf16, #tpu.memory_space<vmem>>, %arg3: memref<2x128x384xf32, #tpu.memory_space<vmem>>, %arg4: memref<2x1x128xf32, #tpu.memory_space<vmem>>, %arg5: memref<8x8x128xf32, #tpu.memory_space<vmem>>, %arg6: memref<8x8x128xf32, #tpu.memory_space<vmem>>, %arg7: memref<8x128xf32, #tpu.memory_space<vmem>>, %arg8: memref<8x128xf32, #tpu.memory_space<vmem>>) attributes {dimension_semantics = [#tpu.dimension_semantics<arbitrary>], iteration_bounds = array<i64: 1>, scalar_prefetch = 0 : i64, scratch_operands = 2 : i64, tpu.core_type = #tpu.core_type<tc>, window_params = [{transform_indices = @transform_0, window_bounds = array<i64: 8, 8, 384>}, {transform_indices = @transform_1, window_bounds = array<i64: 8, 8, 384>}, {pipeline_mode = #tpu.pipeline_mode<synchronous>, transform_indices = @transform_2, window_bounds = array<i64: 2, 128, 384>}, {pipeline_mode = #tpu.pipeline_mode<synchronous>, transform_indices = @transform_3, window_bounds = array<i64: 2, 1, 128>}, {transform_indices = @transform_4, window_bounds = array<i64: 8, 8, 128>}, {transform_indices = @transform_5, window_bounds = array<i64: 8, 8, 128>}]} {
    %c0_i32 = arith.constant 0 : i32
    %0 = arith.cmpi eq, %arg0, %c0_i32 : i32
    %1 = arith.extui %0 : i1 to i32
    %c0_i32_0 = arith.constant 0 : i32
    %2 = arith.cmpi ne, %1, %c0_i32_0 : i32
    scf.if %2 {
      %cst_260 = arith.constant 0.000000e+00 : f32
      %663 = vector.broadcast %cst_260 : f32 to vector<8x128xf32>
      %c0_261 = arith.constant 0 : index
      %c0_262 = arith.constant 0 : index
      %664 = vector.load %arg7[%c0_261, %c0_262] : memref<8x128xf32, #tpu.memory_space<vmem>>, vector<8x128xf32>
      tpu.vector_store %arg7[%c0_261, %c0_262], %663 {strides = array<i32>} : memref<8x128xf32, #tpu.memory_space<vmem>>, vector<8x128xf32>,
      %cst_263 = arith.constant 0.000000e+00 : f32
      %665 = vector.broadcast %cst_263 : f32 to vector<8x128xf32>
      %c0_264 = arith.constant 0 : index
      %c0_265 = arith.constant 0 : index
      %666 = vector.load %arg8[%c0_264, %c0_265] : memref<8x128xf32, #tpu.memory_space<vmem>>, vector<8x128xf32>
      tpu.vector_store %arg8[%c0_264, %c0_265], %665 {strides = array<i32>} : memref<8x128xf32, #tpu.memory_space<vmem>>, vector<8x128xf32>,
    } else {
    }
    %c0 = arith.constant 0 : index
    %c0_1 = arith.constant 0 : index
    %c0_2 = arith.constant 0 : index
    %3 = vector.load %arg4[%c0, %c0_1, %c0_2] : memref<2x1x128xf32, #tpu.memory_space<vmem>>, vector<1x1x128xf32>
    %4 = vector.shape_cast %3 : vector<1x1x128xf32> to vector<1x128xf32>
    %5 = vector.shape_cast %4 : vector<1x128xf32> to vector<1x128xf32>
    %6 = vector.broadcast %5 : vector<1x128xf32> to vector<8x128xf32>
    %c1 = arith.constant 1 : index
    %c0_3 = arith.constant 0 : index
    %c0_4 = arith.constant 0 : index
    %7 = vector.load %arg4[%c1, %c0_3, %c0_4] : memref<2x1x128xf32, #tpu.memory_space<vmem>>, vector<1x1x128xf32>
    %8 = vector.shape_cast %7 : vector<1x1x128xf32> to vector<1x128xf32>
    %9 = vector.shape_cast %8 : vector<1x128xf32> to vector<1x128xf32>
    %10 = vector.broadcast %9 : vector<1x128xf32> to vector<8x128xf32>
    %c0_5 = arith.constant 0 : index
    %c0_6 = arith.constant 0 : index
    %11 = vector.load %arg7[%c0_5, %c0_6] : memref<8x128xf32, #tpu.memory_space<vmem>>, vector<8x128xf32>
    %c0_7 = arith.constant 0 : index
    %c0_8 = arith.constant 0 : index
    %12 = vector.load %arg8[%c0_7, %c0_8] : memref<8x128xf32, #tpu.memory_space<vmem>>, vector<8x128xf32>
    %c0_i32_9 = arith.constant 0 : i32
    %13 = arith.index_cast %c0_i32_9 : i32 to index
    %c0_10 = arith.constant 0 : index
    %c0_11 = arith.constant 0 : index
    %14 = vector.load %arg1[%13, %c0_10, %c0_11] : memref<8x8x384xbf16, #tpu.memory_space<vmem>>, vector<1x8x384xbf16>
    %15 = vector.shape_cast %14 : vector<1x8x384xbf16> to vector<8x384xbf16>
    %c0_12 = arith.constant 0 : index
    %c0_13 = arith.constant 0 : index
    %c0_14 = arith.constant 0 : index
    %16 = vector.load %arg3[%c0_12, %c0_13, %c0_14] : memref<2x128x384xf32, #tpu.memory_space<vmem>>, vector<1x128x256xf32>
    %17 = vector.shape_cast %16 : vector<1x128x256xf32> to vector<128x256xf32>
    %c0_15 = arith.constant 0 : index
    %c0_16 = arith.constant 0 : index
    %c256 = arith.constant 256 : index
    %18 = vector.load %arg3[%c0_15, %c0_16, %c256] : memref<2x128x384xf32, #tpu.memory_space<vmem>>, vector<1x128x128xf32>
    %19 = vector.shape_cast %18 : vector<1x128x128xf32> to vector<128x128xf32>
    %20 = arith.extf %15 : vector<8x384xbf16> to vector<8x384xf32>
    %cst = arith.constant dense<0.000000e+00> : vector<8x256xf32>
    %21 = tpu.matmul %11, %17, %cst {dimension_numbers = #tpu.dot_dimension_numbers<[1], [0], [0], [1], [0, 0, 1, 1], [], []>} : vector<8x128xf32>, vector<128x256xf32>, vector<8x256xf32> -> vector<8x256xf32>
    %22 = vector.extract_strided_slice %20 {offsets = [0, 0], sizes = [8, 128], strides = [1, 1]} : vector<8x384xf32> to vector<8x128xf32>
    %23 = vector.extract_strided_slice %21 {offsets = [0, 0], sizes = [8, 128], strides = [1, 1]} : vector<8x256xf32> to vector<8x128xf32>
    %24 = arith.addf %22, %23 : vector<8x128xf32>
    %25 = arith.negf %24 : vector<8x128xf32>
    %26 = math.exp %25 : vector<8x128xf32>
    %cst_17 = arith.constant 1.000000e+00 : f32
    %27 = vector.broadcast %cst_17 : f32 to vector<8x128xf32>
    %28 = arith.addf %27, %26 : vector<8x128xf32>
    %29 = arith.divf %27, %28 : vector<8x128xf32>
    %30 = vector.extract_strided_slice %20 {offsets = [0, 128], sizes = [8, 128], strides = [1, 1]} : vector<8x384xf32> to vector<8x128xf32>
    %31 = vector.extract_strided_slice %21 {offsets = [0, 128], sizes = [8, 128], strides = [1, 1]} : vector<8x256xf32> to vector<8x128xf32>
    %32 = arith.addf %30, %31 : vector<8x128xf32>
    %33 = arith.negf %32 : vector<8x128xf32>
    %34 = math.exp %33 : vector<8x128xf32>
    %cst_18 = arith.constant 1.000000e+00 : f32
    %35 = vector.broadcast %cst_18 : f32 to vector<8x128xf32>
    %36 = arith.addf %35, %34 : vector<8x128xf32>
    %37 = arith.divf %35, %36 : vector<8x128xf32>
    %cst_19 = arith.constant dense<0.000000e+00> : vector<8x128xf32>
    %38 = tpu.matmul %11, %19, %cst_19 {dimension_numbers = #tpu.dot_dimension_numbers<[1], [0], [0], [1], [0, 0, 1, 1], [], []>} : vector<8x128xf32>, vector<128x128xf32>, vector<8x128xf32> -> vector<8x128xf32>
    %39 = vector.extract_strided_slice %20 {offsets = [0, 256], sizes = [8, 128], strides = [1, 1]} : vector<8x384xf32> to vector<8x128xf32>
    %40 = arith.addf %38, %6 : vector<8x128xf32>
    %41 = arith.mulf %29, %40 : vector<8x128xf32>
    %42 = arith.addf %39, %41 : vector<8x128xf32>
    %43 = math.tanh %42 : vector<8x128xf32>
    %cst_20 = arith.constant 1.000000e+00 : f32
    %44 = vector.broadcast %cst_20 : f32 to vector<8x128xf32>
    %45 = arith.subf %44, %37 : vector<8x128xf32>
    %46 = arith.mulf %45, %43 : vector<8x128xf32>
    %47 = arith.mulf %37, %11 : vector<8x128xf32>
    %48 = arith.addf %46, %47 : vector<8x128xf32>
    %49 = arith.index_cast %c0_i32_9 : i32 to index
    %c0_21 = arith.constant 0 : index
    %c0_22 = arith.constant 0 : index
    %50 = vector.load %arg5[%49, %c0_21, %c0_22] : memref<8x8x128xf32, #tpu.memory_space<vmem>>, vector<1x8x128xf32>
    %51 = vector.shape_cast %50 : vector<1x8x128xf32> to vector<8x128xf32>
    %52 = vector.shape_cast %48 : vector<8x128xf32> to vector<1x8x128xf32>
    tpu.vector_store %arg5[%49, %c0_21, %c0_22], %52 {strides = array<i32>} : memref<8x8x128xf32, #tpu.memory_space<vmem>>, vector<1x8x128xf32>,
    %c7_i32 = arith.constant 7 : i32
    %53 = arith.subi %c7_i32, %c0_i32_9 : i32
    %54 = arith.index_cast %53 : i32 to index
    %c0_23 = arith.constant 0 : index
    %c0_24 = arith.constant 0 : index
    %55 = vector.load %arg2[%54, %c0_23, %c0_24] : memref<8x8x384xbf16, #tpu.memory_space<vmem>>, vector<1x8x384xbf16>
    %56 = vector.shape_cast %55 : vector<1x8x384xbf16> to vector<8x384xbf16>
    %c1_25 = arith.constant 1 : index
    %c0_26 = arith.constant 0 : index
    %c0_27 = arith.constant 0 : index
    %57 = vector.load %arg3[%c1_25, %c0_26, %c0_27] : memref<2x128x384xf32, #tpu.memory_space<vmem>>, vector<1x128x256xf32>
    %58 = vector.shape_cast %57 : vector<1x128x256xf32> to vector<128x256xf32>
    %c1_28 = arith.constant 1 : index
    %c0_29 = arith.constant 0 : index
    %c256_30 = arith.constant 256 : index
    %59 = vector.load %arg3[%c1_28, %c0_29, %c256_30] : memref<2x128x384xf32, #tpu.memory_space<vmem>>, vector<1x128x128xf32>
    %60 = vector.shape_cast %59 : vector<1x128x128xf32> to vector<128x128xf32>
    %61 = arith.extf %56 : vector<8x384xbf16> to vector<8x384xf32>
    %cst_31 = arith.constant dense<0.000000e+00> : vector<8x256xf32>
    %62 = tpu.matmul %12, %58, %cst_31 {dimension_numbers = #tpu.dot_dimension_numbers<[1], [0], [0], [1], [0, 0, 1, 1], [], []>} : vector<8x128xf32>, vector<128x256xf32>, vector<8x256xf32> -> vector<8x256xf32>
    %63 = vector.extract_strided_slice %61 {offsets = [0, 0], sizes = [8, 128], strides = [1, 1]} : vector<8x384xf32> to vector<8x128xf32>
    %64 = vector.extract_strided_slice %62 {offsets = [0, 0], sizes = [8, 128], strides = [1, 1]} : vector<8x256xf32> to vector<8x128xf32>
    %65 = arith.addf %63, %64 : vector<8x128xf32>
    %66 = arith.negf %65 : vector<8x128xf32>
    %67 = math.exp %66 : vector<8x128xf32>
    %cst_32 = arith.constant 1.000000e+00 : f32
    %68 = vector.broadcast %cst_32 : f32 to vector<8x128xf32>
    %69 = arith.addf %68, %67 : vector<8x128xf32>
    %70 = arith.divf %68, %69 : vector<8x128xf32>
    %71 = vector.extract_strided_slice %61 {offsets = [0, 128], sizes = [8, 128], strides = [1, 1]} : vector<8x384xf32> to vector<8x128xf32>
    %72 = vector.extract_strided_slice %62 {offsets = [0, 128], sizes = [8, 128], strides = [1, 1]} : vector<8x256xf32> to vector<8x128xf32>
    %73 = arith.addf %71, %72 : vector<8x128xf32>
    %74 = arith.negf %73 : vector<8x128xf32>
    %75 = math.exp %74 : vector<8x128xf32>
    %cst_33 = arith.constant 1.000000e+00 : f32
    %76 = vector.broadcast %cst_33 : f32 to vector<8x128xf32>
    %77 = arith.addf %76, %75 : vector<8x128xf32>
    %78 = arith.divf %76, %77 : vector<8x128xf32>
    %cst_34 = arith.constant dense<0.000000e+00> : vector<8x128xf32>
    %79 = tpu.matmul %12, %60, %cst_34 {dimension_numbers = #tpu.dot_dimension_numbers<[1], [0], [0], [1], [0, 0, 1, 1], [], []>} : vector<8x128xf32>, vector<128x128xf32>, vector<8x128xf32> -> vector<8x128xf32>
    %80 = vector.extract_strided_slice %61 {offsets = [0, 256], sizes = [8, 128], strides = [1, 1]} : vector<8x384xf32> to vector<8x128xf32>
    %81 = arith.addf %79, %10 : vector<8x128xf32>
    %82 = arith.mulf %70, %81 : vector<8x128xf32>
    %83 = arith.addf %80, %82 : vector<8x128xf32>
    %84 = math.tanh %83 : vector<8x128xf32>
    %cst_35 = arith.constant 1.000000e+00 : f32
    %85 = vector.broadcast %cst_35 : f32 to vector<8x128xf32>
    %86 = arith.subf %85, %78 : vector<8x128xf32>
    %87 = arith.mulf %86, %84 : vector<8x128xf32>
    %88 = arith.mulf %78, %12 : vector<8x128xf32>
    %89 = arith.addf %87, %88 : vector<8x128xf32>
    %90 = arith.index_cast %53 : i32 to index
    %c0_36 = arith.constant 0 : index
    %c0_37 = arith.constant 0 : index
    %91 = vector.load %arg6[%90, %c0_36, %c0_37] : memref<8x8x128xf32, #tpu.memory_space<vmem>>, vector<1x8x128xf32>
    %92 = vector.shape_cast %91 : vector<1x8x128xf32> to vector<8x128xf32>
    %93 = vector.shape_cast %89 : vector<8x128xf32> to vector<1x8x128xf32>
    tpu.vector_store %arg6[%90, %c0_36, %c0_37], %93 {strides = array<i32>} : memref<8x8x128xf32, #tpu.memory_space<vmem>>, vector<1x8x128xf32>,
    %c1_i32 = arith.constant 1 : i32
    %94 = arith.index_cast %c1_i32 : i32 to index
    %c0_38 = arith.constant 0 : index
    %c0_39 = arith.constant 0 : index
    %95 = vector.load %arg1[%94, %c0_38, %c0_39] : memref<8x8x384xbf16, #tpu.memory_space<vmem>>, vector<1x8x384xbf16>
    %96 = vector.shape_cast %95 : vector<1x8x384xbf16> to vector<8x384xbf16>
    %c0_40 = arith.constant 0 : index
    %c0_41 = arith.constant 0 : index
    %c0_42 = arith.constant 0 : index
    %97 = vector.load %arg3[%c0_40, %c0_41, %c0_42] : memref<2x128x384xf32, #tpu.memory_space<vmem>>, vector<1x128x256xf32>
    %98 = vector.shape_cast %97 : vector<1x128x256xf32> to vector<128x256xf32>
    %c0_43 = arith.constant 0 : index
    %c0_44 = arith.constant 0 : index
    %c256_45 = arith.constant 256 : index
    %99 = vector.load %arg3[%c0_43, %c0_44, %c256_45] : memref<2x128x384xf32, #tpu.memory_space<vmem>>, vector<1x128x128xf32>
    %100 = vector.shape_cast %99 : vector<1x128x128xf32> to vector<128x128xf32>
    %101 = arith.extf %96 : vector<8x384xbf16> to vector<8x384xf32>
    %cst_46 = arith.constant dense<0.000000e+00> : vector<8x256xf32>
    %102 = tpu.matmul %48, %98, %cst_46 {dimension_numbers = #tpu.dot_dimension_numbers<[1], [0], [0], [1], [0, 0, 1, 1], [], []>} : vector<8x128xf32>, vector<128x256xf32>, vector<8x256xf32> -> vector<8x256xf32>
    %103 = vector.extract_strided_slice %101 {offsets = [0, 0], sizes = [8, 128], strides = [1, 1]} : vector<8x384xf32> to vector<8x128xf32>
    %104 = vector.extract_strided_slice %102 {offsets = [0, 0], sizes = [8, 128], strides = [1, 1]} : vector<8x256xf32> to vector<8x128xf32>
    %105 = arith.addf %103, %104 : vector<8x128xf32>
    %106 = arith.negf %105 : vector<8x128xf32>
    %107 = math.exp %106 : vector<8x128xf32>
    %cst_47 = arith.constant 1.000000e+00 : f32
    %108 = vector.broadcast %cst_47 : f32 to vector<8x128xf32>
    %109 = arith.addf %108, %107 : vector<8x128xf32>
    %110 = arith.divf %108, %109 : vector<8x128xf32>
    %111 = vector.extract_strided_slice %101 {offsets = [0, 128], sizes = [8, 128], strides = [1, 1]} : vector<8x384xf32> to vector<8x128xf32>
    %112 = vector.extract_strided_slice %102 {offsets = [0, 128], sizes = [8, 128], strides = [1, 1]} : vector<8x256xf32> to vector<8x128xf32>
    %113 = arith.addf %111, %112 : vector<8x128xf32>
    %114 = arith.negf %113 : vector<8x128xf32>
    %115 = math.exp %114 : vector<8x128xf32>
    %cst_48 = arith.constant 1.000000e+00 : f32
    %116 = vector.broadcast %cst_48 : f32 to vector<8x128xf32>
    %117 = arith.addf %116, %115 : vector<8x128xf32>
    %118 = arith.divf %116, %117 : vector<8x128xf32>
    %cst_49 = arith.constant dense<0.000000e+00> : vector<8x128xf32>
    %119 = tpu.matmul %48, %100, %cst_49 {dimension_numbers = #tpu.dot_dimension_numbers<[1], [0], [0], [1], [0, 0, 1, 1], [], []>} : vector<8x128xf32>, vector<128x128xf32>, vector<8x128xf32> -> vector<8x128xf32>
    %120 = vector.extract_strided_slice %101 {offsets = [0, 256], sizes = [8, 128], strides = [1, 1]} : vector<8x384xf32> to vector<8x128xf32>
    %121 = arith.addf %119, %6 : vector<8x128xf32>
    %122 = arith.mulf %110, %121 : vector<8x128xf32>
    %123 = arith.addf %120, %122 : vector<8x128xf32>
    %124 = math.tanh %123 : vector<8x128xf32>
    %cst_50 = arith.constant 1.000000e+00 : f32
    %125 = vector.broadcast %cst_50 : f32 to vector<8x128xf32>
    %126 = arith.subf %125, %118 : vector<8x128xf32>
    %127 = arith.mulf %126, %124 : vector<8x128xf32>
    %128 = arith.mulf %118, %48 : vector<8x128xf32>
    %129 = arith.addf %127, %128 : vector<8x128xf32>
    %130 = arith.index_cast %c1_i32 : i32 to index
    %c0_51 = arith.constant 0 : index
    %c0_52 = arith.constant 0 : index
    %131 = vector.load %arg5[%130, %c0_51, %c0_52] : memref<8x8x128xf32, #tpu.memory_space<vmem>>, vector<1x8x128xf32>
    %132 = vector.shape_cast %131 : vector<1x8x128xf32> to vector<8x128xf32>
    %133 = vector.shape_cast %129 : vector<8x128xf32> to vector<1x8x128xf32>
    tpu.vector_store %arg5[%130, %c0_51, %c0_52], %133 {strides = array<i32>} : memref<8x8x128xf32, #tpu.memory_space<vmem>>, vector<1x8x128xf32>,
    %c7_i32_53 = arith.constant 7 : i32
    %134 = arith.subi %c7_i32_53, %c1_i32 : i32
    %135 = arith.index_cast %134 : i32 to index
    %c0_54 = arith.constant 0 : index
    %c0_55 = arith.constant 0 : index
    %136 = vector.load %arg2[%135, %c0_54, %c0_55] : memref<8x8x384xbf16, #tpu.memory_space<vmem>>, vector<1x8x384xbf16>
    %137 = vector.shape_cast %136 : vector<1x8x384xbf16> to vector<8x384xbf16>
    %c1_56 = arith.constant 1 : index
    %c0_57 = arith.constant 0 : index
    %c0_58 = arith.constant 0 : index
    %138 = vector.load %arg3[%c1_56, %c0_57, %c0_58] : memref<2x128x384xf32, #tpu.memory_space<vmem>>, vector<1x128x256xf32>
    %139 = vector.shape_cast %138 : vector<1x128x256xf32> to vector<128x256xf32>
    %c1_59 = arith.constant 1 : index
    %c0_60 = arith.constant 0 : index
    %c256_61 = arith.constant 256 : index
    %140 = vector.load %arg3[%c1_59, %c0_60, %c256_61] : memref<2x128x384xf32, #tpu.memory_space<vmem>>, vector<1x128x128xf32>
    %141 = vector.shape_cast %140 : vector<1x128x128xf32> to vector<128x128xf32>
    %142 = arith.extf %137 : vector<8x384xbf16> to vector<8x384xf32>
    %cst_62 = arith.constant dense<0.000000e+00> : vector<8x256xf32>
    %143 = tpu.matmul %89, %139, %cst_62 {dimension_numbers = #tpu.dot_dimension_numbers<[1], [0], [0], [1], [0, 0, 1, 1], [], []>} : vector<8x128xf32>, vector<128x256xf32>, vector<8x256xf32> -> vector<8x256xf32>
    %144 = vector.extract_strided_slice %142 {offsets = [0, 0], sizes = [8, 128], strides = [1, 1]} : vector<8x384xf32> to vector<8x128xf32>
    %145 = vector.extract_strided_slice %143 {offsets = [0, 0], sizes = [8, 128], strides = [1, 1]} : vector<8x256xf32> to vector<8x128xf32>
    %146 = arith.addf %144, %145 : vector<8x128xf32>
    %147 = arith.negf %146 : vector<8x128xf32>
    %148 = math.exp %147 : vector<8x128xf32>
    %cst_63 = arith.constant 1.000000e+00 : f32
    %149 = vector.broadcast %cst_63 : f32 to vector<8x128xf32>
    %150 = arith.addf %149, %148 : vector<8x128xf32>
    %151 = arith.divf %149, %150 : vector<8x128xf32>
    %152 = vector.extract_strided_slice %142 {offsets = [0, 128], sizes = [8, 128], strides = [1, 1]} : vector<8x384xf32> to vector<8x128xf32>
    %153 = vector.extract_strided_slice %143 {offsets = [0, 128], sizes = [8, 128], strides = [1, 1]} : vector<8x256xf32> to vector<8x128xf32>
    %154 = arith.addf %152, %153 : vector<8x128xf32>
    %155 = arith.negf %154 : vector<8x128xf32>
    %156 = math.exp %155 : vector<8x128xf32>
    %cst_64 = arith.constant 1.000000e+00 : f32
    %157 = vector.broadcast %cst_64 : f32 to vector<8x128xf32>
    %158 = arith.addf %157, %156 : vector<8x128xf32>
    %159 = arith.divf %157, %158 : vector<8x128xf32>
    %cst_65 = arith.constant dense<0.000000e+00> : vector<8x128xf32>
    %160 = tpu.matmul %89, %141, %cst_65 {dimension_numbers = #tpu.dot_dimension_numbers<[1], [0], [0], [1], [0, 0, 1, 1], [], []>} : vector<8x128xf32>, vector<128x128xf32>, vector<8x128xf32> -> vector<8x128xf32>
    %161 = vector.extract_strided_slice %142 {offsets = [0, 256], sizes = [8, 128], strides = [1, 1]} : vector<8x384xf32> to vector<8x128xf32>
    %162 = arith.addf %160, %10 : vector<8x128xf32>
    %163 = arith.mulf %151, %162 : vector<8x128xf32>
    %164 = arith.addf %161, %163 : vector<8x128xf32>
    %165 = math.tanh %164 : vector<8x128xf32>
    %cst_66 = arith.constant 1.000000e+00 : f32
    %166 = vector.broadcast %cst_66 : f32 to vector<8x128xf32>
    %167 = arith.subf %166, %159 : vector<8x128xf32>
    %168 = arith.mulf %167, %165 : vector<8x128xf32>
    %169 = arith.mulf %159, %89 : vector<8x128xf32>
    %170 = arith.addf %168, %169 : vector<8x128xf32>
    %171 = arith.index_cast %134 : i32 to index
    %c0_67 = arith.constant 0 : index
    %c0_68 = arith.constant 0 : index
    %172 = vector.load %arg6[%171, %c0_67, %c0_68] : memref<8x8x128xf32, #tpu.memory_space<vmem>>, vector<1x8x128xf32>
    %173 = vector.shape_cast %172 : vector<1x8x128xf32> to vector<8x128xf32>
    %174 = vector.shape_cast %170 : vector<8x128xf32> to vector<1x8x128xf32>
    tpu.vector_store %arg6[%171, %c0_67, %c0_68], %174 {strides = array<i32>} : memref<8x8x128xf32, #tpu.memory_space<vmem>>, vector<1x8x128xf32>,
    %c2_i32 = arith.constant 2 : i32
    %175 = arith.index_cast %c2_i32 : i32 to index
    %c0_69 = arith.constant 0 : index
    %c0_70 = arith.constant 0 : index
    %176 = vector.load %arg1[%175, %c0_69, %c0_70] : memref<8x8x384xbf16, #tpu.memory_space<vmem>>, vector<1x8x384xbf16>
    %177 = vector.shape_cast %176 : vector<1x8x384xbf16> to vector<8x384xbf16>
    %c0_71 = arith.constant 0 : index
    %c0_72 = arith.constant 0 : index
    %c0_73 = arith.constant 0 : index
    %178 = vector.load %arg3[%c0_71, %c0_72, %c0_73] : memref<2x128x384xf32, #tpu.memory_space<vmem>>, vector<1x128x256xf32>
    %179 = vector.shape_cast %178 : vector<1x128x256xf32> to vector<128x256xf32>
    %c0_74 = arith.constant 0 : index
    %c0_75 = arith.constant 0 : index
    %c256_76 = arith.constant 256 : index
    %180 = vector.load %arg3[%c0_74, %c0_75, %c256_76] : memref<2x128x384xf32, #tpu.memory_space<vmem>>, vector<1x128x128xf32>
    %181 = vector.shape_cast %180 : vector<1x128x128xf32> to vector<128x128xf32>
    %182 = arith.extf %177 : vector<8x384xbf16> to vector<8x384xf32>
    %cst_77 = arith.constant dense<0.000000e+00> : vector<8x256xf32>
    %183 = tpu.matmul %129, %179, %cst_77 {dimension_numbers = #tpu.dot_dimension_numbers<[1], [0], [0], [1], [0, 0, 1, 1], [], []>} : vector<8x128xf32>, vector<128x256xf32>, vector<8x256xf32> -> vector<8x256xf32>
    %184 = vector.extract_strided_slice %182 {offsets = [0, 0], sizes = [8, 128], strides = [1, 1]} : vector<8x384xf32> to vector<8x128xf32>
    %185 = vector.extract_strided_slice %183 {offsets = [0, 0], sizes = [8, 128], strides = [1, 1]} : vector<8x256xf32> to vector<8x128xf32>
    %186 = arith.addf %184, %185 : vector<8x128xf32>
    %187 = arith.negf %186 : vector<8x128xf32>
    %188 = math.exp %187 : vector<8x128xf32>
    %cst_78 = arith.constant 1.000000e+00 : f32
    %189 = vector.broadcast %cst_78 : f32 to vector<8x128xf32>
    %190 = arith.addf %189, %188 : vector<8x128xf32>
    %191 = arith.divf %189, %190 : vector<8x128xf32>
    %192 = vector.extract_strided_slice %182 {offsets = [0, 128], sizes = [8, 128], strides = [1, 1]} : vector<8x384xf32> to vector<8x128xf32>
    %193 = vector.extract_strided_slice %183 {offsets = [0, 128], sizes = [8, 128], strides = [1, 1]} : vector<8x256xf32> to vector<8x128xf32>
    %194 = arith.addf %192, %193 : vector<8x128xf32>
    %195 = arith.negf %194 : vector<8x128xf32>
    %196 = math.exp %195 : vector<8x128xf32>
    %cst_79 = arith.constant 1.000000e+00 : f32
    %197 = vector.broadcast %cst_79 : f32 to vector<8x128xf32>
    %198 = arith.addf %197, %196 : vector<8x128xf32>
    %199 = arith.divf %197, %198 : vector<8x128xf32>
    %cst_80 = arith.constant dense<0.000000e+00> : vector<8x128xf32>
    %200 = tpu.matmul %129, %181, %cst_80 {dimension_numbers = #tpu.dot_dimension_numbers<[1], [0], [0], [1], [0, 0, 1, 1], [], []>} : vector<8x128xf32>, vector<128x128xf32>, vector<8x128xf32> -> vector<8x128xf32>
    %201 = vector.extract_strided_slice %182 {offsets = [0, 256], sizes = [8, 128], strides = [1, 1]} : vector<8x384xf32> to vector<8x128xf32>
    %202 = arith.addf %200, %6 : vector<8x128xf32>
    %203 = arith.mulf %191, %202 : vector<8x128xf32>
    %204 = arith.addf %201, %203 : vector<8x128xf32>
    %205 = math.tanh %204 : vector<8x128xf32>
    %cst_81 = arith.constant 1.000000e+00 : f32
    %206 = vector.broadcast %cst_81 : f32 to vector<8x128xf32>
    %207 = arith.subf %206, %199 : vector<8x128xf32>
    %208 = arith.mulf %207, %205 : vector<8x128xf32>
    %209 = arith.mulf %199, %129 : vector<8x128xf32>
    %210 = arith.addf %208, %209 : vector<8x128xf32>
    %211 = arith.index_cast %c2_i32 : i32 to index
    %c0_82 = arith.constant 0 : index
    %c0_83 = arith.constant 0 : index
    %212 = vector.load %arg5[%211, %c0_82, %c0_83] : memref<8x8x128xf32, #tpu.memory_space<vmem>>, vector<1x8x128xf32>
    %213 = vector.shape_cast %212 : vector<1x8x128xf32> to vector<8x128xf32>
    %214 = vector.shape_cast %210 : vector<8x128xf32> to vector<1x8x128xf32>
    tpu.vector_store %arg5[%211, %c0_82, %c0_83], %214 {strides = array<i32>} : memref<8x8x128xf32, #tpu.memory_space<vmem>>, vector<1x8x128xf32>,
    %c7_i32_84 = arith.constant 7 : i32
    %215 = arith.subi %c7_i32_84, %c2_i32 : i32
    %216 = arith.index_cast %215 : i32 to index
    %c0_85 = arith.constant 0 : index
    %c0_86 = arith.constant 0 : index
    %217 = vector.load %arg2[%216, %c0_85, %c0_86] : memref<8x8x384xbf16, #tpu.memory_space<vmem>>, vector<1x8x384xbf16>
    %218 = vector.shape_cast %217 : vector<1x8x384xbf16> to vector<8x384xbf16>
    %c1_87 = arith.constant 1 : index
    %c0_88 = arith.constant 0 : index
    %c0_89 = arith.constant 0 : index
    %219 = vector.load %arg3[%c1_87, %c0_88, %c0_89] : memref<2x128x384xf32, #tpu.memory_space<vmem>>, vector<1x128x256xf32>
    %220 = vector.shape_cast %219 : vector<1x128x256xf32> to vector<128x256xf32>
    %c1_90 = arith.constant 1 : index
    %c0_91 = arith.constant 0 : index
    %c256_92 = arith.constant 256 : index
    %221 = vector.load %arg3[%c1_90, %c0_91, %c256_92] : memref<2x128x384xf32, #tpu.memory_space<vmem>>, vector<1x128x128xf32>
    %222 = vector.shape_cast %221 : vector<1x128x128xf32> to vector<128x128xf32>
    %223 = arith.extf %218 : vector<8x384xbf16> to vector<8x384xf32>
    %cst_93 = arith.constant dense<0.000000e+00> : vector<8x256xf32>
    %224 = tpu.matmul %170, %220, %cst_93 {dimension_numbers = #tpu.dot_dimension_numbers<[1], [0], [0], [1], [0, 0, 1, 1], [], []>} : vector<8x128xf32>, vector<128x256xf32>, vector<8x256xf32> -> vector<8x256xf32>
    %225 = vector.extract_strided_slice %223 {offsets = [0, 0], sizes = [8, 128], strides = [1, 1]} : vector<8x384xf32> to vector<8x128xf32>
    %226 = vector.extract_strided_slice %224 {offsets = [0, 0], sizes = [8, 128], strides = [1, 1]} : vector<8x256xf32> to vector<8x128xf32>
    %227 = arith.addf %225, %226 : vector<8x128xf32>
    %228 = arith.negf %227 : vector<8x128xf32>
    %229 = math.exp %228 : vector<8x128xf32>
    %cst_94 = arith.constant 1.000000e+00 : f32
    %230 = vector.broadcast %cst_94 : f32 to vector<8x128xf32>
    %231 = arith.addf %230, %229 : vector<8x128xf32>
    %232 = arith.divf %230, %231 : vector<8x128xf32>
    %233 = vector.extract_strided_slice %223 {offsets = [0, 128], sizes = [8, 128], strides = [1, 1]} : vector<8x384xf32> to vector<8x128xf32>
    %234 = vector.extract_strided_slice %224 {offsets = [0, 128], sizes = [8, 128], strides = [1, 1]} : vector<8x256xf32> to vector<8x128xf32>
    %235 = arith.addf %233, %234 : vector<8x128xf32>
    %236 = arith.negf %235 : vector<8x128xf32>
    %237 = math.exp %236 : vector<8x128xf32>
    %cst_95 = arith.constant 1.000000e+00 : f32
    %238 = vector.broadcast %cst_95 : f32 to vector<8x128xf32>
    %239 = arith.addf %238, %237 : vector<8x128xf32>
    %240 = arith.divf %238, %239 : vector<8x128xf32>
    %cst_96 = arith.constant dense<0.000000e+00> : vector<8x128xf32>
    %241 = tpu.matmul %170, %222, %cst_96 {dimension_numbers = #tpu.dot_dimension_numbers<[1], [0], [0], [1], [0, 0, 1, 1], [], []>} : vector<8x128xf32>, vector<128x128xf32>, vector<8x128xf32> -> vector<8x128xf32>
    %242 = vector.extract_strided_slice %223 {offsets = [0, 256], sizes = [8, 128], strides = [1, 1]} : vector<8x384xf32> to vector<8x128xf32>
    %243 = arith.addf %241, %10 : vector<8x128xf32>
    %244 = arith.mulf %232, %243 : vector<8x128xf32>
    %245 = arith.addf %242, %244 : vector<8x128xf32>
    %246 = math.tanh %245 : vector<8x128xf32>
    %cst_97 = arith.constant 1.000000e+00 : f32
    %247 = vector.broadcast %cst_97 : f32 to vector<8x128xf32>
    %248 = arith.subf %247, %240 : vector<8x128xf32>
    %249 = arith.mulf %248, %246 : vector<8x128xf32>
    %250 = arith.mulf %240, %170 : vector<8x128xf32>
    %251 = arith.addf %249, %250 : vector<8x128xf32>
    %252 = arith.index_cast %215 : i32 to index
    %c0_98 = arith.constant 0 : index
    %c0_99 = arith.constant 0 : index
    %253 = vector.load %arg6[%252, %c0_98, %c0_99] : memref<8x8x128xf32, #tpu.memory_space<vmem>>, vector<1x8x128xf32>
    %254 = vector.shape_cast %253 : vector<1x8x128xf32> to vector<8x128xf32>
    %255 = vector.shape_cast %251 : vector<8x128xf32> to vector<1x8x128xf32>
    tpu.vector_store %arg6[%252, %c0_98, %c0_99], %255 {strides = array<i32>} : memref<8x8x128xf32, #tpu.memory_space<vmem>>, vector<1x8x128xf32>,
    %c3_i32 = arith.constant 3 : i32
    %256 = arith.index_cast %c3_i32 : i32 to index
    %c0_100 = arith.constant 0 : index
    %c0_101 = arith.constant 0 : index
    %257 = vector.load %arg1[%256, %c0_100, %c0_101] : memref<8x8x384xbf16, #tpu.memory_space<vmem>>, vector<1x8x384xbf16>
    %258 = vector.shape_cast %257 : vector<1x8x384xbf16> to vector<8x384xbf16>
    %c0_102 = arith.constant 0 : index
    %c0_103 = arith.constant 0 : index
    %c0_104 = arith.constant 0 : index
    %259 = vector.load %arg3[%c0_102, %c0_103, %c0_104] : memref<2x128x384xf32, #tpu.memory_space<vmem>>, vector<1x128x256xf32>
    %260 = vector.shape_cast %259 : vector<1x128x256xf32> to vector<128x256xf32>
    %c0_105 = arith.constant 0 : index
    %c0_106 = arith.constant 0 : index
    %c256_107 = arith.constant 256 : index
    %261 = vector.load %arg3[%c0_105, %c0_106, %c256_107] : memref<2x128x384xf32, #tpu.memory_space<vmem>>, vector<1x128x128xf32>
    %262 = vector.shape_cast %261 : vector<1x128x128xf32> to vector<128x128xf32>
    %263 = arith.extf %258 : vector<8x384xbf16> to vector<8x384xf32>
    %cst_108 = arith.constant dense<0.000000e+00> : vector<8x256xf32>
    %264 = tpu.matmul %210, %260, %cst_108 {dimension_numbers = #tpu.dot_dimension_numbers<[1], [0], [0], [1], [0, 0, 1, 1], [], []>} : vector<8x128xf32>, vector<128x256xf32>, vector<8x256xf32> -> vector<8x256xf32>
    %265 = vector.extract_strided_slice %263 {offsets = [0, 0], sizes = [8, 128], strides = [1, 1]} : vector<8x384xf32> to vector<8x128xf32>
    %266 = vector.extract_strided_slice %264 {offsets = [0, 0], sizes = [8, 128], strides = [1, 1]} : vector<8x256xf32> to vector<8x128xf32>
    %267 = arith.addf %265, %266 : vector<8x128xf32>
    %268 = arith.negf %267 : vector<8x128xf32>
    %269 = math.exp %268 : vector<8x128xf32>
    %cst_109 = arith.constant 1.000000e+00 : f32
    %270 = vector.broadcast %cst_109 : f32 to vector<8x128xf32>
    %271 = arith.addf %270, %269 : vector<8x128xf32>
    %272 = arith.divf %270, %271 : vector<8x128xf32>
    %273 = vector.extract_strided_slice %263 {offsets = [0, 128], sizes = [8, 128], strides = [1, 1]} : vector<8x384xf32> to vector<8x128xf32>
    %274 = vector.extract_strided_slice %264 {offsets = [0, 128], sizes = [8, 128], strides = [1, 1]} : vector<8x256xf32> to vector<8x128xf32>
    %275 = arith.addf %273, %274 : vector<8x128xf32>
    %276 = arith.negf %275 : vector<8x128xf32>
    %277 = math.exp %276 : vector<8x128xf32>
    %cst_110 = arith.constant 1.000000e+00 : f32
    %278 = vector.broadcast %cst_110 : f32 to vector<8x128xf32>
    %279 = arith.addf %278, %277 : vector<8x128xf32>
    %280 = arith.divf %278, %279 : vector<8x128xf32>
    %cst_111 = arith.constant dense<0.000000e+00> : vector<8x128xf32>
    %281 = tpu.matmul %210, %262, %cst_111 {dimension_numbers = #tpu.dot_dimension_numbers<[1], [0], [0], [1], [0, 0, 1, 1], [], []>} : vector<8x128xf32>, vector<128x128xf32>, vector<8x128xf32> -> vector<8x128xf32>
    %282 = vector.extract_strided_slice %263 {offsets = [0, 256], sizes = [8, 128], strides = [1, 1]} : vector<8x384xf32> to vector<8x128xf32>
    %283 = arith.addf %281, %6 : vector<8x128xf32>
    %284 = arith.mulf %272, %283 : vector<8x128xf32>
    %285 = arith.addf %282, %284 : vector<8x128xf32>
    %286 = math.tanh %285 : vector<8x128xf32>
    %cst_112 = arith.constant 1.000000e+00 : f32
    %287 = vector.broadcast %cst_112 : f32 to vector<8x128xf32>
    %288 = arith.subf %287, %280 : vector<8x128xf32>
    %289 = arith.mulf %288, %286 : vector<8x128xf32>
    %290 = arith.mulf %280, %210 : vector<8x128xf32>
    %291 = arith.addf %289, %290 : vector<8x128xf32>
    %292 = arith.index_cast %c3_i32 : i32 to index
    %c0_113 = arith.constant 0 : index
    %c0_114 = arith.constant 0 : index
    %293 = vector.load %arg5[%292, %c0_113, %c0_114] : memref<8x8x128xf32, #tpu.memory_space<vmem>>, vector<1x8x128xf32>
    %294 = vector.shape_cast %293 : vector<1x8x128xf32> to vector<8x128xf32>
    %295 = vector.shape_cast %291 : vector<8x128xf32> to vector<1x8x128xf32>
    tpu.vector_store %arg5[%292, %c0_113, %c0_114], %295 {strides = array<i32>} : memref<8x8x128xf32, #tpu.memory_space<vmem>>, vector<1x8x128xf32>,
    %c7_i32_115 = arith.constant 7 : i32
    %296 = arith.subi %c7_i32_115, %c3_i32 : i32
    %297 = arith.index_cast %296 : i32 to index
    %c0_116 = arith.constant 0 : index
    %c0_117 = arith.constant 0 : index
    %298 = vector.load %arg2[%297, %c0_116, %c0_117] : memref<8x8x384xbf16, #tpu.memory_space<vmem>>, vector<1x8x384xbf16>
    %299 = vector.shape_cast %298 : vector<1x8x384xbf16> to vector<8x384xbf16>
    %c1_118 = arith.constant 1 : index
    %c0_119 = arith.constant 0 : index
    %c0_120 = arith.constant 0 : index
    %300 = vector.load %arg3[%c1_118, %c0_119, %c0_120] : memref<2x128x384xf32, #tpu.memory_space<vmem>>, vector<1x128x256xf32>
    %301 = vector.shape_cast %300 : vector<1x128x256xf32> to vector<128x256xf32>
    %c1_121 = arith.constant 1 : index
    %c0_122 = arith.constant 0 : index
    %c256_123 = arith.constant 256 : index
    %302 = vector.load %arg3[%c1_121, %c0_122, %c256_123] : memref<2x128x384xf32, #tpu.memory_space<vmem>>, vector<1x128x128xf32>
    %303 = vector.shape_cast %302 : vector<1x128x128xf32> to vector<128x128xf32>
    %304 = arith.extf %299 : vector<8x384xbf16> to vector<8x384xf32>
    %cst_124 = arith.constant dense<0.000000e+00> : vector<8x256xf32>
    %305 = tpu.matmul %251, %301, %cst_124 {dimension_numbers = #tpu.dot_dimension_numbers<[1], [0], [0], [1], [0, 0, 1, 1], [], []>} : vector<8x128xf32>, vector<128x256xf32>, vector<8x256xf32> -> vector<8x256xf32>
    %306 = vector.extract_strided_slice %304 {offsets = [0, 0], sizes = [8, 128], strides = [1, 1]} : vector<8x384xf32> to vector<8x128xf32>
    %307 = vector.extract_strided_slice %305 {offsets = [0, 0], sizes = [8, 128], strides = [1, 1]} : vector<8x256xf32> to vector<8x128xf32>
    %308 = arith.addf %306, %307 : vector<8x128xf32>
    %309 = arith.negf %308 : vector<8x128xf32>
    %310 = math.exp %309 : vector<8x128xf32>
    %cst_125 = arith.constant 1.000000e+00 : f32
    %311 = vector.broadcast %cst_125 : f32 to vector<8x128xf32>
    %312 = arith.addf %311, %310 : vector<8x128xf32>
    %313 = arith.divf %311, %312 : vector<8x128xf32>
    %314 = vector.extract_strided_slice %304 {offsets = [0, 128], sizes = [8, 128], strides = [1, 1]} : vector<8x384xf32> to vector<8x128xf32>
    %315 = vector.extract_strided_slice %305 {offsets = [0, 128], sizes = [8, 128], strides = [1, 1]} : vector<8x256xf32> to vector<8x128xf32>
    %316 = arith.addf %314, %315 : vector<8x128xf32>
    %317 = arith.negf %316 : vector<8x128xf32>
    %318 = math.exp %317 : vector<8x128xf32>
    %cst_126 = arith.constant 1.000000e+00 : f32
    %319 = vector.broadcast %cst_126 : f32 to vector<8x128xf32>
    %320 = arith.addf %319, %318 : vector<8x128xf32>
    %321 = arith.divf %319, %320 : vector<8x128xf32>
    %cst_127 = arith.constant dense<0.000000e+00> : vector<8x128xf32>
    %322 = tpu.matmul %251, %303, %cst_127 {dimension_numbers = #tpu.dot_dimension_numbers<[1], [0], [0], [1], [0, 0, 1, 1], [], []>} : vector<8x128xf32>, vector<128x128xf32>, vector<8x128xf32> -> vector<8x128xf32>
    %323 = vector.extract_strided_slice %304 {offsets = [0, 256], sizes = [8, 128], strides = [1, 1]} : vector<8x384xf32> to vector<8x128xf32>
    %324 = arith.addf %322, %10 : vector<8x128xf32>
    %325 = arith.mulf %313, %324 : vector<8x128xf32>
    %326 = arith.addf %323, %325 : vector<8x128xf32>
    %327 = math.tanh %326 : vector<8x128xf32>
    %cst_128 = arith.constant 1.000000e+00 : f32
    %328 = vector.broadcast %cst_128 : f32 to vector<8x128xf32>
    %329 = arith.subf %328, %321 : vector<8x128xf32>
    %330 = arith.mulf %329, %327 : vector<8x128xf32>
    %331 = arith.mulf %321, %251 : vector<8x128xf32>
    %332 = arith.addf %330, %331 : vector<8x128xf32>
    %333 = arith.index_cast %296 : i32 to index
    %c0_129 = arith.constant 0 : index
    %c0_130 = arith.constant 0 : index
    %334 = vector.load %arg6[%333, %c0_129, %c0_130] : memref<8x8x128xf32, #tpu.memory_space<vmem>>, vector<1x8x128xf32>
    %335 = vector.shape_cast %334 : vector<1x8x128xf32> to vector<8x128xf32>
    %336 = vector.shape_cast %332 : vector<8x128xf32> to vector<1x8x128xf32>
    tpu.vector_store %arg6[%333, %c0_129, %c0_130], %336 {strides = array<i32>} : memref<8x8x128xf32, #tpu.memory_space<vmem>>, vector<1x8x128xf32>,
    %c4_i32 = arith.constant 4 : i32
    %337 = arith.index_cast %c4_i32 : i32 to index
    %c0_131 = arith.constant 0 : index
    %c0_132 = arith.constant 0 : index
    %338 = vector.load %arg1[%337, %c0_131, %c0_132] : memref<8x8x384xbf16, #tpu.memory_space<vmem>>, vector<1x8x384xbf16>
    %339 = vector.shape_cast %338 : vector<1x8x384xbf16> to vector<8x384xbf16>
    %c0_133 = arith.constant 0 : index
    %c0_134 = arith.constant 0 : index
    %c0_135 = arith.constant 0 : index
    %340 = vector.load %arg3[%c0_133, %c0_134, %c0_135] : memref<2x128x384xf32, #tpu.memory_space<vmem>>, vector<1x128x256xf32>
    %341 = vector.shape_cast %340 : vector<1x128x256xf32> to vector<128x256xf32>
    %c0_136 = arith.constant 0 : index
    %c0_137 = arith.constant 0 : index
    %c256_138 = arith.constant 256 : index
    %342 = vector.load %arg3[%c0_136, %c0_137, %c256_138] : memref<2x128x384xf32, #tpu.memory_space<vmem>>, vector<1x128x128xf32>
    %343 = vector.shape_cast %342 : vector<1x128x128xf32> to vector<128x128xf32>
    %344 = arith.extf %339 : vector<8x384xbf16> to vector<8x384xf32>
    %cst_139 = arith.constant dense<0.000000e+00> : vector<8x256xf32>
    %345 = tpu.matmul %291, %341, %cst_139 {dimension_numbers = #tpu.dot_dimension_numbers<[1], [0], [0], [1], [0, 0, 1, 1], [], []>} : vector<8x128xf32>, vector<128x256xf32>, vector<8x256xf32> -> vector<8x256xf32>
    %346 = vector.extract_strided_slice %344 {offsets = [0, 0], sizes = [8, 128], strides = [1, 1]} : vector<8x384xf32> to vector<8x128xf32>
    %347 = vector.extract_strided_slice %345 {offsets = [0, 0], sizes = [8, 128], strides = [1, 1]} : vector<8x256xf32> to vector<8x128xf32>
    %348 = arith.addf %346, %347 : vector<8x128xf32>
    %349 = arith.negf %348 : vector<8x128xf32>
    %350 = math.exp %349 : vector<8x128xf32>
    %cst_140 = arith.constant 1.000000e+00 : f32
    %351 = vector.broadcast %cst_140 : f32 to vector<8x128xf32>
    %352 = arith.addf %351, %350 : vector<8x128xf32>
    %353 = arith.divf %351, %352 : vector<8x128xf32>
    %354 = vector.extract_strided_slice %344 {offsets = [0, 128], sizes = [8, 128], strides = [1, 1]} : vector<8x384xf32> to vector<8x128xf32>
    %355 = vector.extract_strided_slice %345 {offsets = [0, 128], sizes = [8, 128], strides = [1, 1]} : vector<8x256xf32> to vector<8x128xf32>
    %356 = arith.addf %354, %355 : vector<8x128xf32>
    %357 = arith.negf %356 : vector<8x128xf32>
    %358 = math.exp %357 : vector<8x128xf32>
    %cst_141 = arith.constant 1.000000e+00 : f32
    %359 = vector.broadcast %cst_141 : f32 to vector<8x128xf32>
    %360 = arith.addf %359, %358 : vector<8x128xf32>
    %361 = arith.divf %359, %360 : vector<8x128xf32>
    %cst_142 = arith.constant dense<0.000000e+00> : vector<8x128xf32>
    %362 = tpu.matmul %291, %343, %cst_142 {dimension_numbers = #tpu.dot_dimension_numbers<[1], [0], [0], [1], [0, 0, 1, 1], [], []>} : vector<8x128xf32>, vector<128x128xf32>, vector<8x128xf32> -> vector<8x128xf32>
    %363 = vector.extract_strided_slice %344 {offsets = [0, 256], sizes = [8, 128], strides = [1, 1]} : vector<8x384xf32> to vector<8x128xf32>
    %364 = arith.addf %362, %6 : vector<8x128xf32>
    %365 = arith.mulf %353, %364 : vector<8x128xf32>
    %366 = arith.addf %363, %365 : vector<8x128xf32>
    %367 = math.tanh %366 : vector<8x128xf32>
    %cst_143 = arith.constant 1.000000e+00 : f32
    %368 = vector.broadcast %cst_143 : f32 to vector<8x128xf32>
    %369 = arith.subf %368, %361 : vector<8x128xf32>
    %370 = arith.mulf %369, %367 : vector<8x128xf32>
    %371 = arith.mulf %361, %291 : vector<8x128xf32>
    %372 = arith.addf %370, %371 : vector<8x128xf32>
    %373 = arith.index_cast %c4_i32 : i32 to index
    %c0_144 = arith.constant 0 : index
    %c0_145 = arith.constant 0 : index
    %374 = vector.load %arg5[%373, %c0_144, %c0_145] : memref<8x8x128xf32, #tpu.memory_space<vmem>>, vector<1x8x128xf32>
    %375 = vector.shape_cast %374 : vector<1x8x128xf32> to vector<8x128xf32>
    %376 = vector.shape_cast %372 : vector<8x128xf32> to vector<1x8x128xf32>
    tpu.vector_store %arg5[%373, %c0_144, %c0_145], %376 {strides = array<i32>} : memref<8x8x128xf32, #tpu.memory_space<vmem>>, vector<1x8x128xf32>,
    %c7_i32_146 = arith.constant 7 : i32
    %377 = arith.subi %c7_i32_146, %c4_i32 : i32
    %378 = arith.index_cast %377 : i32 to index
    %c0_147 = arith.constant 0 : index
    %c0_148 = arith.constant 0 : index
    %379 = vector.load %arg2[%378, %c0_147, %c0_148] : memref<8x8x384xbf16, #tpu.memory_space<vmem>>, vector<1x8x384xbf16>
    %380 = vector.shape_cast %379 : vector<1x8x384xbf16> to vector<8x384xbf16>
    %c1_149 = arith.constant 1 : index
    %c0_150 = arith.constant 0 : index
    %c0_151 = arith.constant 0 : index
    %381 = vector.load %arg3[%c1_149, %c0_150, %c0_151] : memref<2x128x384xf32, #tpu.memory_space<vmem>>, vector<1x128x256xf32>
    %382 = vector.shape_cast %381 : vector<1x128x256xf32> to vector<128x256xf32>
    %c1_152 = arith.constant 1 : index
    %c0_153 = arith.constant 0 : index
    %c256_154 = arith.constant 256 : index
    %383 = vector.load %arg3[%c1_152, %c0_153, %c256_154] : memref<2x128x384xf32, #tpu.memory_space<vmem>>, vector<1x128x128xf32>
    %384 = vector.shape_cast %383 : vector<1x128x128xf32> to vector<128x128xf32>
    %385 = arith.extf %380 : vector<8x384xbf16> to vector<8x384xf32>
    %cst_155 = arith.constant dense<0.000000e+00> : vector<8x256xf32>
    %386 = tpu.matmul %332, %382, %cst_155 {dimension_numbers = #tpu.dot_dimension_numbers<[1], [0], [0], [1], [0, 0, 1, 1], [], []>} : vector<8x128xf32>, vector<128x256xf32>, vector<8x256xf32> -> vector<8x256xf32>
    %387 = vector.extract_strided_slice %385 {offsets = [0, 0], sizes = [8, 128], strides = [1, 1]} : vector<8x384xf32> to vector<8x128xf32>
    %388 = vector.extract_strided_slice %386 {offsets = [0, 0], sizes = [8, 128], strides = [1, 1]} : vector<8x256xf32> to vector<8x128xf32>
    %389 = arith.addf %387, %388 : vector<8x128xf32>
    %390 = arith.negf %389 : vector<8x128xf32>
    %391 = math.exp %390 : vector<8x128xf32>
    %cst_156 = arith.constant 1.000000e+00 : f32
    %392 = vector.broadcast %cst_156 : f32 to vector<8x128xf32>
    %393 = arith.addf %392, %391 : vector<8x128xf32>
    %394 = arith.divf %392, %393 : vector<8x128xf32>
    %395 = vector.extract_strided_slice %385 {offsets = [0, 128], sizes = [8, 128], strides = [1, 1]} : vector<8x384xf32> to vector<8x128xf32>
    %396 = vector.extract_strided_slice %386 {offsets = [0, 128], sizes = [8, 128], strides = [1, 1]} : vector<8x256xf32> to vector<8x128xf32>
    %397 = arith.addf %395, %396 : vector<8x128xf32>
    %398 = arith.negf %397 : vector<8x128xf32>
    %399 = math.exp %398 : vector<8x128xf32>
    %cst_157 = arith.constant 1.000000e+00 : f32
    %400 = vector.broadcast %cst_157 : f32 to vector<8x128xf32>
    %401 = arith.addf %400, %399 : vector<8x128xf32>
    %402 = arith.divf %400, %401 : vector<8x128xf32>
    %cst_158 = arith.constant dense<0.000000e+00> : vector<8x128xf32>
    %403 = tpu.matmul %332, %384, %cst_158 {dimension_numbers = #tpu.dot_dimension_numbers<[1], [0], [0], [1], [0, 0, 1, 1], [], []>} : vector<8x128xf32>, vector<128x128xf32>, vector<8x128xf32> -> vector<8x128xf32>
    %404 = vector.extract_strided_slice %385 {offsets = [0, 256], sizes = [8, 128], strides = [1, 1]} : vector<8x384xf32> to vector<8x128xf32>
    %405 = arith.addf %403, %10 : vector<8x128xf32>
    %406 = arith.mulf %394, %405 : vector<8x128xf32>
    %407 = arith.addf %404, %406 : vector<8x128xf32>
    %408 = math.tanh %407 : vector<8x128xf32>
    %cst_159 = arith.constant 1.000000e+00 : f32
    %409 = vector.broadcast %cst_159 : f32 to vector<8x128xf32>
    %410 = arith.subf %409, %402 : vector<8x128xf32>
    %411 = arith.mulf %410, %408 : vector<8x128xf32>
    %412 = arith.mulf %402, %332 : vector<8x128xf32>
    %413 = arith.addf %411, %412 : vector<8x128xf32>
    %414 = arith.index_cast %377 : i32 to index
    %c0_160 = arith.constant 0 : index
    %c0_161 = arith.constant 0 : index
    %415 = vector.load %arg6[%414, %c0_160, %c0_161] : memref<8x8x128xf32, #tpu.memory_space<vmem>>, vector<1x8x128xf32>
    %416 = vector.shape_cast %415 : vector<1x8x128xf32> to vector<8x128xf32>
    %417 = vector.shape_cast %413 : vector<8x128xf32> to vector<1x8x128xf32>
    tpu.vector_store %arg6[%414, %c0_160, %c0_161], %417 {strides = array<i32>} : memref<8x8x128xf32, #tpu.memory_space<vmem>>, vector<1x8x128xf32>,
    %c5_i32 = arith.constant 5 : i32
    %418 = arith.index_cast %c5_i32 : i32 to index
    %c0_162 = arith.constant 0 : index
    %c0_163 = arith.constant 0 : index
    %419 = vector.load %arg1[%418, %c0_162, %c0_163] : memref<8x8x384xbf16, #tpu.memory_space<vmem>>, vector<1x8x384xbf16>
    %420 = vector.shape_cast %419 : vector<1x8x384xbf16> to vector<8x384xbf16>
    %c0_164 = arith.constant 0 : index
    %c0_165 = arith.constant 0 : index
    %c0_166 = arith.constant 0 : index
    %421 = vector.load %arg3[%c0_164, %c0_165, %c0_166] : memref<2x128x384xf32, #tpu.memory_space<vmem>>, vector<1x128x256xf32>
    %422 = vector.shape_cast %421 : vector<1x128x256xf32> to vector<128x256xf32>
    %c0_167 = arith.constant 0 : index
    %c0_168 = arith.constant 0 : index
    %c256_169 = arith.constant 256 : index
    %423 = vector.load %arg3[%c0_167, %c0_168, %c256_169] : memref<2x128x384xf32, #tpu.memory_space<vmem>>, vector<1x128x128xf32>
    %424 = vector.shape_cast %423 : vector<1x128x128xf32> to vector<128x128xf32>
    %425 = arith.extf %420 : vector<8x384xbf16> to vector<8x384xf32>
    %cst_170 = arith.constant dense<0.000000e+00> : vector<8x256xf32>
    %426 = tpu.matmul %372, %422, %cst_170 {dimension_numbers = #tpu.dot_dimension_numbers<[1], [0], [0], [1], [0, 0, 1, 1], [], []>} : vector<8x128xf32>, vector<128x256xf32>, vector<8x256xf32> -> vector<8x256xf32>
    %427 = vector.extract_strided_slice %425 {offsets = [0, 0], sizes = [8, 128], strides = [1, 1]} : vector<8x384xf32> to vector<8x128xf32>
    %428 = vector.extract_strided_slice %426 {offsets = [0, 0], sizes = [8, 128], strides = [1, 1]} : vector<8x256xf32> to vector<8x128xf32>
    %429 = arith.addf %427, %428 : vector<8x128xf32>
    %430 = arith.negf %429 : vector<8x128xf32>
    %431 = math.exp %430 : vector<8x128xf32>
    %cst_171 = arith.constant 1.000000e+00 : f32
    %432 = vector.broadcast %cst_171 : f32 to vector<8x128xf32>
    %433 = arith.addf %432, %431 : vector<8x128xf32>
    %434 = arith.divf %432, %433 : vector<8x128xf32>
    %435 = vector.extract_strided_slice %425 {offsets = [0, 128], sizes = [8, 128], strides = [1, 1]} : vector<8x384xf32> to vector<8x128xf32>
    %436 = vector.extract_strided_slice %426 {offsets = [0, 128], sizes = [8, 128], strides = [1, 1]} : vector<8x256xf32> to vector<8x128xf32>
    %437 = arith.addf %435, %436 : vector<8x128xf32>
    %438 = arith.negf %437 : vector<8x128xf32>
    %439 = math.exp %438 : vector<8x128xf32>
    %cst_172 = arith.constant 1.000000e+00 : f32
    %440 = vector.broadcast %cst_172 : f32 to vector<8x128xf32>
    %441 = arith.addf %440, %439 : vector<8x128xf32>
    %442 = arith.divf %440, %441 : vector<8x128xf32>
    %cst_173 = arith.constant dense<0.000000e+00> : vector<8x128xf32>
    %443 = tpu.matmul %372, %424, %cst_173 {dimension_numbers = #tpu.dot_dimension_numbers<[1], [0], [0], [1], [0, 0, 1, 1], [], []>} : vector<8x128xf32>, vector<128x128xf32>, vector<8x128xf32> -> vector<8x128xf32>
    %444 = vector.extract_strided_slice %425 {offsets = [0, 256], sizes = [8, 128], strides = [1, 1]} : vector<8x384xf32> to vector<8x128xf32>
    %445 = arith.addf %443, %6 : vector<8x128xf32>
    %446 = arith.mulf %434, %445 : vector<8x128xf32>
    %447 = arith.addf %444, %446 : vector<8x128xf32>
    %448 = math.tanh %447 : vector<8x128xf32>
    %cst_174 = arith.constant 1.000000e+00 : f32
    %449 = vector.broadcast %cst_174 : f32 to vector<8x128xf32>
    %450 = arith.subf %449, %442 : vector<8x128xf32>
    %451 = arith.mulf %450, %448 : vector<8x128xf32>
    %452 = arith.mulf %442, %372 : vector<8x128xf32>
    %453 = arith.addf %451, %452 : vector<8x128xf32>
    %454 = arith.index_cast %c5_i32 : i32 to index
    %c0_175 = arith.constant 0 : index
    %c0_176 = arith.constant 0 : index
    %455 = vector.load %arg5[%454, %c0_175, %c0_176] : memref<8x8x128xf32, #tpu.memory_space<vmem>>, vector<1x8x128xf32>
    %456 = vector.shape_cast %455 : vector<1x8x128xf32> to vector<8x128xf32>
    %457 = vector.shape_cast %453 : vector<8x128xf32> to vector<1x8x128xf32>
    tpu.vector_store %arg5[%454, %c0_175, %c0_176], %457 {strides = array<i32>} : memref<8x8x128xf32, #tpu.memory_space<vmem>>, vector<1x8x128xf32>,
    %c7_i32_177 = arith.constant 7 : i32
    %458 = arith.subi %c7_i32_177, %c5_i32 : i32
    %459 = arith.index_cast %458 : i32 to index
    %c0_178 = arith.constant 0 : index
    %c0_179 = arith.constant 0 : index
    %460 = vector.load %arg2[%459, %c0_178, %c0_179] : memref<8x8x384xbf16, #tpu.memory_space<vmem>>, vector<1x8x384xbf16>
    %461 = vector.shape_cast %460 : vector<1x8x384xbf16> to vector<8x384xbf16>
    %c1_180 = arith.constant 1 : index
    %c0_181 = arith.constant 0 : index
    %c0_182 = arith.constant 0 : index
    %462 = vector.load %arg3[%c1_180, %c0_181, %c0_182] : memref<2x128x384xf32, #tpu.memory_space<vmem>>, vector<1x128x256xf32>
    %463 = vector.shape_cast %462 : vector<1x128x256xf32> to vector<128x256xf32>
    %c1_183 = arith.constant 1 : index
    %c0_184 = arith.constant 0 : index
    %c256_185 = arith.constant 256 : index
    %464 = vector.load %arg3[%c1_183, %c0_184, %c256_185] : memref<2x128x384xf32, #tpu.memory_space<vmem>>, vector<1x128x128xf32>
    %465 = vector.shape_cast %464 : vector<1x128x128xf32> to vector<128x128xf32>
    %466 = arith.extf %461 : vector<8x384xbf16> to vector<8x384xf32>
    %cst_186 = arith.constant dense<0.000000e+00> : vector<8x256xf32>
    %467 = tpu.matmul %413, %463, %cst_186 {dimension_numbers = #tpu.dot_dimension_numbers<[1], [0], [0], [1], [0, 0, 1, 1], [], []>} : vector<8x128xf32>, vector<128x256xf32>, vector<8x256xf32> -> vector<8x256xf32>
    %468 = vector.extract_strided_slice %466 {offsets = [0, 0], sizes = [8, 128], strides = [1, 1]} : vector<8x384xf32> to vector<8x128xf32>
    %469 = vector.extract_strided_slice %467 {offsets = [0, 0], sizes = [8, 128], strides = [1, 1]} : vector<8x256xf32> to vector<8x128xf32>
    %470 = arith.addf %468, %469 : vector<8x128xf32>
    %471 = arith.negf %470 : vector<8x128xf32>
    %472 = math.exp %471 : vector<8x128xf32>
    %cst_187 = arith.constant 1.000000e+00 : f32
    %473 = vector.broadcast %cst_187 : f32 to vector<8x128xf32>
    %474 = arith.addf %473, %472 : vector<8x128xf32>
    %475 = arith.divf %473, %474 : vector<8x128xf32>
    %476 = vector.extract_strided_slice %466 {offsets = [0, 128], sizes = [8, 128], strides = [1, 1]} : vector<8x384xf32> to vector<8x128xf32>
    %477 = vector.extract_strided_slice %467 {offsets = [0, 128], sizes = [8, 128], strides = [1, 1]} : vector<8x256xf32> to vector<8x128xf32>
    %478 = arith.addf %476, %477 : vector<8x128xf32>
    %479 = arith.negf %478 : vector<8x128xf32>
    %480 = math.exp %479 : vector<8x128xf32>
    %cst_188 = arith.constant 1.000000e+00 : f32
    %481 = vector.broadcast %cst_188 : f32 to vector<8x128xf32>
    %482 = arith.addf %481, %480 : vector<8x128xf32>
    %483 = arith.divf %481, %482 : vector<8x128xf32>
    %cst_189 = arith.constant dense<0.000000e+00> : vector<8x128xf32>
    %484 = tpu.matmul %413, %465, %cst_189 {dimension_numbers = #tpu.dot_dimension_numbers<[1], [0], [0], [1], [0, 0, 1, 1], [], []>} : vector<8x128xf32>, vector<128x128xf32>, vector<8x128xf32> -> vector<8x128xf32>
    %485 = vector.extract_strided_slice %466 {offsets = [0, 256], sizes = [8, 128], strides = [1, 1]} : vector<8x384xf32> to vector<8x128xf32>
    %486 = arith.addf %484, %10 : vector<8x128xf32>
    %487 = arith.mulf %475, %486 : vector<8x128xf32>
    %488 = arith.addf %485, %487 : vector<8x128xf32>
    %489 = math.tanh %488 : vector<8x128xf32>
    %cst_190 = arith.constant 1.000000e+00 : f32
    %490 = vector.broadcast %cst_190 : f32 to vector<8x128xf32>
    %491 = arith.subf %490, %483 : vector<8x128xf32>
    %492 = arith.mulf %491, %489 : vector<8x128xf32>
    %493 = arith.mulf %483, %413 : vector<8x128xf32>
    %494 = arith.addf %492, %493 : vector<8x128xf32>
    %495 = arith.index_cast %458 : i32 to index
    %c0_191 = arith.constant 0 : index
    %c0_192 = arith.constant 0 : index
    %496 = vector.load %arg6[%495, %c0_191, %c0_192] : memref<8x8x128xf32, #tpu.memory_space<vmem>>, vector<1x8x128xf32>
    %497 = vector.shape_cast %496 : vector<1x8x128xf32> to vector<8x128xf32>
    %498 = vector.shape_cast %494 : vector<8x128xf32> to vector<1x8x128xf32>
    tpu.vector_store %arg6[%495, %c0_191, %c0_192], %498 {strides = array<i32>} : memref<8x8x128xf32, #tpu.memory_space<vmem>>, vector<1x8x128xf32>,
    %c6_i32 = arith.constant 6 : i32
    %499 = arith.index_cast %c6_i32 : i32 to index
    %c0_193 = arith.constant 0 : index
    %c0_194 = arith.constant 0 : index
    %500 = vector.load %arg1[%499, %c0_193, %c0_194] : memref<8x8x384xbf16, #tpu.memory_space<vmem>>, vector<1x8x384xbf16>
    %501 = vector.shape_cast %500 : vector<1x8x384xbf16> to vector<8x384xbf16>
    %c0_195 = arith.constant 0 : index
    %c0_196 = arith.constant 0 : index
    %c0_197 = arith.constant 0 : index
    %502 = vector.load %arg3[%c0_195, %c0_196, %c0_197] : memref<2x128x384xf32, #tpu.memory_space<vmem>>, vector<1x128x256xf32>
    %503 = vector.shape_cast %502 : vector<1x128x256xf32> to vector<128x256xf32>
    %c0_198 = arith.constant 0 : index
    %c0_199 = arith.constant 0 : index
    %c256_200 = arith.constant 256 : index
    %504 = vector.load %arg3[%c0_198, %c0_199, %c256_200] : memref<2x128x384xf32, #tpu.memory_space<vmem>>, vector<1x128x128xf32>
    %505 = vector.shape_cast %504 : vector<1x128x128xf32> to vector<128x128xf32>
    %506 = arith.extf %501 : vector<8x384xbf16> to vector<8x384xf32>
    %cst_201 = arith.constant dense<0.000000e+00> : vector<8x256xf32>
    %507 = tpu.matmul %453, %503, %cst_201 {dimension_numbers = #tpu.dot_dimension_numbers<[1], [0], [0], [1], [0, 0, 1, 1], [], []>} : vector<8x128xf32>, vector<128x256xf32>, vector<8x256xf32> -> vector<8x256xf32>
    %508 = vector.extract_strided_slice %506 {offsets = [0, 0], sizes = [8, 128], strides = [1, 1]} : vector<8x384xf32> to vector<8x128xf32>
    %509 = vector.extract_strided_slice %507 {offsets = [0, 0], sizes = [8, 128], strides = [1, 1]} : vector<8x256xf32> to vector<8x128xf32>
    %510 = arith.addf %508, %509 : vector<8x128xf32>
    %511 = arith.negf %510 : vector<8x128xf32>
    %512 = math.exp %511 : vector<8x128xf32>
    %cst_202 = arith.constant 1.000000e+00 : f32
    %513 = vector.broadcast %cst_202 : f32 to vector<8x128xf32>
    %514 = arith.addf %513, %512 : vector<8x128xf32>
    %515 = arith.divf %513, %514 : vector<8x128xf32>
    %516 = vector.extract_strided_slice %506 {offsets = [0, 128], sizes = [8, 128], strides = [1, 1]} : vector<8x384xf32> to vector<8x128xf32>
    %517 = vector.extract_strided_slice %507 {offsets = [0, 128], sizes = [8, 128], strides = [1, 1]} : vector<8x256xf32> to vector<8x128xf32>
    %518 = arith.addf %516, %517 : vector<8x128xf32>
    %519 = arith.negf %518 : vector<8x128xf32>
    %520 = math.exp %519 : vector<8x128xf32>
    %cst_203 = arith.constant 1.000000e+00 : f32
    %521 = vector.broadcast %cst_203 : f32 to vector<8x128xf32>
    %522 = arith.addf %521, %520 : vector<8x128xf32>
    %523 = arith.divf %521, %522 : vector<8x128xf32>
    %cst_204 = arith.constant dense<0.000000e+00> : vector<8x128xf32>
    %524 = tpu.matmul %453, %505, %cst_204 {dimension_numbers = #tpu.dot_dimension_numbers<[1], [0], [0], [1], [0, 0, 1, 1], [], []>} : vector<8x128xf32>, vector<128x128xf32>, vector<8x128xf32> -> vector<8x128xf32>
    %525 = vector.extract_strided_slice %506 {offsets = [0, 256], sizes = [8, 128], strides = [1, 1]} : vector<8x384xf32> to vector<8x128xf32>
    %526 = arith.addf %524, %6 : vector<8x128xf32>
    %527 = arith.mulf %515, %526 : vector<8x128xf32>
    %528 = arith.addf %525, %527 : vector<8x128xf32>
    %529 = math.tanh %528 : vector<8x128xf32>
    %cst_205 = arith.constant 1.000000e+00 : f32
    %530 = vector.broadcast %cst_205 : f32 to vector<8x128xf32>
    %531 = arith.subf %530, %523 : vector<8x128xf32>
    %532 = arith.mulf %531, %529 : vector<8x128xf32>
    %533 = arith.mulf %523, %453 : vector<8x128xf32>
    %534 = arith.addf %532, %533 : vector<8x128xf32>
    %535 = arith.index_cast %c6_i32 : i32 to index
    %c0_206 = arith.constant 0 : index
    %c0_207 = arith.constant 0 : index
    %536 = vector.load %arg5[%535, %c0_206, %c0_207] : memref<8x8x128xf32, #tpu.memory_space<vmem>>, vector<1x8x128xf32>
    %537 = vector.shape_cast %536 : vector<1x8x128xf32> to vector<8x128xf32>
    %538 = vector.shape_cast %534 : vector<8x128xf32> to vector<1x8x128xf32>
    tpu.vector_store %arg5[%535, %c0_206, %c0_207], %538 {strides = array<i32>} : memref<8x8x128xf32, #tpu.memory_space<vmem>>, vector<1x8x128xf32>,
    %c7_i32_208 = arith.constant 7 : i32
    %539 = arith.subi %c7_i32_208, %c6_i32 : i32
    %540 = arith.index_cast %539 : i32 to index
    %c0_209 = arith.constant 0 : index
    %c0_210 = arith.constant 0 : index
    %541 = vector.load %arg2[%540, %c0_209, %c0_210] : memref<8x8x384xbf16, #tpu.memory_space<vmem>>, vector<1x8x384xbf16>
    %542 = vector.shape_cast %541 : vector<1x8x384xbf16> to vector<8x384xbf16>
    %c1_211 = arith.constant 1 : index
    %c0_212 = arith.constant 0 : index
    %c0_213 = arith.constant 0 : index
    %543 = vector.load %arg3[%c1_211, %c0_212, %c0_213] : memref<2x128x384xf32, #tpu.memory_space<vmem>>, vector<1x128x256xf32>
    %544 = vector.shape_cast %543 : vector<1x128x256xf32> to vector<128x256xf32>
    %c1_214 = arith.constant 1 : index
    %c0_215 = arith.constant 0 : index
    %c256_216 = arith.constant 256 : index
    %545 = vector.load %arg3[%c1_214, %c0_215, %c256_216] : memref<2x128x384xf32, #tpu.memory_space<vmem>>, vector<1x128x128xf32>
    %546 = vector.shape_cast %545 : vector<1x128x128xf32> to vector<128x128xf32>
    %547 = arith.extf %542 : vector<8x384xbf16> to vector<8x384xf32>
    %cst_217 = arith.constant dense<0.000000e+00> : vector<8x256xf32>
    %548 = tpu.matmul %494, %544, %cst_217 {dimension_numbers = #tpu.dot_dimension_numbers<[1], [0], [0], [1], [0, 0, 1, 1], [], []>} : vector<8x128xf32>, vector<128x256xf32>, vector<8x256xf32> -> vector<8x256xf32>
    %549 = vector.extract_strided_slice %547 {offsets = [0, 0], sizes = [8, 128], strides = [1, 1]} : vector<8x384xf32> to vector<8x128xf32>
    %550 = vector.extract_strided_slice %548 {offsets = [0, 0], sizes = [8, 128], strides = [1, 1]} : vector<8x256xf32> to vector<8x128xf32>
    %551 = arith.addf %549, %550 : vector<8x128xf32>
    %552 = arith.negf %551 : vector<8x128xf32>
    %553 = math.exp %552 : vector<8x128xf32>
    %cst_218 = arith.constant 1.000000e+00 : f32
    %554 = vector.broadcast %cst_218 : f32 to vector<8x128xf32>
    %555 = arith.addf %554, %553 : vector<8x128xf32>
    %556 = arith.divf %554, %555 : vector<8x128xf32>
    %557 = vector.extract_strided_slice %547 {offsets = [0, 128], sizes = [8, 128], strides = [1, 1]} : vector<8x384xf32> to vector<8x128xf32>
    %558 = vector.extract_strided_slice %548 {offsets = [0, 128], sizes = [8, 128], strides = [1, 1]} : vector<8x256xf32> to vector<8x128xf32>
    %559 = arith.addf %557, %558 : vector<8x128xf32>
    %560 = arith.negf %559 : vector<8x128xf32>
    %561 = math.exp %560 : vector<8x128xf32>
    %cst_219 = arith.constant 1.000000e+00 : f32
    %562 = vector.broadcast %cst_219 : f32 to vector<8x128xf32>
    %563 = arith.addf %562, %561 : vector<8x128xf32>
    %564 = arith.divf %562, %563 : vector<8x128xf32>
    %cst_220 = arith.constant dense<0.000000e+00> : vector<8x128xf32>
    %565 = tpu.matmul %494, %546, %cst_220 {dimension_numbers = #tpu.dot_dimension_numbers<[1], [0], [0], [1], [0, 0, 1, 1], [], []>} : vector<8x128xf32>, vector<128x128xf32>, vector<8x128xf32> -> vector<8x128xf32>
    %566 = vector.extract_strided_slice %547 {offsets = [0, 256], sizes = [8, 128], strides = [1, 1]} : vector<8x384xf32> to vector<8x128xf32>
    %567 = arith.addf %565, %10 : vector<8x128xf32>
    %568 = arith.mulf %556, %567 : vector<8x128xf32>
    %569 = arith.addf %566, %568 : vector<8x128xf32>
    %570 = math.tanh %569 : vector<8x128xf32>
    %cst_221 = arith.constant 1.000000e+00 : f32
    %571 = vector.broadcast %cst_221 : f32 to vector<8x128xf32>
    %572 = arith.subf %571, %564 : vector<8x128xf32>
    %573 = arith.mulf %572, %570 : vector<8x128xf32>
    %574 = arith.mulf %564, %494 : vector<8x128xf32>
    %575 = arith.addf %573, %574 : vector<8x128xf32>
    %576 = arith.index_cast %539 : i32 to index
    %c0_222 = arith.constant 0 : index
    %c0_223 = arith.constant 0 : index
    %577 = vector.load %arg6[%576, %c0_222, %c0_223] : memref<8x8x128xf32, #tpu.memory_space<vmem>>, vector<1x8x128xf32>
    %578 = vector.shape_cast %577 : vector<1x8x128xf32> to vector<8x128xf32>
    %579 = vector.shape_cast %575 : vector<8x128xf32> to vector<1x8x128xf32>
    tpu.vector_store %arg6[%576, %c0_222, %c0_223], %579 {strides = array<i32>} : memref<8x8x128xf32, #tpu.memory_space<vmem>>, vector<1x8x128xf32>,
    %c7_i32_224 = arith.constant 7 : i32
    %580 = arith.index_cast %c7_i32_224 : i32 to index
    %c0_225 = arith.constant 0 : index
    %c0_226 = arith.constant 0 : index
    %581 = vector.load %arg1[%580, %c0_225, %c0_226] : memref<8x8x384xbf16, #tpu.memory_space<vmem>>, vector<1x8x384xbf16>
    %582 = vector.shape_cast %581 : vector<1x8x384xbf16> to vector<8x384xbf16>
    %c0_227 = arith.constant 0 : index
    %c0_228 = arith.constant 0 : index
    %c0_229 = arith.constant 0 : index
    %583 = vector.load %arg3[%c0_227, %c0_228, %c0_229] : memref<2x128x384xf32, #tpu.memory_space<vmem>>, vector<1x128x256xf32>
    %584 = vector.shape_cast %583 : vector<1x128x256xf32> to vector<128x256xf32>
    %c0_230 = arith.constant 0 : index
    %c0_231 = arith.constant 0 : index
    %c256_232 = arith.constant 256 : index
    %585 = vector.load %arg3[%c0_230, %c0_231, %c256_232] : memref<2x128x384xf32, #tpu.memory_space<vmem>>, vector<1x128x128xf32>
    %586 = vector.shape_cast %585 : vector<1x128x128xf32> to vector<128x128xf32>
    %587 = arith.extf %582 : vector<8x384xbf16> to vector<8x384xf32>
    %cst_233 = arith.constant dense<0.000000e+00> : vector<8x256xf32>
    %588 = tpu.matmul %534, %584, %cst_233 {dimension_numbers = #tpu.dot_dimension_numbers<[1], [0], [0], [1], [0, 0, 1, 1], [], []>} : vector<8x128xf32>, vector<128x256xf32>, vector<8x256xf32> -> vector<8x256xf32>
    %589 = vector.extract_strided_slice %587 {offsets = [0, 0], sizes = [8, 128], strides = [1, 1]} : vector<8x384xf32> to vector<8x128xf32>
    %590 = vector.extract_strided_slice %588 {offsets = [0, 0], sizes = [8, 128], strides = [1, 1]} : vector<8x256xf32> to vector<8x128xf32>
    %591 = arith.addf %589, %590 : vector<8x128xf32>
    %592 = arith.negf %591 : vector<8x128xf32>
    %593 = math.exp %592 : vector<8x128xf32>
    %cst_234 = arith.constant 1.000000e+00 : f32
    %594 = vector.broadcast %cst_234 : f32 to vector<8x128xf32>
    %595 = arith.addf %594, %593 : vector<8x128xf32>
    %596 = arith.divf %594, %595 : vector<8x128xf32>
    %597 = vector.extract_strided_slice %587 {offsets = [0, 128], sizes = [8, 128], strides = [1, 1]} : vector<8x384xf32> to vector<8x128xf32>
    %598 = vector.extract_strided_slice %588 {offsets = [0, 128], sizes = [8, 128], strides = [1, 1]} : vector<8x256xf32> to vector<8x128xf32>
    %599 = arith.addf %597, %598 : vector<8x128xf32>
    %600 = arith.negf %599 : vector<8x128xf32>
    %601 = math.exp %600 : vector<8x128xf32>
    %cst_235 = arith.constant 1.000000e+00 : f32
    %602 = vector.broadcast %cst_235 : f32 to vector<8x128xf32>
    %603 = arith.addf %602, %601 : vector<8x128xf32>
    %604 = arith.divf %602, %603 : vector<8x128xf32>
    %cst_236 = arith.constant dense<0.000000e+00> : vector<8x128xf32>
    %605 = tpu.matmul %534, %586, %cst_236 {dimension_numbers = #tpu.dot_dimension_numbers<[1], [0], [0], [1], [0, 0, 1, 1], [], []>} : vector<8x128xf32>, vector<128x128xf32>, vector<8x128xf32> -> vector<8x128xf32>
    %606 = vector.extract_strided_slice %587 {offsets = [0, 256], sizes = [8, 128], strides = [1, 1]} : vector<8x384xf32> to vector<8x128xf32>
    %607 = arith.addf %605, %6 : vector<8x128xf32>
    %608 = arith.mulf %596, %607 : vector<8x128xf32>
    %609 = arith.addf %606, %608 : vector<8x128xf32>
    %610 = math.tanh %609 : vector<8x128xf32>
    %cst_237 = arith.constant 1.000000e+00 : f32
    %611 = vector.broadcast %cst_237 : f32 to vector<8x128xf32>
    %612 = arith.subf %611, %604 : vector<8x128xf32>
    %613 = arith.mulf %612, %610 : vector<8x128xf32>
    %614 = arith.mulf %604, %534 : vector<8x128xf32>
    %615 = arith.addf %613, %614 : vector<8x128xf32>
    %616 = arith.index_cast %c7_i32_224 : i32 to index
    %c0_238 = arith.constant 0 : index
    %c0_239 = arith.constant 0 : index
    %617 = vector.load %arg5[%616, %c0_238, %c0_239] : memref<8x8x128xf32, #tpu.memory_space<vmem>>, vector<1x8x128xf32>
    %618 = vector.shape_cast %617 : vector<1x8x128xf32> to vector<8x128xf32>
    %619 = vector.shape_cast %615 : vector<8x128xf32> to vector<1x8x128xf32>
    tpu.vector_store %arg5[%616, %c0_238, %c0_239], %619 {strides = array<i32>} : memref<8x8x128xf32, #tpu.memory_space<vmem>>, vector<1x8x128xf32>,
    %c7_i32_240 = arith.constant 7 : i32
    %620 = arith.subi %c7_i32_240, %c7_i32_224 : i32
    %621 = arith.index_cast %620 : i32 to index
    %c0_241 = arith.constant 0 : index
    %c0_242 = arith.constant 0 : index
    %622 = vector.load %arg2[%621, %c0_241, %c0_242] : memref<8x8x384xbf16, #tpu.memory_space<vmem>>, vector<1x8x384xbf16>
    %623 = vector.shape_cast %622 : vector<1x8x384xbf16> to vector<8x384xbf16>
    %c1_243 = arith.constant 1 : index
    %c0_244 = arith.constant 0 : index
    %c0_245 = arith.constant 0 : index
    %624 = vector.load %arg3[%c1_243, %c0_244, %c0_245] : memref<2x128x384xf32, #tpu.memory_space<vmem>>, vector<1x128x256xf32>
    %625 = vector.shape_cast %624 : vector<1x128x256xf32> to vector<128x256xf32>
    %c1_246 = arith.constant 1 : index
    %c0_247 = arith.constant 0 : index
    %c256_248 = arith.constant 256 : index
    %626 = vector.load %arg3[%c1_246, %c0_247, %c256_248] : memref<2x128x384xf32, #tpu.memory_space<vmem>>, vector<1x128x128xf32>
    %627 = vector.shape_cast %626 : vector<1x128x128xf32> to vector<128x128xf32>
    %628 = arith.extf %623 : vector<8x384xbf16> to vector<8x384xf32>
    %cst_249 = arith.constant dense<0.000000e+00> : vector<8x256xf32>
    %629 = tpu.matmul %575, %625, %cst_249 {dimension_numbers = #tpu.dot_dimension_numbers<[1], [0], [0], [1], [0, 0, 1, 1], [], []>} : vector<8x128xf32>, vector<128x256xf32>, vector<8x256xf32> -> vector<8x256xf32>
    %630 = vector.extract_strided_slice %628 {offsets = [0, 0], sizes = [8, 128], strides = [1, 1]} : vector<8x384xf32> to vector<8x128xf32>
    %631 = vector.extract_strided_slice %629 {offsets = [0, 0], sizes = [8, 128], strides = [1, 1]} : vector<8x256xf32> to vector<8x128xf32>
    %632 = arith.addf %630, %631 : vector<8x128xf32>
    %633 = arith.negf %632 : vector<8x128xf32>
    %634 = math.exp %633 : vector<8x128xf32>
    %cst_250 = arith.constant 1.000000e+00 : f32
    %635 = vector.broadcast %cst_250 : f32 to vector<8x128xf32>
    %636 = arith.addf %635, %634 : vector<8x128xf32>
    %637 = arith.divf %635, %636 : vector<8x128xf32>
    %638 = vector.extract_strided_slice %628 {offsets = [0, 128], sizes = [8, 128], strides = [1, 1]} : vector<8x384xf32> to vector<8x128xf32>
    %639 = vector.extract_strided_slice %629 {offsets = [0, 128], sizes = [8, 128], strides = [1, 1]} : vector<8x256xf32> to vector<8x128xf32>
    %640 = arith.addf %638, %639 : vector<8x128xf32>
    %641 = arith.negf %640 : vector<8x128xf32>
    %642 = math.exp %641 : vector<8x128xf32>
    %cst_251 = arith.constant 1.000000e+00 : f32
    %643 = vector.broadcast %cst_251 : f32 to vector<8x128xf32>
    %644 = arith.addf %643, %642 : vector<8x128xf32>
    %645 = arith.divf %643, %644 : vector<8x128xf32>
    %cst_252 = arith.constant dense<0.000000e+00> : vector<8x128xf32>
    %646 = tpu.matmul %575, %627, %cst_252 {dimension_numbers = #tpu.dot_dimension_numbers<[1], [0], [0], [1], [0, 0, 1, 1], [], []>} : vector<8x128xf32>, vector<128x128xf32>, vector<8x128xf32> -> vector<8x128xf32>
    %647 = vector.extract_strided_slice %628 {offsets = [0, 256], sizes = [8, 128], strides = [1, 1]} : vector<8x384xf32> to vector<8x128xf32>
    %648 = arith.addf %646, %10 : vector<8x128xf32>
    %649 = arith.mulf %637, %648 : vector<8x128xf32>
    %650 = arith.addf %647, %649 : vector<8x128xf32>
    %651 = math.tanh %650 : vector<8x128xf32>
    %cst_253 = arith.constant 1.000000e+00 : f32
    %652 = vector.broadcast %cst_253 : f32 to vector<8x128xf32>
    %653 = arith.subf %652, %645 : vector<8x128xf32>
    %654 = arith.mulf %653, %651 : vector<8x128xf32>
    %655 = arith.mulf %645, %575 : vector<8x128xf32>
    %656 = arith.addf %654, %655 : vector<8x128xf32>
    %657 = arith.index_cast %620 : i32 to index
    %c0_254 = arith.constant 0 : index
    %c0_255 = arith.constant 0 : index
    %658 = vector.load %arg6[%657, %c0_254, %c0_255] : memref<8x8x128xf32, #tpu.memory_space<vmem>>, vector<1x8x128xf32>
    %659 = vector.shape_cast %658 : vector<1x8x128xf32> to vector<8x128xf32>
    %660 = vector.shape_cast %656 : vector<8x128xf32> to vector<1x8x128xf32>
    tpu.vector_store %arg6[%657, %c0_254, %c0_255], %660 {strides = array<i32>} : memref<8x8x128xf32, #tpu.memory_space<vmem>>, vector<1x8x128xf32>,
    %c8_i32 = arith.constant 8 : i32
    %c0_256 = arith.constant 0 : index
    %c0_257 = arith.constant 0 : index
    %661 = vector.load %arg7[%c0_256, %c0_257] : memref<8x128xf32, #tpu.memory_space<vmem>>, vector<8x128xf32>
    tpu.vector_store %arg7[%c0_256, %c0_257], %615 {strides = array<i32>} : memref<8x128xf32, #tpu.memory_space<vmem>>, vector<8x128xf32>,
    %c0_258 = arith.constant 0 : index
    %c0_259 = arith.constant 0 : index
    %662 = vector.load %arg8[%c0_258, %c0_259] : memref<8x128xf32, #tpu.memory_space<vmem>>, vector<8x128xf32>
    tpu.vector_store %arg8[%c0_258, %c0_259], %656 {strides = array<i32>} : memref<8x128xf32, #tpu.memory_space<vmem>>, vector<8x128xf32>,
    return
  }
  func.func @transform_0(%arg0: i32) -> (i32, i32, i32) {
    %c0_i32 = arith.constant 0 : i32
    %c0_i32_0 = arith.constant 0 : i32
    %c0_i32_1 = arith.constant 0 : i32
    return %arg0, %c0_i32, %c0_i32_0 : i32, i32, i32
  }
  func.func @transform_1(%arg0: i32) -> (i32, i32, i32) {
    %c0_i32 = arith.constant 0 : i32
    %0 = arith.subi %c0_i32, %arg0 : i32
    %c0_i32_0 = arith.constant 0 : i32
    %c0_i32_1 = arith.constant 0 : i32
    %c0_i32_2 = arith.constant 0 : i32
    return %0, %c0_i32_0, %c0_i32_1 : i32, i32, i32
  }
  func.func @transform_2(%arg0: i32) -> (i32, i32, i32) {
    %c0_i32 = arith.constant 0 : i32
    %c0_i32_0 = arith.constant 0 : i32
    %c0_i32_1 = arith.constant 0 : i32
    %c0_i32_2 = arith.constant 0 : i32
    return %c0_i32, %c0_i32_0, %c0_i32_1 : i32, i32, i32
  }
  func.func @transform_3(%arg0: i32) -> (i32, i32, i32) {
    %c0_i32 = arith.constant 0 : i32
    %c0_i32_0 = arith.constant 0 : i32
    %c0_i32_1 = arith.constant 0 : i32
    %c0_i32_2 = arith.constant 0 : i32
    return %c0_i32, %c0_i32_0, %c0_i32_1 : i32, i32, i32
  }
  func.func @transform_4(%arg0: i32) -> (i32, i32, i32) {
    %c0_i32 = arith.constant 0 : i32
    %c0_i32_0 = arith.constant 0 : i32
    %c0_i32_1 = arith.constant 0 : i32
    return %arg0, %c0_i32, %c0_i32_0 : i32, i32, i32
  }
  func.func @transform_5(%arg0: i32) -> (i32, i32, i32) {
    %c0_i32 = arith.constant 0 : i32
    %0 = arith.subi %c0_i32, %arg0 : i32
    %c0_i32_0 = arith.constant 0 : i32
    %c0_i32_1 = arith.constant 0 : i32
    %c0_i32_2 = arith.constant 0 : i32
    return %0, %c0_i32_0, %c0_i32_1 : i32, i32, i32
  }
}

</mosaic_0001>

<llo_original>
// kernel: tpu_custom_call.1
$region0: #{tpu_custom_call.1}
  #allocation0 [shape = 'u32[]', space=smem, size = 0x4, offset = 0x4, fixed_abs, tag = 'smem constant byte address 0x4 - core index']
  #allocation1 [shape = 'u32[72,128]{1,0:T(1,128)}', space=vmem, size = 0x9000, scoped, tag = 'internal scratch']
  #allocation2 [shape = 'f32[8,128]{1,0:T(8,128)}', space=vmem, size = 0x1000, scoped, tag = 'scratch operand']
  #allocation3 [shape = 'f32[8,128]{1,0:T(8,128)}', space=vmem, size = 0x1000, scoped, tag = 'scratch operand']
  %s0 = inlined_call_operand.hbm [shape: bf16[8,8,384], index: 0, kind: input, shape index: {}]
  %s1 = inlined_call_operand.hbm [shape: bf16[8,8,384], index: 1, kind: input, shape index: {}]
  %s2 = inlined_call_operand.hbm [shape: f32[2,128,384], index: 2, kind: input, shape index: {}]
  %s3 = inlined_call_operand.vmem [shape: f32[2,1,128], index: 3, kind: input, shape index: {}]
  %s4 = inlined_call_operand.hbm [shape: f32[8,8,128], index: 4, kind: output, shape index: {0}]
  %s5 = inlined_call_operand.hbm [shape: f32[8,8,128], index: 5, kind: output, shape index: {1}]
  %6 = xla_tuple %s4, %s5
  %s7 = sld [smem:[#allocation0]]
  $region50: #{tpu_custom_call.1} parent=0
    _
  %s9 = ssub.s32 1, %s7
  %s10 = scalar_select 0, %s9, %s7
  $region1: #{tpu_custom_call.1} parent=0
    #allocation4 [shape = 'u8[49152]{0}', space=vmem, size = 0xc000, scoped, tag = 'input window, operand 0, single buffered']
    #allocation5 [shape = 's32[1]{0}', space=sflag, size = 0x4, scoped, tag = 'scoped memory for tpu_custom_call.1']
    #allocation6 [shape = 's32[1]{0}', space=sflag, size = 0x4, scoped, tag = 'scoped memory for tpu_custom_call.1']
    #allocation7 [shape = 'u8[49152]{0}', space=vmem, size = 0xc000, scoped, tag = 'input window, operand 1, single buffered']
    #allocation8 [shape = 's32[1]{0}', space=sflag, size = 0x4, scoped, tag = 'scoped memory for tpu_custom_call.1']
    #allocation9 [shape = 'u8[393216]{0}', space=vmem, size = 0x60000, scoped, tag = 'input window, operand 2, single buffered']
    #allocation10 [shape = 'u8[32768]{0}', space=vmem, size = 0x8000, scoped, tag = 'output window, operand 0, single buffered']
    #allocation11 [shape = 'u8[32768]{0}', space=vmem, size = 0x8000, scoped, tag = 'output window, operand 1, single buffered']
    #allocation12 [shape = 's32[1]{0}', space=sflag, size = 0x4, scoped, tag = 'scoped memory for tpu_custom_call.1']
    %11 = vsyncpa [#allocation5], 0
    %12 = vsyncpa [#allocation8], 0
    %13 = vsyncpa [#allocation6], 0
    %14 = vsyncpa [#allocation12], 0
    // Predicated region
    $region2: #{tpu_custom_call.1} parent=1 // pred_check
      _
    $region3: #{tpu_custom_call.1} parent=1 // pred_check_branch
      %16 = sbr.rel (0) target = $region5
    $region4: #{tpu_custom_call.1} parent=1 // pred_region
      %18 = vsyncadd [#allocation5], 0
      %s19 = sshll.u32 %s0, 4
      %s20 = int_to_ptr.hbm [resolvable:$true] %s19
      %s21 = sshll.u32 [#allocation4], 4
      %s22 = int_to_ptr.vmem [resolvable:$true] %s21
      %27 = dma.hbm_to_vmem [thread:$0]  %s20, 1536, %s22, [#allocation5], 192, 192, 12
    $region5: #{tpu_custom_call.1} parent=1 // pred_fallthru
      _
    // Predicated region
    $region6: #{tpu_custom_call.1} parent=1 // pred_check
      _
    $region7: #{tpu_custom_call.1} parent=1 // pred_check_branch
      %29 = sbr.rel (0) target = $region9
    $region8: #{tpu_custom_call.1} parent=1 // pred_region
      %s30 = ssub.s32 0, 0
      %s31 = smul.u32 8, %s30
      %33 = vsyncadd [#allocation8], 0
      %s34 = smul.addr %s31, 3
      %s35 = smul.addr %s34, 4
      %s36 = scalar_lea.hbm %s1, %s35
      %s37 = sshll.u32 %s36, 4
      %s38 = int_to_ptr.hbm [resolvable:$true] %s37
      %s39 = sshll.u32 [#allocation7], 4
      %s40 = int_to_ptr.vmem [resolvable:$true] %s39
      %45 = dma.hbm_to_vmem [thread:$0]  %s38, 1536, %s40, [#allocation8], 192, 192, 12
    $region9: #{tpu_custom_call.1} parent=1 // pred_fallthru
      _
    // Predicated region
    $region10: #{tpu_custom_call.1} parent=1 // pred_check
      _
    $region11: #{tpu_custom_call.1} parent=1 // pred_check_branch
      %47 = sbr.rel (0) target = $region13
    $region12: #{tpu_custom_call.1} parent=1 // pred_region
      %49 = vsyncadd [#allocation8], 0
      %s50 = sshll.u32 %s2, 4
      %s51 = int_to_ptr.hbm [resolvable:$true] %s50
      %s52 = sshll.u32 [#allocation9], 4
      %s53 = int_to_ptr.vmem [resolvable:$true] %s52
      %58 = dma.hbm_to_vmem [thread:$0]  %s51, 12288, %s53, [#allocation8], 384, 384, 24
    $region13: #{tpu_custom_call.1} parent=1 // pred_fallthru
      _
    // Predicated region
    $region14: #{tpu_custom_call.1} parent=1 // pred_check
      _
    $region15: #{tpu_custom_call.1} parent=1 // pred_check_branch
      %60 = sbr.rel (0) target = $region17
    $region16: #{tpu_custom_call.1} parent=1 // pred_region
      _
    $region17: #{tpu_custom_call.1} parent=1 // pred_fallthru
      _
    // Predicated region
    $region18: #{tpu_custom_call.1} parent=1 // pred_check
      _
    $region19: #{tpu_custom_call.1} parent=1 // pred_check_branch
      %62 = sbr.rel (0) target = $region21
    $region20: #{tpu_custom_call.1} parent=1 // pred_region
      %64 = dma.done [#allocation5], 1536
    $region21: #{tpu_custom_call.1} parent=1 // pred_fallthru
      _
    // Predicated region
    $region22: #{tpu_custom_call.1} parent=1 // pred_check
      _
    $region23: #{tpu_custom_call.1} parent=1 // pred_check_branch
      %66 = sbr.rel (0) target = $region25
    $region24: #{tpu_custom_call.1} parent=1 // pred_region
      %68 = dma.done [#allocation8], 1536
    $region25: #{tpu_custom_call.1} parent=1 // pred_fallthru
      _
    // Predicated region
    $region26: #{tpu_custom_call.1} parent=1 // pred_check
      _
    $region27: #{tpu_custom_call.1} parent=1 // pred_check_branch
      %70 = sbr.rel (0) target = $region29
    $region28: #{tpu_custom_call.1} parent=1 // pred_region
      %72 = dma.done [#allocation8], 12288
    $region29: #{tpu_custom_call.1} parent=1 // pred_fallthru
      _
    %s73 = ssub.s32 0, 0
    %s74 = smul.u32 8, %s73
    %s75 = ssub.s32 0, 0
    %s76 = smul.u32 8, %s75
    %p77 = scmp.eq.s32.totalorder 0, 0
    // Predicated region
    $region30: #{tpu_custom_call.1} parent=1 // pred_check
      %p78 = pneg %p77
    $region31: #{tpu_custom_call.1} parent=1 // pred_check_branch
      %80 = sbr.rel (%p78) target = $region33
    $region32: #{tpu_custom_call.1} parent=1 // pred_region
      %81 = vst [vmem:[#allocation2] sm:$0xff] 0.0
      %82 = vst [vmem:[#allocation3] sm:$0xff] 0.0
    $region33: #{tpu_custom_call.1} parent=1 // pred_fallthru
      _
    %v83 = vld [vmem:[%s3] sm:$0x1]
    %v85 = vperm.slane %v83, 0
    %s87 = scalar_lea.vmem %s3, 1
    %v88 = vld [vmem:[%s87] sm:$0x1]
    %v90 = vperm.slane %v88, 0
    %v92 = vld [vmem:[#allocation2] sm:$0xff]
    %v93 = vld [vmem:[#allocation3] sm:$0xff]
    %v94 = vld [vmem:[#allocation4] sm:$0xff]
    %v95 = vld [vmem:[#allocation4 + $0x8] sm:$0xf]
    %v96 = vld [vmem:[#allocation9] sm:$0xff]
    %v97 = vld [vmem:[#allocation9 + $0x8] sm:$0xff]
    %v98 = vld [vmem:[#allocation9 + $0x18] sm:$0xff]
    %v99 = vld [vmem:[#allocation9 + $0x20] sm:$0xff]
    %v100 = vld [vmem:[#allocation9 + $0x30] sm:$0xff]
    %v101 = vld [vmem:[#allocation9 + $0x38] sm:$0xff]
    %v102 = vld [vmem:[#allocation9 + $0x48] sm:$0xff]
    %v103 = vld [vmem:[#allocation9 + $0x50] sm:$0xff]
    %v104 = vld [vmem:[#allocation9 + $0x60] sm:$0xff]
    %v105 = vld [vmem:[#allocation9 + $0x68] sm:$0xff]
    %v106 = vld [vmem:[#allocation9 + $0x78] sm:$0xff]
    %v107 = vld [vmem:[#allocation9 + $0x80] sm:$0xff]
    %v108 = vld [vmem:[#allocation9 + $0x90] sm:$0xff]
    %v109 = vld [vmem:[#allocation9 + $0x98] sm:$0xff]
    %v110 = vld [vmem:[#allocation9 + $0xa8] sm:$0xff]
    %v111 = vld [vmem:[#allocation9 + $0xb0] sm:$0xff]
    %v112 = vld [vmem:[#allocation9 + $0xc0] sm:$0xff]
    %v113 = vld [vmem:[#allocation9 + $0xc8] sm:$0xff]
    %v114 = vld [vmem:[#allocation9 + $0xd8] sm:$0xff]
    %v115 = vld [vmem:[#allocation9 + $0xe0] sm:$0xff]
    %v116 = vld [vmem:[#allocation9 + $0xf0] sm:$0xff]
    %v117 = vld [vmem:[#allocation9 + $0xf8] sm:$0xff]
    %v118 = vld [vmem:[#allocation9 + $0x108] sm:$0xff]
    %v119 = vld [vmem:[#allocation9 + $0x110] sm:$0xff]
    %v120 = vld [vmem:[#allocation9 + $0x120] sm:$0xff]
    %v121 = vld [vmem:[#allocation9 + $0x128] sm:$0xff]
    %v122 = vld [vmem:[#allocation9 + $0x138] sm:$0xff]
    %v123 = vld [vmem:[#allocation9 + $0x140] sm:$0xff]
    %v124 = vld [vmem:[#allocation9 + $0x150] sm:$0xff]
    %v125 = vld [vmem:[#allocation9 + $0x158] sm:$0xff]
    %v126 = vld [vmem:[#allocation9 + $0x168] sm:$0xff]
    %v127 = vld [vmem:[#allocation9 + $0x170] sm:$0xff]
    %v128 = vld [vmem:[#allocation9 + $0x10] sm:$0xff]
    %v129 = vld [vmem:[#allocation9 + $0x28] sm:$0xff]
    %v130 = vld [vmem:[#allocation9 + $0x40] sm:$0xff]
    %v131 = vld [vmem:[#allocation9 + $0x58] sm:$0xff]
    %v132 = vld [vmem:[#allocation9 + $0x70] sm:$0xff]
    %v133 = vld [vmem:[#allocation9 + $0x88] sm:$0xff]
    %v134 = vld [vmem:[#allocation9 + $0xa0] sm:$0xff]
    %v135 = vld [vmem:[#allocation9 + $0xb8] sm:$0xff]
    %v136 = vld [vmem:[#allocation9 + $0xd0] sm:$0xff]
    %v137 = vld [vmem:[#allocation9 + $0xe8] sm:$0xff]
    %v138 = vld [vmem:[#allocation9 + $0x100] sm:$0xff]
    %v139 = vld [vmem:[#allocation9 + $0x118] sm:$0xff]
    %v140 = vld [vmem:[#allocation9 + $0x130] sm:$0xff]
    %v141 = vld [vmem:[#allocation9 + $0x148] sm:$0xff]
    %v142 = vld [vmem:[#allocation9 + $0x160] sm:$0xff]
    %v143 = vld [vmem:[#allocation9 + $0x178] sm:$0xff]
    %v144 = vunpack.c.l.bf16 %v94
    %v145 = vunpack.c.h.bf16 %v94
    %v146 = vunpack.c.l.bf16 %v95
    %147 = vmatpush.msra.mxu0 %v126
    %148 = vmatpush.msra.mxu0 %v124
    %149 = vmatpush.msra.mxu0 %v122
    %150 = vmatpush.msra.mxu0 %v120
    %151 = vmatpush.msra.mxu0 %v118
    %152 = vmatpush.msra.mxu0 %v116
    %153 = vmatpush.msra.mxu0 %v114
    %154 = vmatpush.msra.mxu0 %v112
    %155 = vmatpush.msra.mxu0 %v110
    %156 = vmatpush.msra.mxu0 %v108
    %157 = vmatpush.msra.mxu0 %v106
    %158 = vmatpush.msra.mxu0 %v104
    %159 = vmatpush.msra.mxu0 %v102
    %160 = vmatpush.msra.mxu0 %v100
    %161 = vmatpush.msra.mxu0 %v98
    %162 = vmatpush.msra.mxu0 %v96
    %163 = vmatmul.f32.gmra.mxu0 %v92
    %v164 = vpop.f32.mrf.mxu0
    %v165 = vadd.f32 0.0, %v164
    %166 = vdwg.mxu0
    %167 = vmatpush.msra.mxu0 %v127
    %168 = vmatpush.msra.mxu0 %v125
    %169 = vmatpush.msra.mxu0 %v123
    %170 = vmatpush.msra.mxu0 %v121
    %171 = vmatpush.msra.mxu0 %v119
    %172 = vmatpush.msra.mxu0 %v117
    %173 = vmatpush.msra.mxu0 %v115
    %174 = vmatpush.msra.mxu0 %v113
    %175 = vmatpush.msra.mxu0 %v111
    %176 = vmatpush.msra.mxu0 %v109
    %177 = vmatpush.msra.mxu0 %v107
    %178 = vmatpush.msra.mxu0 %v105
    %179 = vmatpush.msra.mxu0 %v103
    %180 = vmatpush.msra.mxu0 %v101
    %181 = vmatpush.msra.mxu0 %v99
    %182 = vmatpush.msra.mxu0 %v97
    %183 = vmatmul.f32.gmra.mxu0 %v92
    %v184 = vpop.f32.mrf.mxu0
    %v185 = vadd.f32 0.0, %v184
    %186 = vdwg.mxu0
    %v187 = vadd.f32 %v144, %v165
    %v188 = vxor.u32 %v187, 2147483648
    %v189 = vmul.f32 %v188, 1.442695
    %v190 = vpow.pop %v189
    %v191 = vadd.f32 %v190, 1.0
    %v192 = vrcp.pop %v191
    %v193 = vmul.f32 %v191, %v192
    %v194 = vsub.f32 1.0, %v193
    %v195 = vmul.f32 %v192, %v194
    %v196 = vadd.f32 %v192, %v195
    %vm197 = vweird.f32 %v191
    %vm198 = vweird.f32 %v192
    %vm199 = vmor %vm197, %vm198
    %v200 = vsel %vm199, %v192, %v196
    %v201 = vand.u32 2147483647, %v191
    %vm202 = vcmp.eq.f32.partialorder %v201, 8.507059e+37
    %v203 = vand.u32 %v191, 2147483648
    %v204 = vor.u32 1.1754944e-38, %v203
    %v205 = vsel %vm202, %v204, %v200
    %v206 = vmul.f32 1.0, %v205
    %v207 = vadd.f32 %v145, %v185
    %v208 = vxor.u32 %v207, 2147483648
    %v209 = vmul.f32 %v208, 1.442695
    %v210 = vpow.pop %v209
    %v211 = vadd.f32 %v210, 1.0
    %v212 = vrcp.pop %v211
    %v213 = vmul.f32 %v211, %v212
    %v214 = vsub.f32 1.0, %v213
    %v215 = vmul.f32 %v212, %v214
    %v216 = vadd.f32 %v212, %v215
    %vm217 = vweird.f32 %v211
    %vm218 = vweird.f32 %v212
    %vm219 = vmor %vm217, %vm218
    %v220 = vsel %vm219, %v212, %v216
    %v221 = vand.u32 2147483647, %v211
    %vm222 = vcmp.eq.f32.partialorder %v221, 8.507059e+37
    %v223 = vand.u32 %v211, 2147483648
    %v224 = vor.u32 1.1754944e-38, %v223
    %v225 = vsel %vm222, %v224, %v220
    %v226 = vmul.f32 1.0, %v225
    %227 = vmatpush.msra.mxu0 %v143
    %228 = vmatpush.msra.mxu0 %v142
    %229 = vmatpush.msra.mxu0 %v141
    %230 = vmatpush.msra.mxu0 %v140
    %231 = vmatpush.msra.mxu0 %v139
    %232 = vmatpush.msra.mxu0 %v138
    %233 = vmatpush.msra.mxu0 %v137
    %234 = vmatpush.msra.mxu0 %v136
    %235 = vmatpush.msra.mxu0 %v135
    %236 = vmatpush.msra.mxu0 %v134
    %237 = vmatpush.msra.mxu0 %v133
    %238 = vmatpush.msra.mxu0 %v132
    %239 = vmatpush.msra.mxu0 %v131
    %240 = vmatpush.msra.mxu0 %v130
    %241 = vmatpush.msra.mxu0 %v129
    %242 = vmatpush.msra.mxu0 %v128
    %243 = vmatmul.f32.gmra.mxu0 %v92
    %v244 = vpop.f32.mrf.mxu0
    %v245 = vadd.f32 %v85, %v244
    %246 = vdwg.mxu0
    %v247 = vmul.f32 %v206, %v245
    %v248 = vadd.f32 %v146, %v247
    %v249 = vtanh.pop %v248
    %v250 = vsub.f32 1.0, %v226
    %v251 = vmul.f32 %v250, %v249
    %v252 = vmul.f32 %v226, %v92
    %v253 = vadd.f32 %v251, %v252
    %254 = vst [vmem:[#allocation10] sm:$0xff] %v253
    %s255 = scalar_lea.vmem [#allocation7], 84
    %v256 = vld [vmem:[%s255] sm:$0xff]
    %v257 = vld [vmem:[%s255 + $0x8] sm:$0xf]
    %s258 = scalar_lea.vmem [#allocation9], 384
    %v259 = vld [vmem:[%s258] sm:$0xff]
    %v260 = vld [vmem:[%s258 + $0x8] sm:$0xff]
    %v261 = vld [vmem:[%s258 + $0x18] sm:$0xff]
    %v262 = vld [vmem:[%s258 + $0x20] sm:$0xff]
    %v263 = vld [vmem:[%s258 + $0x30] sm:$0xff]
    %v264 = vld [vmem:[%s258 + $0x38] sm:$0xff]
    %v265 = vld [vmem:[%s258 + $0x48] sm:$0xff]
    %v266 = vld [vmem:[%s258 + $0x50] sm:$0xff]
    %v267 = vld [vmem:[%s258 + $0x60] sm:$0xff]
    %v268 = vld [vmem:[%s258 + $0x68] sm:$0xff]
    %v269 = vld [vmem:[%s258 + $0x78] sm:$0xff]
    %v270 = vld [vmem:[%s258 + $0x80] sm:$0xff]
    %v271 = vld [vmem:[%s258 + $0x90] sm:$0xff]
    %v272 = vld [vmem:[%s258 + $0x98] sm:$0xff]
    %v273 = vld [vmem:[%s258 + $0xa8] sm:$0xff]
    %v274 = vld [vmem:[%s258 + $0xb0] sm:$0xff]
    %v275 = vld [vmem:[%s258 + $0xc0] sm:$0xff]
    %v276 = vld [vmem:[%s258 + $0xc8] sm:$0xff]
    %v277 = vld [vmem:[%s258 + $0xd8] sm:$0xff]
    %v278 = vld [vmem:[%s258 + $0xe0] sm:$0xff]
    %v279 = vld [vmem:[%s258 + $0xf0] sm:$0xff]
    %v280 = vld [vmem:[%s258 + $0xf8] sm:$0xff]
    %v281 = vld [vmem:[%s258 + $0x108] sm:$0xff]
    %v282 = vld [vmem:[%s258 + $0x110] sm:$0xff]
    %v283 = vld [vmem:[%s258 + $0x120] sm:$0xff]
    %v284 = vld [vmem:[%s258 + $0x128] sm:$0xff]
    %v285 = vld [vmem:[%s258 + $0x138] sm:$0xff]
    %v286 = vld [vmem:[%s258 + $0x140] sm:$0xff]
    %v287 = vld [vmem:[%s258 + $0x150] sm:$0xff]
    %v288 = vld [vmem:[%s258 + $0x158] sm:$0xff]
    %v289 = vld [vmem:[%s258 + $0x168] sm:$0xff]
    %v290 = vld [vmem:[%s258 + $0x170] sm:$0xff]
    %v291 = vld [vmem:[%s258 + $0x10] sm:$0xff]
    %v292 = vld [vmem:[%s258 + $0x28] sm:$0xff]
    %v293 = vld [vmem:[%s258 + $0x40] sm:$0xff]
    %v294 = vld [vmem:[%s258 + $0x58] sm:$0xff]
    %v295 = vld [vmem:[%s258 + $0x70] sm:$0xff]
    %v296 = vld [vmem:[%s258 + $0x88] sm:$0xff]
    %v297 = vld [vmem:[%s258 + $0xa0] sm:$0xff]
    %v298 = vld [vmem:[%s258 + $0xb8] sm:$0xff]
    %v299 = vld [vmem:[%s258 + $0xd0] sm:$0xff]
    %v300 = vld [vmem:[%s258 + $0xe8] sm:$0xff]
    %v301 = vld [vmem:[%s258 + $0x100] sm:$0xff]
    %v302 = vld [vmem:[%s258 + $0x118] sm:$0xff]
    %v303 = vld [vmem:[%s258 + $0x130] sm:$0xff]
    %v304 = vld [vmem:[%s258 + $0x148] sm:$0xff]
    %v305 = vld [vmem:[%s258 + $0x160] sm:$0xff]
    %v306 = vld [vmem:[%s258 + $0x178] sm:$0xff]
    %v307 = vunpack.c.l.bf16 %v256
    %v308 = vunpack.c.h.bf16 %v256
    %v309 = vunpack.c.l.bf16 %v257
    %310 = vmatpush.msra.mxu0 %v289
    %311 = vmatpush.msra.mxu0 %v287
    %312 = vmatpush.msra.mxu0 %v285
    %313 = vmatpush.msra.mxu0 %v283
    %314 = vmatpush.msra.mxu0 %v281
    %315 = vmatpush.msra.mxu0 %v279
    %316 = vmatpush.msra.mxu0 %v277
    %317 = vmatpush.msra.mxu0 %v275
    %318 = vmatpush.msra.mxu0 %v273
    %319 = vmatpush.msra.mxu0 %v271
    %320 = vmatpush.msra.mxu0 %v269
    %321 = vmatpush.msra.mxu0 %v267
    %322 = vmatpush.msra.mxu0 %v265
    %323 = vmatpush.msra.mxu0 %v263
    %324 = vmatpush.msra.mxu0 %v261
    %325 = vmatpush.msra.mxu0 %v259
    %326 = vmatmul.f32.gmra.mxu0 %v93
    %v327 = vpop.f32.mrf.mxu0
    %v328 = vadd.f32 0.0, %v327
    %329 = vdwg.mxu0
    %330 = vmatpush.msra.mxu0 %v290
    %331 = vmatpush.msra.mxu0 %v288
    %332 = vmatpush.msra.mxu0 %v286
    %333 = vmatpush.msra.mxu0 %v284
    %334 = vmatpush.msra.mxu0 %v282
    %335 = vmatpush.msra.mxu0 %v280
    %336 = vmatpush.msra.mxu0 %v278
    %337 = vmatpush.msra.mxu0 %v276
    %338 = vmatpush.msra.mxu0 %v274
    %339 = vmatpush.msra.mxu0 %v272
    %340 = vmatpush.msra.mxu0 %v270
    %341 = vmatpush.msra.mxu0 %v268
    %342 = vmatpush.msra.mxu0 %v266
    %343 = vmatpush.msra.mxu0 %v264
    %344 = vmatpush.msra.mxu0 %v262
    %345 = vmatpush.msra.mxu0 %v260
    %346 = vmatmul.f32.gmra.mxu0 %v93
    %v347 = vpop.f32.mrf.mxu0
    %v348 = vadd.f32 0.0, %v347
    %349 = vdwg.mxu0
    %v350 = vadd.f32 %v307, %v328
    %v351 = vxor.u32 %v350, 2147483648
    %v352 = vmul.f32 %v351, 1.442695
    %v353 = vpow.pop %v352
    %v354 = vadd.f32 %v353, 1.0
    %v355 = vrcp.pop %v354
    %v356 = vmul.f32 %v354, %v355
    %v357 = vsub.f32 1.0, %v356
    %v358 = vmul.f32 %v355, %v357
    %v359 = vadd.f32 %v355, %v358
    %vm360 = vweird.f32 %v354
    %vm361 = vweird.f32 %v355
    %vm362 = vmor %vm360, %vm361
    %v363 = vsel %vm362, %v355, %v359
    %v364 = vand.u32 2147483647, %v354
    %vm365 = vcmp.eq.f32.partialorder %v364, 8.507059e+37
    %v366 = vand.u32 %v354, 2147483648
    %v367 = vor.u32 1.1754944e-38, %v366
    %v368 = vsel %vm365, %v367, %v363
    %v369 = vmul.f32 1.0, %v368
    %v370 = vadd.f32 %v308, %v348
    %v371 = vxor.u32 %v370, 2147483648
    %v372 = vmul.f32 %v371, 1.442695
    %v373 = vpow.pop %v372
    %v374 = vadd.f32 %v373, 1.0
    %v375 = vrcp.pop %v374
    %v376 = vmul.f32 %v374, %v375
    %v377 = vsub.f32 1.0, %v376
    %v378 = vmul.f32 %v375, %v377
    %v379 = vadd.f32 %v375, %v378
    %vm380 = vweird.f32 %v374
    %vm381 = vweird.f32 %v375
    %vm382 = vmor %vm380, %vm381
    %v383 = vsel %vm382, %v375, %v379
    %v384 = vand.u32 2147483647, %v374
    %vm385 = vcmp.eq.f32.partialorder %v384, 8.507059e+37
    %v386 = vand.u32 %v374, 2147483648
    %v387 = vor.u32 1.1754944e-38, %v386
    %v388 = vsel %vm385, %v387, %v383
    %v389 = vmul.f32 1.0, %v388
    %390 = vmatpush.msra.mxu0 %v306
    %391 = vmatpush.msra.mxu0 %v305
    %392 = vmatpush.msra.mxu0 %v304
    %393 = vmatpush.msra.mxu0 %v303
    %394 = vmatpush.msra.mxu0 %v302
    %395 = vmatpush.msra.mxu0 %v301
    %396 = vmatpush.msra.mxu0 %v300
    %397 = vmatpush.msra.mxu0 %v299
    %398 = vmatpush.msra.mxu0 %v298
    %399 = vmatpush.msra.mxu0 %v297
    %400 = vmatpush.msra.mxu0 %v296
    %401 = vmatpush.msra.mxu0 %v295
    %402 = vmatpush.msra.mxu0 %v294
    %403 = vmatpush.msra.mxu0 %v293
    %404 = vmatpush.msra.mxu0 %v292
    %405 = vmatpush.msra.mxu0 %v291
    %406 = vmatmul.f32.gmra.mxu0 %v93
    %v407 = vpop.f32.mrf.mxu0
    %v408 = vadd.f32 %v90, %v407
    %409 = vdwg.mxu0
    %v410 = vmul.f32 %v369, %v408
    %v411 = vadd.f32 %v309, %v410
    %v412 = vtanh.pop %v411
    %v413 = vsub.f32 1.0, %v389
    %v414 = vmul.f32 %v413, %v412
    %v415 = vmul.f32 %v389, %v93
    %v416 = vadd.f32 %v414, %v415
    %s417 = scalar_lea.vmem [#allocation11], 56
    %418 = vst [vmem:[%s417] sm:$0xff] %v416
    %s419 = scalar_lea.vmem [#allocation4], 12
    %v420 = vld [vmem:[%s419] sm:$0xff]
    %v421 = vld [vmem:[%s419 + $0x8] sm:$0xf]
    %v422 = vld [vmem:[#allocation9] sm:$0xff]
    %v423 = vld [vmem:[#allocation9 + $0x8] sm:$0xff]
    %v424 = vld [vmem:[#allocation9 + $0x18] sm:$0xff]
    %v425 = vld [vmem:[#allocation9 + $0x20] sm:$0xff]
    %v426 = vld [vmem:[#allocation9 + $0x30] sm:$0xff]
    %v427 = vld [vmem:[#allocation9 + $0x38] sm:$0xff]
    %v428 = vld [vmem:[#allocation9 + $0x48] sm:$0xff]
    %v429 = vld [vmem:[#allocation9 + $0x50] sm:$0xff]
    %v430 = vld [vmem:[#allocation9 + $0x60] sm:$0xff]
    %v431 = vld [vmem:[#allocation9 + $0x68] sm:$0xff]
    %v432 = vld [vmem:[#allocation9 + $0x78] sm:$0xff]
    %v433 = vld [vmem:[#allocation9 + $0x80] sm:$0xff]
    %v434 = vld [vmem:[#allocation9 + $0x90] sm:$0xff]
    %v435 = vld [vmem:[#allocation9 + $0x98] sm:$0xff]
    %v436 = vld [vmem:[#allocation9 + $0xa8] sm:$0xff]
    %v437 = vld [vmem:[#allocation9 + $0xb0] sm:$0xff]
    %v438 = vld [vmem:[#allocation9 + $0xc0] sm:$0xff]
    %v439 = vld [vmem:[#allocation9 + $0xc8] sm:$0xff]
    %v440 = vld [vmem:[#allocation9 + $0xd8] sm:$0xff]
    %v441 = vld [vmem:[#allocation9 + $0xe0] sm:$0xff]
    %v442 = vld [vmem:[#allocation9 + $0xf0] sm:$0xff]
    %v443 = vld [vmem:[#allocation9 + $0xf8] sm:$0xff]
    %v444 = vld [vmem:[#allocation9 + $0x108] sm:$0xff]
    %v445 = vld [vmem:[#allocation9 + $0x110] sm:$0xff]
    %v446 = vld [vmem:[#allocation9 + $0x120] sm:$0xff]
    %v447 = vld [vmem:[#allocation9 + $0x128] sm:$0xff]
    %v448 = vld [vmem:[#allocation9 + $0x138] sm:$0xff]
    %v449 = vld [vmem:[#allocation9 + $0x140] sm:$0xff]
    %v450 = vld [vmem:[#allocation9 + $0x150] sm:$0xff]
    %v451 = vld [vmem:[#allocation9 + $0x158] sm:$0xff]
    %v452 = vld [vmem:[#allocation9 + $0x168] sm:$0xff]
    %v453 = vld [vmem:[#allocation9 + $0x170] sm:$0xff]
    %v454 = vld [vmem:[#allocation9 + $0x10] sm:$0xff]
    %v455 = vld [vmem:[#allocation9 + $0x28] sm:$0xff]
    %v456 = vld [vmem:[#allocation9 + $0x40] sm:$0xff]
    %v457 = vld [vmem:[#allocation9 + $0x58] sm:$0xff]
    %v458 = vld [vmem:[#allocation9 + $0x70] sm:$0xff]
    %v459 = vld [vmem:[#allocation9 + $0x88] sm:$0xff]
    %v460 = vld [vmem:[#allocation9 + $0xa0] sm:$0xff]
    %v461 = vld [vmem:[#allocation9 + $0xb8] sm:$0xff]
    %v462 = vld [vmem:[#allocation9 + $0xd0] sm:$0xff]
    %v463 = vld [vmem:[#allocation9 + $0xe8] sm:$0xff]
    %v464 = vld [vmem:[#allocation9 + $0x100] sm:$0xff]
    %v465 = vld [vmem:[#allocation9 + $0x118] sm:$0xff]
    %v466 = vld [vmem:[#allocation9 + $0x130] sm:$0xff]
    %v467 = vld [vmem:[#allocation9 + $0x148] sm:$0xff]
    %v468 = vld [vmem:[#allocation9 + $0x160] sm:$0xff]
    %v469 = vld [vmem:[#allocation9 + $0x178] sm:$0xff]
    %v470 = vunpack.c.l.bf16 %v420
    %v471 = vunpack.c.h.bf16 %v420
    %v472 = vunpack.c.l.bf16 %v421
    %473 = vmatpush.msra.mxu0 %v452
    %474 = vmatpush.msra.mxu0 %v450
    %475 = vmatpush.msra.mxu0 %v448
    %476 = vmatpush.msra.mxu0 %v446
    %477 = vmatpush.msra.mxu0 %v444
    %478 = vmatpush.msra.mxu0 %v442
    %479 = vmatpush.msra.mxu0 %v440
    %480 = vmatpush.msra.mxu0 %v438
    %481 = vmatpush.msra.mxu0 %v436
    %482 = vmatpush.msra.mxu0 %v434
    %483 = vmatpush.msra.mxu0 %v432
    %484 = vmatpush.msra.mxu0 %v430
    %485 = vmatpush.msra.mxu0 %v428
    %486 = vmatpush.msra.mxu0 %v426
    %487 = vmatpush.msra.mxu0 %v424
    %488 = vmatpush.msra.mxu0 %v422
    %489 = vmatmul.f32.gmra.mxu0 %v253
    %v490 = vpop.f32.mrf.mxu0
    %v491 = vadd.f32 0.0, %v490
    %492 = vdwg.mxu0
    %493 = vmatpush.msra.mxu0 %v453
    %494 = vmatpush.msra.mxu0 %v451
    %495 = vmatpush.msra.mxu0 %v449
    %496 = vmatpush.msra.mxu0 %v447
    %497 = vmatpush.msra.mxu0 %v445
    %498 = vmatpush.msra.mxu0 %v443
    %499 = vmatpush.msra.mxu0 %v441
    %500 = vmatpush.msra.mxu0 %v439
    %501 = vmatpush.msra.mxu0 %v437
    %502 = vmatpush.msra.mxu0 %v435
    %503 = vmatpush.msra.mxu0 %v433
    %504 = vmatpush.msra.mxu0 %v431
    %505 = vmatpush.msra.mxu0 %v429
    %506 = vmatpush.msra.mxu0 %v427
    %507 = vmatpush.msra.mxu0 %v425
    %508 = vmatpush.msra.mxu0 %v423
    %509 = vmatmul.f32.gmra.mxu0 %v253
    %v510 = vpop.f32.mrf.mxu0
    %v511 = vadd.f32 0.0, %v510
    %512 = vdwg.mxu0
    %v513 = vadd.f32 %v470, %v491
    %v514 = vxor.u32 %v513, 2147483648
    %v515 = vmul.f32 %v514, 1.442695
    %v516 = vpow.pop %v515
    %v517 = vadd.f32 %v516, 1.0
    %v518 = vrcp.pop %v517
    %v519 = vmul.f32 %v517, %v518
    %v520 = vsub.f32 1.0, %v519
    %v521 = vmul.f32 %v518, %v520
    %v522 = vadd.f32 %v518, %v521
    %vm523 = vweird.f32 %v517
    %vm524 = vweird.f32 %v518
    %vm525 = vmor %vm523, %vm524
    %v526 = vsel %vm525, %v518, %v522
    %v527 = vand.u32 2147483647, %v517
    %vm528 = vcmp.eq.f32.partialorder %v527, 8.507059e+37
    %v529 = vand.u32 %v517, 2147483648
    %v530 = vor.u32 1.1754944e-38, %v529
    %v531 = vsel %vm528, %v530, %v526
    %v532 = vmul.f32 1.0, %v531
    %v533 = vadd.f32 %v471, %v511
    %v534 = vxor.u32 %v533, 2147483648
    %v535 = vmul.f32 %v534, 1.442695
    %v536 = vpow.pop %v535
    %v537 = vadd.f32 %v536, 1.0
    %v538 = vrcp.pop %v537
    %v539 = vmul.f32 %v537, %v538
    %v540 = vsub.f32 1.0, %v539
    %v541 = vmul.f32 %v538, %v540
    %v542 = vadd.f32 %v538, %v541
    %vm543 = vweird.f32 %v537
    %vm544 = vweird.f32 %v538
    %vm545 = vmor %vm543, %vm544
    %v546 = vsel %vm545, %v538, %v542
    %v547 = vand.u32 2147483647, %v537
    %vm548 = vcmp.eq.f32.partialorder %v547, 8.507059e+37
    %v549 = vand.u32 %v537, 2147483648
    %v550 = vor.u32 1.1754944e-38, %v549
    %v551 = vsel %vm548, %v550, %v546
    %v552 = vmul.f32 1.0, %v551
    %553 = vmatpush.msra.mxu0 %v469
    %554 = vmatpush.msra.mxu0 %v468
    %555 = vmatpush.msra.mxu0 %v467
    %556 = vmatpush.msra.mxu0 %v466
    %557 = vmatpush.msra.mxu0 %v465
    %558 = vmatpush.msra.mxu0 %v464
    %559 = vmatpush.msra.mxu0 %v463
    %560 = vmatpush.msra.mxu0 %v462
    %561 = vmatpush.msra.mxu0 %v461
    %562 = vmatpush.msra.mxu0 %v460
    %563 = vmatpush.msra.mxu0 %v459
    %564 = vmatpush.msra.mxu0 %v458
    %565 = vmatpush.msra.mxu0 %v457
    %566 = vmatpush.msra.mxu0 %v456
    %567 = vmatpush.msra.mxu0 %v455
    %568 = vmatpush.msra.mxu0 %v454
    %569 = vmatmul.f32.gmra.mxu0 %v253
    %v570 = vpop.f32.mrf.mxu0
    %v571 = vadd.f32 %v85, %v570
    %572 = vdwg.mxu0
    %v573 = vmul.f32 %v532, %v571
    %v574 = vadd.f32 %v472, %v573
    %v575 = vtanh.pop %v574
    %v576 = vsub.f32 1.0, %v552
    %v577 = vmul.f32 %v576, %v575
    %v578 = vmul.f32 %v552, %v253
    %v579 = vadd.f32 %v577, %v578
    %s580 = scalar_lea.vmem [#allocation10], 8
    %581 = vst [vmem:[%s580] sm:$0xff] %v579
    %s582 = scalar_lea.vmem [#allocation7], 72
    %v583 = vld [vmem:[%s582] sm:$0xff]
    %v584 = vld [vmem:[%s582 + $0x8] sm:$0xf]
    %v585 = vld [vmem:[%s258] sm:$0xff]
    %v586 = vld [vmem:[%s258 + $0x8] sm:$0xff]
    %v587 = vld [vmem:[%s258 + $0x18] sm:$0xff]
    %v588 = vld [vmem:[%s258 + $0x20] sm:$0xff]
    %v589 = vld [vmem:[%s258 + $0x30] sm:$0xff]
    %v590 = vld [vmem:[%s258 + $0x38] sm:$0xff]
    %v591 = vld [vmem:[%s258 + $0x48] sm:$0xff]
    %v592 = vld [vmem:[%s258 + $0x50] sm:$0xff]
    %v593 = vld [vmem:[%s258 + $0x60] sm:$0xff]
    %v594 = vld [vmem:[%s258 + $0x68] sm:$0xff]
    %v595 = vld [vmem:[%s258 + $0x78] sm:$0xff]
    %v596 = vld [vmem:[%s258 + $0x80] sm:$0xff]
    %v597 = vld [vmem:[%s258 + $0x90] sm:$0xff]
    %v598 = vld [vmem:[%s258 + $0x98] sm:$0xff]
    %v599 = vld [vmem:[%s258 + $0xa8] sm:$0xff]
    %v600 = vld [vmem:[%s258 + $0xb0] sm:$0xff]
    %v601 = vld [vmem:[%s258 + $0xc0] sm:$0xff]
    %v602 = vld [vmem:[%s258 + $0xc8] sm:$0xff]
    %v603 = vld [vmem:[%s258 + $0xd8] sm:$0xff]
    %v604 = vld [vmem:[%s258 + $0xe0] sm:$0xff]
    %v605 = vld [vmem:[%s258 + $0xf0] sm:$0xff]
    %v606 = vld [vmem:[%s258 + $0xf8] sm:$0xff]
    %v607 = vld [vmem:[%s258 + $0x108] sm:$0xff]
    %v608 = vld [vmem:[%s258 + $0x110] sm:$0xff]
    %v609 = vld [vmem:[%s258 + $0x120] sm:$0xff]
    %v610 = vld [vmem:[%s258 + $0x128] sm:$0xff]
    %v611 = vld [vmem:[%s258 + $0x138] sm:$0xff]
    %v612 = vld [vmem:[%s258 + $0x140] sm:$0xff]
    %v613 = vld [vmem:[%s258 + $0x150] sm:$0xff]
    %v614 = vld [vmem:[%s258 + $0x158] sm:$0xff]
    %v615 = vld [vmem:[%s258 + $0x168] sm:$0xff]
    %v616 = vld [vmem:[%s258 + $0x170] sm:$0xff]
    %v617 = vld [vmem:[%s258 + $0x10] sm:$0xff]
    %v618 = vld [vmem:[%s258 + $0x28] sm:$0xff]
    %v619 = vld [vmem:[%s258 + $0x40] sm:$0xff]
    %v620 = vld [vmem:[%s258 + $0x58] sm:$0xff]
    %v621 = vld [vmem:[%s258 + $0x70] sm:$0xff]
    %v622 = vld [vmem:[%s258 + $0x88] sm:$0xff]
    %v623 = vld [vmem:[%s258 + $0xa0] sm:$0xff]
    %v624 = vld [vmem:[%s258 + $0xb8] sm:$0xff]
    %v625 = vld [vmem:[%s258 + $0xd0] sm:$0xff]
    %v626 = vld [vmem:[%s258 + $0xe8] sm:$0xff]
    %v627 = vld [vmem:[%s258 + $0x100] sm:$0xff]
    %v628 = vld [vmem:[%s258 + $0x118] sm:$0xff]
    %v629 = vld [vmem:[%s258 + $0x130] sm:$0xff]
    %v630 = vld [vmem:[%s258 + $0x148] sm:$0xff]
    %v631 = vld [vmem:[%s258 + $0x160] sm:$0xff]
    %v632 = vld [vmem:[%s258 + $0x178] sm:$0xff]
    %v633 = vunpack.c.l.bf16 %v583
    %v634 = vunpack.c.h.bf16 %v583
    %v635 = vunpack.c.l.bf16 %v584
    %636 = vmatpush.msra.mxu0 %v615
    %637 = vmatpush.msra.mxu0 %v613
    %638 = vmatpush.msra.mxu0 %v611
    %639 = vmatpush.msra.mxu0 %v609
    %640 = vmatpush.msra.mxu0 %v607
    %641 = vmatpush.msra.mxu0 %v605
    %642 = vmatpush.msra.mxu0 %v603
    %643 = vmatpush.msra.mxu0 %v601
    %644 = vmatpush.msra.mxu0 %v599
    %645 = vmatpush.msra.mxu0 %v597
    %646 = vmatpush.msra.mxu0 %v595
    %647 = vmatpush.msra.mxu0 %v593
    %648 = vmatpush.msra.mxu0 %v591
    %649 = vmatpush.msra.mxu0 %v589
    %650 = vmatpush.msra.mxu0 %v587
    %651 = vmatpush.msra.mxu0 %v585
    %652 = vmatmul.f32.gmra.mxu0 %v416
    %v653 = vpop.f32.mrf.mxu0
    %v654 = vadd.f32 0.0, %v653
    %655 = vdwg.mxu0
    %656 = vmatpush.msra.mxu0 %v616
    %657 = vmatpush.msra.mxu0 %v614
    %658 = vmatpush.msra.mxu0 %v612
    %659 = vmatpush.msra.mxu0 %v610
    %660 = vmatpush.msra.mxu0 %v608
    %661 = vmatpush.msra.mxu0 %v606
    %662 = vmatpush.msra.mxu0 %v604
    %663 = vmatpush.msra.mxu0 %v602
    %664 = vmatpush.msra.mxu0 %v600
    %665 = vmatpush.msra.mxu0 %v598
    %666 = vmatpush.msra.mxu0 %v596
    %667 = vmatpush.msra.mxu0 %v594
    %668 = vmatpush.msra.mxu0 %v592
    %669 = vmatpush.msra.mxu0 %v590
    %670 = vmatpush.msra.mxu0 %v588
    %671 = vmatpush.msra.mxu0 %v586
    %672 = vmatmul.f32.gmra.mxu0 %v416
    %v673 = vpop.f32.mrf.mxu0
    %v674 = vadd.f32 0.0, %v673
    %675 = vdwg.mxu0
    %v676 = vadd.f32 %v633, %v654
    %v677 = vxor.u32 %v676, 2147483648
    %v678 = vmul.f32 %v677, 1.442695
    %v679 = vpow.pop %v678
    %v680 = vadd.f32 %v679, 1.0
    %v681 = vrcp.pop %v680
    %v682 = vmul.f32 %v680, %v681
    %v683 = vsub.f32 1.0, %v682
    %v684 = vmul.f32 %v681, %v683
    %v685 = vadd.f32 %v681, %v684
    %vm686 = vweird.f32 %v680
    %vm687 = vweird.f32 %v681
    %vm688 = vmor %vm686, %vm687
    %v689 = vsel %vm688, %v681, %v685
    %v690 = vand.u32 2147483647, %v680
    %vm691 = vcmp.eq.f32.partialorder %v690, 8.507059e+37
    %v692 = vand.u32 %v680, 2147483648
    %v693 = vor.u32 1.1754944e-38, %v692
    %v694 = vsel %vm691, %v693, %v689
    %v695 = vmul.f32 1.0, %v694
    %v696 = vadd.f32 %v634, %v674
    %v697 = vxor.u32 %v696, 2147483648
    %v698 = vmul.f32 %v697, 1.442695
    %v699 = vpow.pop %v698
    %v700 = vadd.f32 %v699, 1.0
    %v701 = vrcp.pop %v700
    %v702 = vmul.f32 %v700, %v701
    %v703 = vsub.f32 1.0, %v702
    %v704 = vmul.f32 %v701, %v703
    %v705 = vadd.f32 %v701, %v704
    %vm706 = vweird.f32 %v700
    %vm707 = vweird.f32 %v701
    %vm708 = vmor %vm706, %vm707
    %v709 = vsel %vm708, %v701, %v705
    %v710 = vand.u32 2147483647, %v700
    %vm711 = vcmp.eq.f32.partialorder %v710, 8.507059e+37
    %v712 = vand.u32 %v700, 2147483648
    %v713 = vor.u32 1.1754944e-38, %v712
    %v714 = vsel %vm711, %v713, %v709
    %v715 = vmul.f32 1.0, %v714
    %716 = vmatpush.msra.mxu0 %v632
    %717 = vmatpush.msra.mxu0 %v631
    %718 = vmatpush.msra.mxu0 %v630
    %719 = vmatpush.msra.mxu0 %v629
    %720 = vmatpush.msra.mxu0 %v628
    %721 = vmatpush.msra.mxu0 %v627
    %722 = vmatpush.msra.mxu0 %v626
    %723 = vmatpush.msra.mxu0 %v625
    %724 = vmatpush.msra.mxu0 %v624
    %725 = vmatpush.msra.mxu0 %v623
    %726 = vmatpush.msra.mxu0 %v622
    %727 = vmatpush.msra.mxu0 %v621
    %728 = vmatpush.msra.mxu0 %v620
    %729 = vmatpush.msra.mxu0 %v619
    %730 = vmatpush.msra.mxu0 %v618
    %731 = vmatpush.msra.mxu0 %v617
    %732 = vmatmul.f32.gmra.mxu0 %v416
    %v733 = vpop.f32.mrf.mxu0
    %v734 = vadd.f32 %v90, %v733
    %735 = vdwg.mxu0
    %v736 = vmul.f32 %v695, %v734
    %v737 = vadd.f32 %v635, %v736
    %v738 = vtanh.pop %v737
    %v739 = vsub.f32 1.0, %v715
    %v740 = vmul.f32 %v739, %v738
    %v741 = vmul.f32 %v715, %v416
    %v742 = vadd.f32 %v740, %v741
    %s743 = scalar_lea.vmem [#allocation11], 48
    %744 = vst [vmem:[%s743] sm:$0xff] %v742
    %s745 = scalar_lea.vmem [#allocation4], 24
    %v746 = vld [vmem:[%s745] sm:$0xff]
    %v747 = vld [vmem:[%s745 + $0x8] sm:$0xf]
    %v748 = vld [vmem:[#allocation9] sm:$0xff]
    %v749 = vld [vmem:[#allocation9 + $0x8] sm:$0xff]
    %v750 = vld [vmem:[#allocation9 + $0x18] sm:$0xff]
    %v751 = vld [vmem:[#allocation9 + $0x20] sm:$0xff]
    %v752 = vld [vmem:[#allocation9 + $0x30] sm:$0xff]
    %v753 = vld [vmem:[#allocation9 + $0x38] sm:$0xff]
    %v754 = vld [vmem:[#allocation9 + $0x48] sm:$0xff]
    %v755 = vld [vmem:[#allocation9 + $0x50] sm:$0xff]
    %v756 = vld [vmem:[#allocation9 + $0x60] sm:$0xff]
    %v757 = vld [vmem:[#allocation9 + $0x68] sm:$0xff]
    %v758 = vld [vmem:[#allocation9 + $0x78] sm:$0xff]
    %v759 = vld [vmem:[#allocation9 + $0x80] sm:$0xff]
    %v760 = vld [vmem:[#allocation9 + $0x90] sm:$0xff]
    %v761 = vld [vmem:[#allocation9 + $0x98] sm:$0xff]
    %v762 = vld [vmem:[#allocation9 + $0xa8] sm:$0xff]
    %v763 = vld [vmem:[#allocation9 + $0xb0] sm:$0xff]
    %v764 = vld [vmem:[#allocation9 + $0xc0] sm:$0xff]
    %v765 = vld [vmem:[#allocation9 + $0xc8] sm:$0xff]
    %v766 = vld [vmem:[#allocation9 + $0xd8] sm:$0xff]
    %v767 = vld [vmem:[#allocation9 + $0xe0] sm:$0xff]
    %v768 = vld [vmem:[#allocation9 + $0xf0] sm:$0xff]
    %v769 = vld [vmem:[#allocation9 + $0xf8] sm:$0xff]
    %v770 = vld [vmem:[#allocation9 + $0x108] sm:$0xff]
    %v771 = vld [vmem:[#allocation9 + $0x110] sm:$0xff]
    %v772 = vld [vmem:[#allocation9 + $0x120] sm:$0xff]
    %v773 = vld [vmem:[#allocation9 + $0x128] sm:$0xff]
    %v774 = vld [vmem:[#allocation9 + $0x138] sm:$0xff]
    %v775 = vld [vmem:[#allocation9 + $0x140] sm:$0xff]
    %v776 = vld [vmem:[#allocation9 + $0x150] sm:$0xff]
    %v777 = vld [vmem:[#allocation9 + $0x158] sm:$0xff]
    %v778 = vld [vmem:[#allocation9 + $0x168] sm:$0xff]
    %v779 = vld [vmem:[#allocation9 + $0x170] sm:$0xff]
    %v780 = vld [vmem:[#allocation9 + $0x10] sm:$0xff]
    %v781 = vld [vmem:[#allocation9 + $0x28] sm:$0xff]
    %v782 = vld [vmem:[#allocation9 + $0x40] sm:$0xff]
    %v783 = vld [vmem:[#allocation9 + $0x58] sm:$0xff]
    %v784 = vld [vmem:[#allocation9 + $0x70] sm:$0xff]
    %v785 = vld [vmem:[#allocation9 + $0x88] sm:$0xff]
    %v786 = vld [vmem:[#allocation9 + $0xa0] sm:$0xff]
    %v787 = vld [vmem:[#allocation9 + $0xb8] sm:$0xff]
    %v788 = vld [vmem:[#allocation9 + $0xd0] sm:$0xff]
    %v789 = vld [vmem:[#allocation9 + $0xe8] sm:$0xff]
    %v790 = vld [vmem:[#allocation9 + $0x100] sm:$0xff]
    %v791 = vld [vmem:[#allocation9 + $0x118] sm:$0xff]
    %v792 = vld [vmem:[#allocation9 + $0x130] sm:$0xff]
    %v793 = vld [vmem:[#allocation9 + $0x148] sm:$0xff]
    %v794 = vld [vmem:[#allocation9 + $0x160] sm:$0xff]
    %v795 = vld [vmem:[#allocation9 + $0x178] sm:$0xff]
    %v796 = vunpack.c.l.bf16 %v746
    %v797 = vunpack.c.h.bf16 %v746
    %v798 = vunpack.c.l.bf16 %v747
    %799 = vmatpush.msra.mxu0 %v778
    %800 = vmatpush.msra.mxu0 %v776
    %801 = vmatpush.msra.mxu0 %v774
    %802 = vmatpush.msra.mxu0 %v772
    %803 = vmatpush.msra.mxu0 %v770
    %804 = vmatpush.msra.mxu0 %v768
    %805 = vmatpush.msra.mxu0 %v766
    %806 = vmatpush.msra.mxu0 %v764
    %807 = vmatpush.msra.mxu0 %v762
    %808 = vmatpush.msra.mxu0 %v760
    %809 = vmatpush.msra.mxu0 %v758
    %810 = vmatpush.msra.mxu0 %v756
    %811 = vmatpush.msra.mxu0 %v754
    %812 = vmatpush.msra.mxu0 %v752
    %813 = vmatpush.msra.mxu0 %v750
    %814 = vmatpush.msra.mxu0 %v748
    %815 = vmatmul.f32.gmra.mxu0 %v579
    %v816 = vpop.f32.mrf.mxu0
    %v817 = vadd.f32 0.0, %v816
    %818 = vdwg.mxu0
    %819 = vmatpush.msra.mxu0 %v779
    %820 = vmatpush.msra.mxu0 %v777
    %821 = vmatpush.msra.mxu0 %v775
    %822 = vmatpush.msra.mxu0 %v773
    %823 = vmatpush.msra.mxu0 %v771
    %824 = vmatpush.msra.mxu0 %v769
    %825 = vmatpush.msra.mxu0 %v767
    %826 = vmatpush.msra.mxu0 %v765
    %827 = vmatpush.msra.mxu0 %v763
    %828 = vmatpush.msra.mxu0 %v761
    %829 = vmatpush.msra.mxu0 %v759
    %830 = vmatpush.msra.mxu0 %v757
    %831 = vmatpush.msra.mxu0 %v755
    %832 = vmatpush.msra.mxu0 %v753
    %833 = vmatpush.msra.mxu0 %v751
    %834 = vmatpush.msra.mxu0 %v749
    %835 = vmatmul.f32.gmra.mxu0 %v579
    %v836 = vpop.f32.mrf.mxu0
    %v837 = vadd.f32 0.0, %v836
    %838 = vdwg.mxu0
    %v839 = vadd.f32 %v796, %v817
    %v840 = vxor.u32 %v839, 2147483648
    %v841 = vmul.f32 %v840, 1.442695
    %v842 = vpow.pop %v841
    %v843 = vadd.f32 %v842, 1.0
    %v844 = vrcp.pop %v843
    %v845 = vmul.f32 %v843, %v844
    %v846 = vsub.f32 1.0, %v845
    %v847 = vmul.f32 %v844, %v846
    %v848 = vadd.f32 %v844, %v847
    %vm849 = vweird.f32 %v843
    %vm850 = vweird.f32 %v844
    %vm851 = vmor %vm849, %vm850
    %v852 = vsel %vm851, %v844, %v848
    %v853 = vand.u32 2147483647, %v843
    %vm854 = vcmp.eq.f32.partialorder %v853, 8.507059e+37
    %v855 = vand.u32 %v843, 2147483648
    %v856 = vor.u32 1.1754944e-38, %v855
    %v857 = vsel %vm854, %v856, %v852
    %v858 = vmul.f32 1.0, %v857
    %v859 = vadd.f32 %v797, %v837
    %v860 = vxor.u32 %v859, 2147483648
    %v861 = vmul.f32 %v860, 1.442695
    %v862 = vpow.pop %v861
    %v863 = vadd.f32 %v862, 1.0
    %v864 = vrcp.pop %v863
    %v865 = vmul.f32 %v863, %v864
    %v866 = vsub.f32 1.0, %v865
    %v867 = vmul.f32 %v864, %v866
    %v868 = vadd.f32 %v864, %v867
    %vm869 = vweird.f32 %v863
    %vm870 = vweird.f32 %v864
    %vm871 = vmor %vm869, %vm870
    %v872 = vsel %vm871, %v864, %v868
    %v873 = vand.u32 2147483647, %v863
    %vm874 = vcmp.eq.f32.partialorder %v873, 8.507059e+37
    %v875 = vand.u32 %v863, 2147483648
    %v876 = vor.u32 1.1754944e-38, %v875
    %v877 = vsel %vm874, %v876, %v872
    %v878 = vmul.f32 1.0, %v877
    %879 = vmatpush.msra.mxu0 %v795
    %880 = vmatpush.msra.mxu0 %v794
    %881 = vmatpush.msra.mxu0 %v793
    %882 = vmatpush.msra.mxu0 %v792
    %883 = vmatpush.msra.mxu0 %v791
    %884 = vmatpush.msra.mxu0 %v790
    %885 = vmatpush.msra.mxu0 %v789
    %886 = vmatpush.msra.mxu0 %v788
    %887 = vmatpush.msra.mxu0 %v787
    %888 = vmatpush.msra.mxu0 %v786
    %889 = vmatpush.msra.mxu0 %v785
    %890 = vmatpush.msra.mxu0 %v784
    %891 = vmatpush.msra.mxu0 %v783
    %892 = vmatpush.msra.mxu0 %v782
    %893 = vmatpush.msra.mxu0 %v781
    %894 = vmatpush.msra.mxu0 %v780
    %895 = vmatmul.f32.gmra.mxu0 %v579
    %v896 = vpop.f32.mrf.mxu0
    %v897 = vadd.f32 %v85, %v896
    %898 = vdwg.mxu0
    %v899 = vmul.f32 %v858, %v897
    %v900 = vadd.f32 %v798, %v899
    %v901 = vtanh.pop %v900
    %v902 = vsub.f32 1.0, %v878
    %v903 = vmul.f32 %v902, %v901
    %v904 = vmul.f32 %v878, %v579
    %v905 = vadd.f32 %v903, %v904
    %s906 = scalar_lea.vmem [#allocation10], 16
    %907 = vst [vmem:[%s906] sm:$0xff] %v905
    %s908 = scalar_lea.vmem [#allocation7], 60
    %v909 = vld [vmem:[%s908] sm:$0xff]
    %v910 = vld [vmem:[%s908 + $0x8] sm:$0xf]
    %v911 = vld [vmem:[%s258] sm:$0xff]
    %v912 = vld [vmem:[%s258 + $0x8] sm:$0xff]
    %v913 = vld [vmem:[%s258 + $0x18] sm:$0xff]
    %v914 = vld [vmem:[%s258 + $0x20] sm:$0xff]
    %v915 = vld [vmem:[%s258 + $0x30] sm:$0xff]
    %v916 = vld [vmem:[%s258 + $0x38] sm:$0xff]
    %v917 = vld [vmem:[%s258 + $0x48] sm:$0xff]
    %v918 = vld [vmem:[%s258 + $0x50] sm:$0xff]
    %v919 = vld [vmem:[%s258 + $0x60] sm:$0xff]
    %v920 = vld [vmem:[%s258 + $0x68] sm:$0xff]
    %v921 = vld [vmem:[%s258 + $0x78] sm:$0xff]
    %v922 = vld [vmem:[%s258 + $0x80] sm:$0xff]
    %v923 = vld [vmem:[%s258 + $0x90] sm:$0xff]
    %v924 = vld [vmem:[%s258 + $0x98] sm:$0xff]
    %v925 = vld [vmem:[%s258 + $0xa8] sm:$0xff]
    %v926 = vld [vmem:[%s258 + $0xb0] sm:$0xff]
    %v927 = vld [vmem:[%s258 + $0xc0] sm:$0xff]
    %v928 = vld [vmem:[%s258 + $0xc8] sm:$0xff]
    %v929 = vld [vmem:[%s258 + $0xd8] sm:$0xff]
    %v930 = vld [vmem:[%s258 + $0xe0] sm:$0xff]
    %v931 = vld [vmem:[%s258 + $0xf0] sm:$0xff]
    %v932 = vld [vmem:[%s258 + $0xf8] sm:$0xff]
    %v933 = vld [vmem:[%s258 + $0x108] sm:$0xff]
    %v934 = vld [vmem:[%s258 + $0x110] sm:$0xff]
    %v935 = vld [vmem:[%s258 + $0x120] sm:$0xff]
    %v936 = vld [vmem:[%s258 + $0x128] sm:$0xff]
    %v937 = vld [vmem:[%s258 + $0x138] sm:$0xff]
    %v938 = vld [vmem:[%s258 + $0x140] sm:$0xff]
    %v939 = vld [vmem:[%s258 + $0x150] sm:$0xff]
    %v940 = vld [vmem:[%s258 + $0x158] sm:$0xff]
    %v941 = vld [vmem:[%s258 + $0x168] sm:$0xff]
    %v942 = vld [vmem:[%s258 + $0x170] sm:$0xff]
    %v943 = vld [vmem:[%s258 + $0x10] sm:$0xff]
    %v944 = vld [vmem:[%s258 + $0x28] sm:$0xff]
    %v945 = vld [vmem:[%s258 + $0x40] sm:$0xff]
    %v946 = vld [vmem:[%s258 + $0x58] sm:$0xff]
    %v947 = vld [vmem:[%s258 + $0x70] sm:$0xff]
    %v948 = vld [vmem:[%s258 + $0x88] sm:$0xff]
    %v949 = vld [vmem:[%s258 + $0xa0] sm:$0xff]
    %v950 = vld [vmem:[%s258 + $0xb8] sm:$0xff]
    %v951 = vld [vmem:[%s258 + $0xd0] sm:$0xff]
    %v952 = vld [vmem:[%s258 + $0xe8] sm:$0xff]
    %v953 = vld [vmem:[%s258 + $0x100] sm:$0xff]
    %v954 = vld [vmem:[%s258 + $0x118] sm:$0xff]
    %v955 = vld [vmem:[%s258 + $0x130] sm:$0xff]
    %v956 = vld [vmem:[%s258 + $0x148] sm:$0xff]
    %v957 = vld [vmem:[%s258 + $0x160] sm:$0xff]
    %v958 = vld [vmem:[%s258 + $0x178] sm:$0xff]
    %v959 = vunpack.c.l.bf16 %v909
    %v960 = vunpack.c.h.bf16 %v909
    %v961 = vunpack.c.l.bf16 %v910
    %962 = vmatpush.msra.mxu0 %v941
    %963 = vmatpush.msra.mxu0 %v939
    %964 = vmatpush.msra.mxu0 %v937
    %965 = vmatpush.msra.mxu0 %v935
    %966 = vmatpush.msra.mxu0 %v933
    %967 = vmatpush.msra.mxu0 %v931
    %968 = vmatpush.msra.mxu0 %v929
    %969 = vmatpush.msra.mxu0 %v927
    %970 = vmatpush.msra.mxu0 %v925
    %971 = vmatpush.msra.mxu0 %v923
    %972 = vmatpush.msra.mxu0 %v921
    %973 = vmatpush.msra.mxu0 %v919
    %974 = vmatpush.msra.mxu0 %v917
    %975 = vmatpush.msra.mxu0 %v915
    %976 = vmatpush.msra.mxu0 %v913
    %977 = vmatpush.msra.mxu0 %v911
    %978 = vmatmul.f32.gmra.mxu0 %v742
    %v979 = vpop.f32.mrf.mxu0
    %v980 = vadd.f32 0.0, %v979
    %981 = vdwg.mxu0
    %982 = vmatpush.msra.mxu0 %v942
    %983 = vmatpush.msra.mxu0 %v940
    %984 = vmatpush.msra.mxu0 %v938
    %985 = vmatpush.msra.mxu0 %v936
    %986 = vmatpush.msra.mxu0 %v934
    %987 = vmatpush.msra.mxu0 %v932
    %988 = vmatpush.msra.mxu0 %v930
    %989 = vmatpush.msra.mxu0 %v928
    %990 = vmatpush.msra.mxu0 %v926
    %991 = vmatpush.msra.mxu0 %v924
    %992 = vmatpush.msra.mxu0 %v922
    %993 = vmatpush.msra.mxu0 %v920
    %994 = vmatpush.msra.mxu0 %v918
    %995 = vmatpush.msra.mxu0 %v916
    %996 = vmatpush.msra.mxu0 %v914
    %997 = vmatpush.msra.mxu0 %v912
    %998 = vmatmul.f32.gmra.mxu0 %v742
    %v999 = vpop.f32.mrf.mxu0
    %v1000 = vadd.f32 0.0, %v999
    %1001 = vdwg.mxu0
    %v1002 = vadd.f32 %v959, %v980
    %v1003 = vxor.u32 %v1002, 2147483648
    %v1004 = vmul.f32 %v1003, 1.442695
    %v1005 = vpow.pop %v1004
    %v1006 = vadd.f32 %v1005, 1.0
    %v1007 = vrcp.pop %v1006
    %v1008 = vmul.f32 %v1006, %v1007
    %v1009 = vsub.f32 1.0, %v1008
    %v1010 = vmul.f32 %v1007, %v1009
    %v1011 = vadd.f32 %v1007, %v1010
    %vm1012 = vweird.f32 %v1006
    %vm1013 = vweird.f32 %v1007
    %vm1014 = vmor %vm1012, %vm1013
    %v1015 = vsel %vm1014, %v1007, %v1011
    %v1016 = vand.u32 2147483647, %v1006
    %vm1017 = vcmp.eq.f32.partialorder %v1016, 8.507059e+37
    %v1018 = vand.u32 %v1006, 2147483648
    %v1019 = vor.u32 1.1754944e-38, %v1018
    %v1020 = vsel %vm1017, %v1019, %v1015
    %v1021 = vmul.f32 1.0, %v1020
    %v1022 = vadd.f32 %v960, %v1000
    %v1023 = vxor.u32 %v1022, 2147483648
    %v1024 = vmul.f32 %v1023, 1.442695
    %v1025 = vpow.pop %v1024
    %v1026 = vadd.f32 %v1025, 1.0
    %v1027 = vrcp.pop %v1026
    %v1028 = vmul.f32 %v1026, %v1027
    %v1029 = vsub.f32 1.0, %v1028
    %v1030 = vmul.f32 %v1027, %v1029
    %v1031 = vadd.f32 %v1027, %v1030
    %vm1032 = vweird.f32 %v1026
    %vm1033 = vweird.f32 %v1027
    %vm1034 = vmor %vm1032, %vm1033
    %v1035 = vsel %vm1034, %v1027, %v1031
    %v1036 = vand.u32 2147483647, %v1026
    %vm1037 = vcmp.eq.f32.partialorder %v1036, 8.507059e+37
    %v1038 = vand.u32 %v1026, 2147483648
    %v1039 = vor.u32 1.1754944e-38, %v1038
    %v1040 = vsel %vm1037, %v1039, %v1035
    %v1041 = vmul.f32 1.0, %v1040
    %1042 = vmatpush.msra.mxu0 %v958
    %1043 = vmatpush.msra.mxu0 %v957
    %1044 = vmatpush.msra.mxu0 %v956
    %1045 = vmatpush.msra.mxu0 %v955
    %1046 = vmatpush.msra.mxu0 %v954
    %1047 = vmatpush.msra.mxu0 %v953
    %1048 = vmatpush.msra.mxu0 %v952
    %1049 = vmatpush.msra.mxu0 %v951
    %1050 = vmatpush.msra.mxu0 %v950
    %1051 = vmatpush.msra.mxu0 %v949
    %1052 = vmatpush.msra.mxu0 %v948
    %1053 = vmatpush.msra.mxu0 %v947
    %1054 = vmatpush.msra.mxu0 %v946
    %1055 = vmatpush.msra.mxu0 %v945
    %1056 = vmatpush.msra.mxu0 %v944
    %1057 = vmatpush.msra.mxu0 %v943
    %1058 = vmatmul.f32.gmra.mxu0 %v742
    %v1059 = vpop.f32.mrf.mxu0
    %v1060 = vadd.f32 %v90, %v1059
    %1061 = vdwg.mxu0
    %v1062 = vmul.f32 %v1021, %v1060
    %v1063 = vadd.f32 %v961, %v1062
    %v1064 = vtanh.pop %v1063
    %v1065 = vsub.f32 1.0, %v1041
    %v1066 = vmul.f32 %v1065, %v1064
    %v1067 = vmul.f32 %v1041, %v742
    %v1068 = vadd.f32 %v1066, %v1067
    %s1069 = scalar_lea.vmem [#allocation11], 40
    %1070 = vst [vmem:[%s1069] sm:$0xff] %v1068
    %s1071 = scalar_lea.vmem [#allocation4], 36
    %v1072 = vld [vmem:[%s1071] sm:$0xff]
    %v1073 = vld [vmem:[%s1071 + $0x8] sm:$0xf]
    %v1074 = vld [vmem:[#allocation9] sm:$0xff]
    %v1075 = vld [vmem:[#allocation9 + $0x8] sm:$0xff]
    %v1076 = vld [vmem:[#allocation9 + $0x18] sm:$0xff]
    %v1077 = vld [vmem:[#allocation9 + $0x20] sm:$0xff]
    %v1078 = vld [vmem:[#allocation9 + $0x30] sm:$0xff]
    %v1079 = vld [vmem:[#allocation9 + $0x38] sm:$0xff]
    %v1080 = vld [vmem:[#allocation9 + $0x48] sm:$0xff]
    %v1081 = vld [vmem:[#allocation9 + $0x50] sm:$0xff]
    %v1082 = vld [vmem:[#allocation9 + $0x60] sm:$0xff]
    %v1083 = vld [vmem:[#allocation9 + $0x68] sm:$0xff]
    %v1084 = vld [vmem:[#allocation9 + $0x78] sm:$0xff]
    %v1085 = vld [vmem:[#allocation9 + $0x80] sm:$0xff]
    %v1086 = vld [vmem:[#allocation9 + $0x90] sm:$0xff]
    %v1087 = vld [vmem:[#allocation9 + $0x98] sm:$0xff]
    %v1088 = vld [vmem:[#allocation9 + $0xa8] sm:$0xff]
    %v1089 = vld [vmem:[#allocation9 + $0xb0] sm:$0xff]
    %v1090 = vld [vmem:[#allocation9 + $0xc0] sm:$0xff]
    %v1091 = vld [vmem:[#allocation9 + $0xc8] sm:$0xff]
    %v1092 = vld [vmem:[#allocation9 + $0xd8] sm:$0xff]
    %v1093 = vld [vmem:[#allocation9 + $0xe0] sm:$0xff]
    %v1094 = vld [vmem:[#allocation9 + $0xf0] sm:$0xff]
    %v1095 = vld [vmem:[#allocation9 + $0xf8] sm:$0xff]
    %v1096 = vld [vmem:[#allocation9 + $0x108] sm:$0xff]
    %v1097 = vld [vmem:[#allocation9 + $0x110] sm:$0xff]
    %v1098 = vld [vmem:[#allocation9 + $0x120] sm:$0xff]
    %v1099 = vld [vmem:[#allocation9 + $0x128] sm:$0xff]
    %v1100 = vld [vmem:[#allocation9 + $0x138] sm:$0xff]
    %v1101 = vld [vmem:[#allocation9 + $0x140] sm:$0xff]
    %v1102 = vld [vmem:[#allocation9 + $0x150] sm:$0xff]
    %v1103 = vld [vmem:[#allocation9 + $0x158] sm:$0xff]
    %v1104 = vld [vmem:[#allocation9 + $0x168] sm:$0xff]
    %v1105 = vld [vmem:[#allocation9 + $0x170] sm:$0xff]
    %v1106 = vld [vmem:[#allocation9 + $0x10] sm:$0xff]
    %v1107 = vld [vmem:[#allocation9 + $0x28] sm:$0xff]
    %v1108 = vld [vmem:[#allocation9 + $0x40] sm:$0xff]
    %v1109 = vld [vmem:[#allocation9 + $0x58] sm:$0xff]
    %v1110 = vld [vmem:[#allocation9 + $0x70] sm:$0xff]
    %v1111 = vld [vmem:[#allocation9 + $0x88] sm:$0xff]
    %v1112 = vld [vmem:[#allocation9 + $0xa0] sm:$0xff]
    %v1113 = vld [vmem:[#allocation9 + $0xb8] sm:$0xff]
    %v1114 = vld [vmem:[#allocation9 + $0xd0] sm:$0xff]
    %v1115 = vld [vmem:[#allocation9 + $0xe8] sm:$0xff]
    %v1116 = vld [vmem:[#allocation9 + $0x100] sm:$0xff]
    %v1117 = vld [vmem:[#allocation9 + $0x118] sm:$0xff]
    %v1118 = vld [vmem:[#allocation9 + $0x130] sm:$0xff]
    %v1119 = vld [vmem:[#allocation9 + $0x148] sm:$0xff]
    %v1120 = vld [vmem:[#allocation9 + $0x160] sm:$0xff]
    %v1121 = vld [vmem:[#allocation9 + $0x178] sm:$0xff]
    %v1122 = vunpack.c.l.bf16 %v1072
    %v1123 = vunpack.c.h.bf16 %v1072
    %v1124 = vunpack.c.l.bf16 %v1073
    %1125 = vmatpush.msra.mxu0 %v1104
    %1126 = vmatpush.msra.mxu0 %v1102
    %1127 = vmatpush.msra.mxu0 %v1100
    %1128 = vmatpush.msra.mxu0 %v1098
    %1129 = vmatpush.msra.mxu0 %v1096
    %1130 = vmatpush.msra.mxu0 %v1094
    %1131 = vmatpush.msra.mxu0 %v1092
    %1132 = vmatpush.msra.mxu0 %v1090
    %1133 = vmatpush.msra.mxu0 %v1088
    %1134 = vmatpush.msra.mxu0 %v1086
    %1135 = vmatpush.msra.mxu0 %v1084
    %1136 = vmatpush.msra.mxu0 %v1082
    %1137 = vmatpush.msra.mxu0 %v1080
    %1138 = vmatpush.msra.mxu0 %v1078
    %1139 = vmatpush.msra.mxu0 %v1076
    %1140 = vmatpush.msra.mxu0 %v1074
    %1141 = vmatmul.f32.gmra.mxu0 %v905
    %v1142 = vpop.f32.mrf.mxu0
    %v1143 = vadd.f32 0.0, %v1142
    %1144 = vdwg.mxu0
    %1145 = vmatpush.msra.mxu0 %v1105
    %1146 = vmatpush.msra.mxu0 %v1103
    %1147 = vmatpush.msra.mxu0 %v1101
    %1148 = vmatpush.msra.mxu0 %v1099
    %1149 = vmatpush.msra.mxu0 %v1097
    %1150 = vmatpush.msra.mxu0 %v1095
    %1151 = vmatpush.msra.mxu0 %v1093
    %1152 = vmatpush.msra.mxu0 %v1091
    %1153 = vmatpush.msra.mxu0 %v1089
    %1154 = vmatpush.msra.mxu0 %v1087
    %1155 = vmatpush.msra.mxu0 %v1085
    %1156 = vmatpush.msra.mxu0 %v1083
    %1157 = vmatpush.msra.mxu0 %v1081
    %1158 = vmatpush.msra.mxu0 %v1079
    %1159 = vmatpush.msra.mxu0 %v1077
    %1160 = vmatpush.msra.mxu0 %v1075
    %1161 = vmatmul.f32.gmra.mxu0 %v905
    %v1162 = vpop.f32.mrf.mxu0
    %v1163 = vadd.f32 0.0, %v1162
    %1164 = vdwg.mxu0
    %v1165 = vadd.f32 %v1122, %v1143
    %v1166 = vxor.u32 %v1165, 2147483648
    %v1167 = vmul.f32 %v1166, 1.442695
    %v1168 = vpow.pop %v1167
    %v1169 = vadd.f32 %v1168, 1.0
    %v1170 = vrcp.pop %v1169
    %v1171 = vmul.f32 %v1169, %v1170
    %v1172 = vsub.f32 1.0, %v1171
    %v1173 = vmul.f32 %v1170, %v1172
    %v1174 = vadd.f32 %v1170, %v1173
    %vm1175 = vweird.f32 %v1169
    %vm1176 = vweird.f32 %v1170
    %vm1177 = vmor %vm1175, %vm1176
    %v1178 = vsel %vm1177, %v1170, %v1174
    %v1179 = vand.u32 2147483647, %v1169
    %vm1180 = vcmp.eq.f32.partialorder %v1179, 8.507059e+37
    %v1181 = vand.u32 %v1169, 2147483648
    %v1182 = vor.u32 1.1754944e-38, %v1181
    %v1183 = vsel %vm1180, %v1182, %v1178
    %v1184 = vmul.f32 1.0, %v1183
    %v1185 = vadd.f32 %v1123, %v1163
    %v1186 = vxor.u32 %v1185, 2147483648
    %v1187 = vmul.f32 %v1186, 1.442695
    %v1188 = vpow.pop %v1187
    %v1189 = vadd.f32 %v1188, 1.0
    %v1190 = vrcp.pop %v1189
    %v1191 = vmul.f32 %v1189, %v1190
    %v1192 = vsub.f32 1.0, %v1191
    %v1193 = vmul.f32 %v1190, %v1192
    %v1194 = vadd.f32 %v1190, %v1193
    %vm1195 = vweird.f32 %v1189
    %vm1196 = vweird.f32 %v1190
    %vm1197 = vmor %vm1195, %vm1196
    %v1198 = vsel %vm1197, %v1190, %v1194
    %v1199 = vand.u32 2147483647, %v1189
    %vm1200 = vcmp.eq.f32.partialorder %v1199, 8.507059e+37
    %v1201 = vand.u32 %v1189, 2147483648
    %v1202 = vor.u32 1.1754944e-38, %v1201
    %v1203 = vsel %vm1200, %v1202, %v1198
    %v1204 = vmul.f32 1.0, %v1203
    %1205 = vmatpush.msra.mxu0 %v1121
    %1206 = vmatpush.msra.mxu0 %v1120
    %1207 = vmatpush.msra.mxu0 %v1119
    %1208 = vmatpush.msra.mxu0 %v1118
    %1209 = vmatpush.msra.mxu0 %v1117
    %1210 = vmatpush.msra.mxu0 %v1116
    %1211 = vmatpush.msra.mxu0 %v1115
    %1212 = vmatpush.msra.mxu0 %v1114
    %1213 = vmatpush.msra.mxu0 %v1113
    %1214 = vmatpush.msra.mxu0 %v1112
    %1215 = vmatpush.msra.mxu0 %v1111
    %1216 = vmatpush.msra.mxu0 %v1110
    %1217 = vmatpush.msra.mxu0 %v1109
    %1218 = vmatpush.msra.mxu0 %v1108
    %1219 = vmatpush.msra.mxu0 %v1107
    %1220 = vmatpush.msra.mxu0 %v1106
    %1221 = vmatmul.f32.gmra.mxu0 %v905
    %v1222 = vpop.f32.mrf.mxu0
    %v1223 = vadd.f32 %v85, %v1222
    %1224 = vdwg.mxu0
    %v1225 = vmul.f32 %v1184, %v1223
    %v1226 = vadd.f32 %v1124, %v1225
    %v1227 = vtanh.pop %v1226
    %v1228 = vsub.f32 1.0, %v1204
    %v1229 = vmul.f32 %v1228, %v1227
    %v1230 = vmul.f32 %v1204, %v905
    %v1231 = vadd.f32 %v1229, %v1230
    %s1232 = scalar_lea.vmem [#allocation10], 24
    %1233 = vst [vmem:[%s1232] sm:$0xff] %v1231
    %s1234 = scalar_lea.vmem [#allocation7], 48
    %v1235 = vld [vmem:[%s1234] sm:$0xff]
    %v1236 = vld [vmem:[%s1234 + $0x8] sm:$0xf]
    %v1237 = vld [vmem:[%s258] sm:$0xff]
    %v1238 = vld [vmem:[%s258 + $0x8] sm:$0xff]
    %v1239 = vld [vmem:[%s258 + $0x18] sm:$0xff]
    %v1240 = vld [vmem:[%s258 + $0x20] sm:$0xff]
    %v1241 = vld [vmem:[%s258 + $0x30] sm:$0xff]
    %v1242 = vld [vmem:[%s258 + $0x38] sm:$0xff]
    %v1243 = vld [vmem:[%s258 + $0x48] sm:$0xff]
    %v1244 = vld [vmem:[%s258 + $0x50] sm:$0xff]
    %v1245 = vld [vmem:[%s258 + $0x60] sm:$0xff]
    %v1246 = vld [vmem:[%s258 + $0x68] sm:$0xff]
    %v1247 = vld [vmem:[%s258 + $0x78] sm:$0xff]
    %v1248 = vld [vmem:[%s258 + $0x80] sm:$0xff]
    %v1249 = vld [vmem:[%s258 + $0x90] sm:$0xff]
    %v1250 = vld [vmem:[%s258 + $0x98] sm:$0xff]
    %v1251 = vld [vmem:[%s258 + $0xa8] sm:$0xff]
    %v1252 = vld [vmem:[%s258 + $0xb0] sm:$0xff]
    %v1253 = vld [vmem:[%s258 + $0xc0] sm:$0xff]
    %v1254 = vld [vmem:[%s258 + $0xc8] sm:$0xff]
    %v1255 = vld [vmem:[%s258 + $0xd8] sm:$0xff]
    %v1256 = vld [vmem:[%s258 + $0xe0] sm:$0xff]
    %v1257 = vld [vmem:[%s258 + $0xf0] sm:$0xff]
    %v1258 = vld [vmem:[%s258 + $0xf8] sm:$0xff]
    %v1259 = vld [vmem:[%s258 + $0x108] sm:$0xff]
    %v1260 = vld [vmem:[%s258 + $0x110] sm:$0xff]
    %v1261 = vld [vmem:[%s258 + $0x120] sm:$0xff]
    %v1262 = vld [vmem:[%s258 + $0x128] sm:$0xff]
    %v1263 = vld [vmem:[%s258 + $0x138] sm:$0xff]
    %v1264 = vld [vmem:[%s258 + $0x140] sm:$0xff]
    %v1265 = vld [vmem:[%s258 + $0x150] sm:$0xff]
    %v1266 = vld [vmem:[%s258 + $0x158] sm:$0xff]
    %v1267 = vld [vmem:[%s258 + $0x168] sm:$0xff]
    %v1268 = vld [vmem:[%s258 + $0x170] sm:$0xff]
    %v1269 = vld [vmem:[%s258 + $0x10] sm:$0xff]
    %v1270 = vld [vmem:[%s258 + $0x28] sm:$0xff]
    %v1271 = vld [vmem:[%s258 + $0x40] sm:$0xff]
    %v1272 = vld [vmem:[%s258 + $0x58] sm:$0xff]
    %v1273 = vld [vmem:[%s258 + $0x70] sm:$0xff]
    %v1274 = vld [vmem:[%s258 + $0x88] sm:$0xff]
    %v1275 = vld [vmem:[%s258 + $0xa0] sm:$0xff]
    %v1276 = vld [vmem:[%s258 + $0xb8] sm:$0xff]
    %v1277 = vld [vmem:[%s258 + $0xd0] sm:$0xff]
    %v1278 = vld [vmem:[%s258 + $0xe8] sm:$0xff]
    %v1279 = vld [vmem:[%s258 + $0x100] sm:$0xff]
    %v1280 = vld [vmem:[%s258 + $0x118] sm:$0xff]
    %v1281 = vld [vmem:[%s258 + $0x130] sm:$0xff]
    %v1282 = vld [vmem:[%s258 + $0x148] sm:$0xff]
    %v1283 = vld [vmem:[%s258 + $0x160] sm:$0xff]
    %v1284 = vld [vmem:[%s258 + $0x178] sm:$0xff]
    %v1285 = vunpack.c.l.bf16 %v1235
    %v1286 = vunpack.c.h.bf16 %v1235
    %v1287 = vunpack.c.l.bf16 %v1236
    %1288 = vmatpush.msra.mxu0 %v1267
    %1289 = vmatpush.msra.mxu0 %v1265
    %1290 = vmatpush.msra.mxu0 %v1263
    %1291 = vmatpush.msra.mxu0 %v1261
    %1292 = vmatpush.msra.mxu0 %v1259
    %1293 = vmatpush.msra.mxu0 %v1257
    %1294 = vmatpush.msra.mxu0 %v1255
    %1295 = vmatpush.msra.mxu0 %v1253
    %1296 = vmatpush.msra.mxu0 %v1251
    %1297 = vmatpush.msra.mxu0 %v1249
    %1298 = vmatpush.msra.mxu0 %v1247
    %1299 = vmatpush.msra.mxu0 %v1245
    %1300 = vmatpush.msra.mxu0 %v1243
    %1301 = vmatpush.msra.mxu0 %v1241
    %1302 = vmatpush.msra.mxu0 %v1239
    %1303 = vmatpush.msra.mxu0 %v1237
    %1304 = vmatmul.f32.gmra.mxu0 %v1068
    %v1305 = vpop.f32.mrf.mxu0
    %v1306 = vadd.f32 0.0, %v1305
    %1307 = vdwg.mxu0
    %1308 = vmatpush.msra.mxu0 %v1268
    %1309 = vmatpush.msra.mxu0 %v1266
    %1310 = vmatpush.msra.mxu0 %v1264
    %1311 = vmatpush.msra.mxu0 %v1262
    %1312 = vmatpush.msra.mxu0 %v1260
    %1313 = vmatpush.msra.mxu0 %v1258
    %1314 = vmatpush.msra.mxu0 %v1256
    %1315 = vmatpush.msra.mxu0 %v1254
    %1316 = vmatpush.msra.mxu0 %v1252
    %1317 = vmatpush.msra.mxu0 %v1250
    %1318 = vmatpush.msra.mxu0 %v1248
    %1319 = vmatpush.msra.mxu0 %v1246
    %1320 = vmatpush.msra.mxu0 %v1244
    %1321 = vmatpush.msra.mxu0 %v1242
    %1322 = vmatpush.msra.mxu0 %v1240
    %1323 = vmatpush.msra.mxu0 %v1238
    %1324 = vmatmul.f32.gmra.mxu0 %v1068
    %v1325 = vpop.f32.mrf.mxu0
    %v1326 = vadd.f32 0.0, %v1325
    %1327 = vdwg.mxu0
    %v1328 = vadd.f32 %v1285, %v1306
    %v1329 = vxor.u32 %v1328, 2147483648
    %v1330 = vmul.f32 %v1329, 1.442695
    %v1331 = vpow.pop %v1330
    %v1332 = vadd.f32 %v1331, 1.0
    %v1333 = vrcp.pop %v1332
    %v1334 = vmul.f32 %v1332, %v1333
    %v1335 = vsub.f32 1.0, %v1334
    %v1336 = vmul.f32 %v1333, %v1335
    %v1337 = vadd.f32 %v1333, %v1336
    %vm1338 = vweird.f32 %v1332
    %vm1339 = vweird.f32 %v1333
    %vm1340 = vmor %vm1338, %vm1339
    %v1341 = vsel %vm1340, %v1333, %v1337
    %v1342 = vand.u32 2147483647, %v1332
    %vm1343 = vcmp.eq.f32.partialorder %v1342, 8.507059e+37
    %v1344 = vand.u32 %v1332, 2147483648
    %v1345 = vor.u32 1.1754944e-38, %v1344
    %v1346 = vsel %vm1343, %v1345, %v1341
    %v1347 = vmul.f32 1.0, %v1346
    %v1348 = vadd.f32 %v1286, %v1326
    %v1349 = vxor.u32 %v1348, 2147483648
    %v1350 = vmul.f32 %v1349, 1.442695
    %v1351 = vpow.pop %v1350
    %v1352 = vadd.f32 %v1351, 1.0
    %v1353 = vrcp.pop %v1352
    %v1354 = vmul.f32 %v1352, %v1353
    %v1355 = vsub.f32 1.0, %v1354
    %v1356 = vmul.f32 %v1353, %v1355
    %v1357 = vadd.f32 %v1353, %v1356
    %vm1358 = vweird.f32 %v1352
    %vm1359 = vweird.f32 %v1353
    %vm1360 = vmor %vm1358, %vm1359
    %v1361 = vsel %vm1360, %v1353, %v1357
    %v1362 = vand.u32 2147483647, %v1352
    %vm1363 = vcmp.eq.f32.partialorder %v1362, 8.507059e+37
    %v1364 = vand.u32 %v1352, 2147483648
    %v1365 = vor.u32 1.1754944e-38, %v1364
    %v1366 = vsel %vm1363, %v1365, %v1361
    %v1367 = vmul.f32 1.0, %v1366
    %1368 = vmatpush.msra.mxu0 %v1284
    %1369 = vmatpush.msra.mxu0 %v1283
    %1370 = vmatpush.msra.mxu0 %v1282
    %1371 = vmatpush.msra.mxu0 %v1281
    %1372 = vmatpush.msra.mxu0 %v1280
    %1373 = vmatpush.msra.mxu0 %v1279
    %1374 = vmatpush.msra.mxu0 %v1278
    %1375 = vmatpush.msra.mxu0 %v1277
    %1376 = vmatpush.msra.mxu0 %v1276
    %1377 = vmatpush.msra.mxu0 %v1275
    %1378 = vmatpush.msra.mxu0 %v1274
    %1379 = vmatpush.msra.mxu0 %v1273
    %1380 = vmatpush.msra.mxu0 %v1272
    %1381 = vmatpush.msra.mxu0 %v1271
    %1382 = vmatpush.msra.mxu0 %v1270
    %1383 = vmatpush.msra.mxu0 %v1269
    %1384 = vmatmul.f32.gmra.mxu0 %v1068
    %v1385 = vpop.f32.mrf.mxu0
    %v1386 = vadd.f32 %v90, %v1385
    %1387 = vdwg.mxu0
    %v1388 = vmul.f32 %v1347, %v1386
    %v1389 = vadd.f32 %v1287, %v1388
    %v1390 = vtanh.pop %v1389
    %v1391 = vsub.f32 1.0, %v1367
    %v1392 = vmul.f32 %v1391, %v1390
    %v1393 = vmul.f32 %v1367, %v1068
    %v1394 = vadd.f32 %v1392, %v1393
    %s1395 = scalar_lea.vmem [#allocation11], 32
    %1396 = vst [vmem:[%s1395] sm:$0xff] %v1394
    %s1397 = scalar_lea.vmem [#allocation4], 48
    %v1398 = vld [vmem:[%s1397] sm:$0xff]
    %v1399 = vld [vmem:[%s1397 + $0x8] sm:$0xf]
    %v1400 = vld [vmem:[#allocation9] sm:$0xff]
    %v1401 = vld [vmem:[#allocation9 + $0x8] sm:$0xff]
    %v1402 = vld [vmem:[#allocation9 + $0x18] sm:$0xff]
    %v1403 = vld [vmem:[#allocation9 + $0x20] sm:$0xff]
    %v1404 = vld [vmem:[#allocation9 + $0x30] sm:$0xff]
    %v1405 = vld [vmem:[#allocation9 + $0x38] sm:$0xff]
    %v1406 = vld [vmem:[#allocation9 + $0x48] sm:$0xff]
    %v1407 = vld [vmem:[#allocation9 + $0x50] sm:$0xff]
    %v1408 = vld [vmem:[#allocation9 + $0x60] sm:$0xff]
    %v1409 = vld [vmem:[#allocation9 + $0x68] sm:$0xff]
    %v1410 = vld [vmem:[#allocation9 + $0x78] sm:$0xff]
    %v1411 = vld [vmem:[#allocation9 + $0x80] sm:$0xff]
    %v1412 = vld [vmem:[#allocation9 + $0x90] sm:$0xff]
    %v1413 = vld [vmem:[#allocation9 + $0x98] sm:$0xff]
    %v1414 = vld [vmem:[#allocation9 + $0xa8] sm:$0xff]
    %v1415 = vld [vmem:[#allocation9 + $0xb0] sm:$0xff]
    %v1416 = vld [vmem:[#allocation9 + $0xc0] sm:$0xff]
    %v1417 = vld [vmem:[#allocation9 + $0xc8] sm:$0xff]
    %v1418 = vld [vmem:[#allocation9 + $0xd8] sm:$0xff]
    %v1419 = vld [vmem:[#allocation9 + $0xe0] sm:$0xff]
    %v1420 = vld [vmem:[#allocation9 + $0xf0] sm:$0xff]
    %v1421 = vld [vmem:[#allocation9 + $0xf8] sm:$0xff]
    %v1422 = vld [vmem:[#allocation9 + $0x108] sm:$0xff]
    %v1423 = vld [vmem:[#allocation9 + $0x110] sm:$0xff]
    %v1424 = vld [vmem:[#allocation9 + $0x120] sm:$0xff]
    %v1425 = vld [vmem:[#allocation9 + $0x128] sm:$0xff]
    %v1426 = vld [vmem:[#allocation9 + $0x138] sm:$0xff]
    %v1427 = vld [vmem:[#allocation9 + $0x140] sm:$0xff]
    %v1428 = vld [vmem:[#allocation9 + $0x150] sm:$0xff]
    %v1429 = vld [vmem:[#allocation9 + $0x158] sm:$0xff]
    %v1430 = vld [vmem:[#allocation9 + $0x168] sm:$0xff]
    %v1431 = vld [vmem:[#allocation9 + $0x170] sm:$0xff]
    %v1432 = vld [vmem:[#allocation9 + $0x10] sm:$0xff]
    %v1433 = vld [vmem:[#allocation9 + $0x28] sm:$0xff]
    %v1434 = vld [vmem:[#allocation9 + $0x40] sm:$0xff]
    %v1435 = vld [vmem:[#allocation9 + $0x58] sm:$0xff]
    %v1436 = vld [vmem:[#allocation9 + $0x70] sm:$0xff]
    %v1437 = vld [vmem:[#allocation9 + $0x88] sm:$0xff]
    %v1438 = vld [vmem:[#allocation9 + $0xa0] sm:$0xff]
    %v1439 = vld [vmem:[#allocation9 + $0xb8] sm:$0xff]
    %v1440 = vld [vmem:[#allocation9 + $0xd0] sm:$0xff]
    %v1441 = vld [vmem:[#allocation9 + $0xe8] sm:$0xff]
    %v1442 = vld [vmem:[#allocation9 + $0x100] sm:$0xff]
    %v1443 = vld [vmem:[#allocation9 + $0x118] sm:$0xff]
    %v1444 = vld [vmem:[#allocation9 + $0x130] sm:$0xff]
    %v1445 = vld [vmem:[#allocation9 + $0x148] sm:$0xff]
    %v1446 = vld [vmem:[#allocation9 + $0x160] sm:$0xff]
    %v1447 = vld [vmem:[#allocation9 + $0x178] sm:$0xff]
    %v1448 = vunpack.c.l.bf16 %v1398
    %v1449 = vunpack.c.h.bf16 %v1398
    %v1450 = vunpack.c.l.bf16 %v1399
    %1451 = vmatpush.msra.mxu0 %v1430
    %1452 = vmatpush.msra.mxu0 %v1428
    %1453 = vmatpush.msra.mxu0 %v1426
    %1454 = vmatpush.msra.mxu0 %v1424
    %1455 = vmatpush.msra.mxu0 %v1422
    %1456 = vmatpush.msra.mxu0 %v1420
    %1457 = vmatpush.msra.mxu0 %v1418
    %1458 = vmatpush.msra.mxu0 %v1416
    %1459 = vmatpush.msra.mxu0 %v1414
    %1460 = vmatpush.msra.mxu0 %v1412
    %1461 = vmatpush.msra.mxu0 %v1410
    %1462 = vmatpush.msra.mxu0 %v1408
    %1463 = vmatpush.msra.mxu0 %v1406
    %1464 = vmatpush.msra.mxu0 %v1404
    %1465 = vmatpush.msra.mxu0 %v1402
    %1466 = vmatpush.msra.mxu0 %v1400
    %1467 = vmatmul.f32.gmra.mxu0 %v1231
    %v1468 = vpop.f32.mrf.mxu0
    %v1469 = vadd.f32 0.0, %v1468
    %1470 = vdwg.mxu0
    %1471 = vmatpush.msra.mxu0 %v1431
    %1472 = vmatpush.msra.mxu0 %v1429
    %1473 = vmatpush.msra.mxu0 %v1427
    %1474 = vmatpush.msra.mxu0 %v1425
    %1475 = vmatpush.msra.mxu0 %v1423
    %1476 = vmatpush.msra.mxu0 %v1421
    %1477 = vmatpush.msra.mxu0 %v1419
    %1478 = vmatpush.msra.mxu0 %v1417
    %1479 = vmatpush.msra.mxu0 %v1415
    %1480 = vmatpush.msra.mxu0 %v1413
    %1481 = vmatpush.msra.mxu0 %v1411
    %1482 = vmatpush.msra.mxu0 %v1409
    %1483 = vmatpush.msra.mxu0 %v1407
    %1484 = vmatpush.msra.mxu0 %v1405
    %1485 = vmatpush.msra.mxu0 %v1403
    %1486 = vmatpush.msra.mxu0 %v1401
    %1487 = vmatmul.f32.gmra.mxu0 %v1231
    %v1488 = vpop.f32.mrf.mxu0
    %v1489 = vadd.f32 0.0, %v1488
    %1490 = vdwg.mxu0
    %v1491 = vadd.f32 %v1448, %v1469
    %v1492 = vxor.u32 %v1491, 2147483648
    %v1493 = vmul.f32 %v1492, 1.442695
    %v1494 = vpow.pop %v1493
    %v1495 = vadd.f32 %v1494, 1.0
    %v1496 = vrcp.pop %v1495
    %v1497 = vmul.f32 %v1495, %v1496
    %v1498 = vsub.f32 1.0, %v1497
    %v1499 = vmul.f32 %v1496, %v1498
    %v1500 = vadd.f32 %v1496, %v1499
    %vm1501 = vweird.f32 %v1495
    %vm1502 = vweird.f32 %v1496
    %vm1503 = vmor %vm1501, %vm1502
    %v1504 = vsel %vm1503, %v1496, %v1500
    %v1505 = vand.u32 2147483647, %v1495
    %vm1506 = vcmp.eq.f32.partialorder %v1505, 8.507059e+37
    %v1507 = vand.u32 %v1495, 2147483648
    %v1508 = vor.u32 1.1754944e-38, %v1507
    %v1509 = vsel %vm1506, %v1508, %v1504
    %v1510 = vmul.f32 1.0, %v1509
    %v1511 = vadd.f32 %v1449, %v1489
    %v1512 = vxor.u32 %v1511, 2147483648
    %v1513 = vmul.f32 %v1512, 1.442695
    %v1514 = vpow.pop %v1513
    %v1515 = vadd.f32 %v1514, 1.0
    %v1516 = vrcp.pop %v1515
    %v1517 = vmul.f32 %v1515, %v1516
    %v1518 = vsub.f32 1.0, %v1517
    %v1519 = vmul.f32 %v1516, %v1518
    %v1520 = vadd.f32 %v1516, %v1519
    %vm1521 = vweird.f32 %v1515
    %vm1522 = vweird.f32 %v1516
    %vm1523 = vmor %vm1521, %vm1522
    %v1524 = vsel %vm1523, %v1516, %v1520
    %v1525 = vand.u32 2147483647, %v1515
    %vm1526 = vcmp.eq.f32.partialorder %v1525, 8.507059e+37
    %v1527 = vand.u32 %v1515, 2147483648
    %v1528 = vor.u32 1.1754944e-38, %v1527
    %v1529 = vsel %vm1526, %v1528, %v1524
    %v1530 = vmul.f32 1.0, %v1529
    %1531 = vmatpush.msra.mxu0 %v1447
    %1532 = vmatpush.msra.mxu0 %v1446
    %1533 = vmatpush.msra.mxu0 %v1445
    %1534 = vmatpush.msra.mxu0 %v1444
    %1535 = vmatpush.msra.mxu0 %v1443
    %1536 = vmatpush.msra.mxu0 %v1442
    %1537 = vmatpush.msra.mxu0 %v1441
    %1538 = vmatpush.msra.mxu0 %v1440
    %1539 = vmatpush.msra.mxu0 %v1439
    %1540 = vmatpush.msra.mxu0 %v1438
    %1541 = vmatpush.msra.mxu0 %v1437
    %1542 = vmatpush.msra.mxu0 %v1436
    %1543 = vmatpush.msra.mxu0 %v1435
    %1544 = vmatpush.msra.mxu0 %v1434
    %1545 = vmatpush.msra.mxu0 %v1433
    %1546 = vmatpush.msra.mxu0 %v1432
    %1547 = vmatmul.f32.gmra.mxu0 %v1231
    %v1548 = vpop.f32.mrf.mxu0
    %v1549 = vadd.f32 %v85, %v1548
    %1550 = vdwg.mxu0
    %v1551 = vmul.f32 %v1510, %v1549
    %v1552 = vadd.f32 %v1450, %v1551
    %v1553 = vtanh.pop %v1552
    %v1554 = vsub.f32 1.0, %v1530
    %v1555 = vmul.f32 %v1554, %v1553
    %v1556 = vmul.f32 %v1530, %v1231
    %v1557 = vadd.f32 %v1555, %v1556
    %s1558 = scalar_lea.vmem [#allocation10], 32
    %1559 = vst [vmem:[%s1558] sm:$0xff] %v1557
    %s1560 = scalar_lea.vmem [#allocation7], 36
    %v1561 = vld [vmem:[%s1560] sm:$0xff]
    %v1562 = vld [vmem:[%s1560 + $0x8] sm:$0xf]
    %v1563 = vld [vmem:[%s258] sm:$0xff]
    %v1564 = vld [vmem:[%s258 + $0x8] sm:$0xff]
    %v1565 = vld [vmem:[%s258 + $0x18] sm:$0xff]
    %v1566 = vld [vmem:[%s258 + $0x20] sm:$0xff]
    %v1567 = vld [vmem:[%s258 + $0x30] sm:$0xff]
    %v1568 = vld [vmem:[%s258 + $0x38] sm:$0xff]
    %v1569 = vld [vmem:[%s258 + $0x48] sm:$0xff]
    %v1570 = vld [vmem:[%s258 + $0x50] sm:$0xff]
    %v1571 = vld [vmem:[%s258 + $0x60] sm:$0xff]
    %v1572 = vld [vmem:[%s258 + $0x68] sm:$0xff]
    %v1573 = vld [vmem:[%s258 + $0x78] sm:$0xff]
    %v1574 = vld [vmem:[%s258 + $0x80] sm:$0xff]
    %v1575 = vld [vmem:[%s258 + $0x90] sm:$0xff]
    %v1576 = vld [vmem:[%s258 + $0x98] sm:$0xff]
    %v1577 = vld [vmem:[%s258 + $0xa8] sm:$0xff]
    %v1578 = vld [vmem:[%s258 + $0xb0] sm:$0xff]
    %v1579 = vld [vmem:[%s258 + $0xc0] sm:$0xff]
    %v1580 = vld [vmem:[%s258 + $0xc8] sm:$0xff]
    %v1581 = vld [vmem:[%s258 + $0xd8] sm:$0xff]
    %v1582 = vld [vmem:[%s258 + $0xe0] sm:$0xff]
    %v1583 = vld [vmem:[%s258 + $0xf0] sm:$0xff]
    %v1584 = vld [vmem:[%s258 + $0xf8] sm:$0xff]
    %v1585 = vld [vmem:[%s258 + $0x108] sm:$0xff]
    %v1586 = vld [vmem:[%s258 + $0x110] sm:$0xff]
    %v1587 = vld [vmem:[%s258 + $0x120] sm:$0xff]
    %v1588 = vld [vmem:[%s258 + $0x128] sm:$0xff]
    %v1589 = vld [vmem:[%s258 + $0x138] sm:$0xff]
    %v1590 = vld [vmem:[%s258 + $0x140] sm:$0xff]
    %v1591 = vld [vmem:[%s258 + $0x150] sm:$0xff]
    %v1592 = vld [vmem:[%s258 + $0x158] sm:$0xff]
    %v1593 = vld [vmem:[%s258 + $0x168] sm:$0xff]
    %v1594 = vld [vmem:[%s258 + $0x170] sm:$0xff]
    %v1595 = vld [vmem:[%s258 + $0x10] sm:$0xff]
    %v1596 = vld [vmem:[%s258 + $0x28] sm:$0xff]
    %v1597 = vld [vmem:[%s258 + $0x40] sm:$0xff]
    %v1598 = vld [vmem:[%s258 + $0x58] sm:$0xff]
    %v1599 = vld [vmem:[%s258 + $0x70] sm:$0xff]
    %v1600 = vld [vmem:[%s258 + $0x88] sm:$0xff]
    %v1601 = vld [vmem:[%s258 + $0xa0] sm:$0xff]
    %v1602 = vld [vmem:[%s258 + $0xb8] sm:$0xff]
    %v1603 = vld [vmem:[%s258 + $0xd0] sm:$0xff]
    %v1604 = vld [vmem:[%s258 + $0xe8] sm:$0xff]
    %v1605 = vld [vmem:[%s258 + $0x100] sm:$0xff]
    %v1606 = vld [vmem:[%s258 + $0x118] sm:$0xff]
    %v1607 = vld [vmem:[%s258 + $0x130] sm:$0xff]
    %v1608 = vld [vmem:[%s258 + $0x148] sm:$0xff]
    %v1609 = vld [vmem:[%s258 + $0x160] sm:$0xff]
    %v1610 = vld [vmem:[%s258 + $0x178] sm:$0xff]
    %v1611 = vunpack.c.l.bf16 %v1561
    %v1612 = vunpack.c.h.bf16 %v1561
    %v1613 = vunpack.c.l.bf16 %v1562
    %1614 = vmatpush.msra.mxu0 %v1593
    %1615 = vmatpush.msra.mxu0 %v1591
    %1616 = vmatpush.msra.mxu0 %v1589
    %1617 = vmatpush.msra.mxu0 %v1587
    %1618 = vmatpush.msra.mxu0 %v1585
    %1619 = vmatpush.msra.mxu0 %v1583
    %1620 = vmatpush.msra.mxu0 %v1581
    %1621 = vmatpush.msra.mxu0 %v1579
    %1622 = vmatpush.msra.mxu0 %v1577
    %1623 = vmatpush.msra.mxu0 %v1575
    %1624 = vmatpush.msra.mxu0 %v1573
    %1625 = vmatpush.msra.mxu0 %v1571
    %1626 = vmatpush.msra.mxu0 %v1569
    %1627 = vmatpush.msra.mxu0 %v1567
    %1628 = vmatpush.msra.mxu0 %v1565
    %1629 = vmatpush.msra.mxu0 %v1563
    %1630 = vmatmul.f32.gmra.mxu0 %v1394
    %v1631 = vpop.f32.mrf.mxu0
    %v1632 = vadd.f32 0.0, %v1631
    %1633 = vdwg.mxu0
    %1634 = vmatpush.msra.mxu0 %v1594
    %1635 = vmatpush.msra.mxu0 %v1592
    %1636 = vmatpush.msra.mxu0 %v1590
    %1637 = vmatpush.msra.mxu0 %v1588
    %1638 = vmatpush.msra.mxu0 %v1586
    %1639 = vmatpush.msra.mxu0 %v1584
    %1640 = vmatpush.msra.mxu0 %v1582
    %1641 = vmatpush.msra.mxu0 %v1580
    %1642 = vmatpush.msra.mxu0 %v1578
    %1643 = vmatpush.msra.mxu0 %v1576
    %1644 = vmatpush.msra.mxu0 %v1574
    %1645 = vmatpush.msra.mxu0 %v1572
    %1646 = vmatpush.msra.mxu0 %v1570
    %1647 = vmatpush.msra.mxu0 %v1568
    %1648 = vmatpush.msra.mxu0 %v1566
    %1649 = vmatpush.msra.mxu0 %v1564
    %1650 = vmatmul.f32.gmra.mxu0 %v1394
    %v1651 = vpop.f32.mrf.mxu0
    %v1652 = vadd.f32 0.0, %v1651
    %1653 = vdwg.mxu0
    %v1654 = vadd.f32 %v1611, %v1632
    %v1655 = vxor.u32 %v1654, 2147483648
    %v1656 = vmul.f32 %v1655, 1.442695
    %v1657 = vpow.pop %v1656
    %v1658 = vadd.f32 %v1657, 1.0
    %v1659 = vrcp.pop %v1658
    %v1660 = vmul.f32 %v1658, %v1659
    %v1661 = vsub.f32 1.0, %v1660
    %v1662 = vmul.f32 %v1659, %v1661
    %v1663 = vadd.f32 %v1659, %v1662
    %vm1664 = vweird.f32 %v1658
    %vm1665 = vweird.f32 %v1659
    %vm1666 = vmor %vm1664, %vm1665
    %v1667 = vsel %vm1666, %v1659, %v1663
    %v1668 = vand.u32 2147483647, %v1658
    %vm1669 = vcmp.eq.f32.partialorder %v1668, 8.507059e+37
    %v1670 = vand.u32 %v1658, 2147483648
    %v1671 = vor.u32 1.1754944e-38, %v1670
    %v1672 = vsel %vm1669, %v1671, %v1667
    %v1673 = vmul.f32 1.0, %v1672
    %v1674 = vadd.f32 %v1612, %v1652
    %v1675 = vxor.u32 %v1674, 2147483648
    %v1676 = vmul.f32 %v1675, 1.442695
    %v1677 = vpow.pop %v1676
    %v1678 = vadd.f32 %v1677, 1.0
    %v1679 = vrcp.pop %v1678
    %v1680 = vmul.f32 %v1678, %v1679
    %v1681 = vsub.f32 1.0, %v1680
    %v1682 = vmul.f32 %v1679, %v1681
    %v1683 = vadd.f32 %v1679, %v1682
    %vm1684 = vweird.f32 %v1678
    %vm1685 = vweird.f32 %v1679
    %vm1686 = vmor %vm1684, %vm1685
    %v1687 = vsel %vm1686, %v1679, %v1683
    %v1688 = vand.u32 2147483647, %v1678
    %vm1689 = vcmp.eq.f32.partialorder %v1688, 8.507059e+37
    %v1690 = vand.u32 %v1678, 2147483648
    %v1691 = vor.u32 1.1754944e-38, %v1690
    %v1692 = vsel %vm1689, %v1691, %v1687
    %v1693 = vmul.f32 1.0, %v1692
    %1694 = vmatpush.msra.mxu0 %v1610
    %1695 = vmatpush.msra.mxu0 %v1609
    %1696 = vmatpush.msra.mxu0 %v1608
    %1697 = vmatpush.msra.mxu0 %v1607
    %1698 = vmatpush.msra.mxu0 %v1606
    %1699 = vmatpush.msra.mxu0 %v1605
    %1700 = vmatpush.msra.mxu0 %v1604
    %1701 = vmatpush.msra.mxu0 %v1603
    %1702 = vmatpush.msra.mxu0 %v1602
    %1703 = vmatpush.msra.mxu0 %v1601
    %1704 = vmatpush.msra.mxu0 %v1600
    %1705 = vmatpush.msra.mxu0 %v1599
    %1706 = vmatpush.msra.mxu0 %v1598
    %1707 = vmatpush.msra.mxu0 %v1597
    %1708 = vmatpush.msra.mxu0 %v1596
    %1709 = vmatpush.msra.mxu0 %v1595
    %1710 = vmatmul.f32.gmra.mxu0 %v1394
    %v1711 = vpop.f32.mrf.mxu0
    %v1712 = vadd.f32 %v90, %v1711
    %1713 = vdwg.mxu0
    %v1714 = vmul.f32 %v1673, %v1712
    %v1715 = vadd.f32 %v1613, %v1714
    %v1716 = vtanh.pop %v1715
    %v1717 = vsub.f32 1.0, %v1693
    %v1718 = vmul.f32 %v1717, %v1716
    %v1719 = vmul.f32 %v1693, %v1394
    %v1720 = vadd.f32 %v1718, %v1719
    %s1721 = scalar_lea.vmem [#allocation11], 24
    %1722 = vst [vmem:[%s1721] sm:$0xff] %v1720
    %s1723 = scalar_lea.vmem [#allocation4], 60
    %v1724 = vld [vmem:[%s1723] sm:$0xff]
    %v1725 = vld [vmem:[%s1723 + $0x8] sm:$0xf]
    %v1726 = vld [vmem:[#allocation9] sm:$0xff]
    %v1727 = vld [vmem:[#allocation9 + $0x8] sm:$0xff]
    %v1728 = vld [vmem:[#allocation9 + $0x18] sm:$0xff]
    %v1729 = vld [vmem:[#allocation9 + $0x20] sm:$0xff]
    %v1730 = vld [vmem:[#allocation9 + $0x30] sm:$0xff]
    %v1731 = vld [vmem:[#allocation9 + $0x38] sm:$0xff]
    %v1732 = vld [vmem:[#allocation9 + $0x48] sm:$0xff]
    %v1733 = vld [vmem:[#allocation9 + $0x50] sm:$0xff]
    %v1734 = vld [vmem:[#allocation9 + $0x60] sm:$0xff]
    %v1735 = vld [vmem:[#allocation9 + $0x68] sm:$0xff]
    %v1736 = vld [vmem:[#allocation9 + $0x78] sm:$0xff]
    %v1737 = vld [vmem:[#allocation9 + $0x80] sm:$0xff]
    %v1738 = vld [vmem:[#allocation9 + $0x90] sm:$0xff]
    %v1739 = vld [vmem:[#allocation9 + $0x98] sm:$0xff]
    %v1740 = vld [vmem:[#allocation9 + $0xa8] sm:$0xff]
    %v1741 = vld [vmem:[#allocation9 + $0xb0] sm:$0xff]
    %v1742 = vld [vmem:[#allocation9 + $0xc0] sm:$0xff]
    %v1743 = vld [vmem:[#allocation9 + $0xc8] sm:$0xff]
    %v1744 = vld [vmem:[#allocation9 + $0xd8] sm:$0xff]
    %v1745 = vld [vmem:[#allocation9 + $0xe0] sm:$0xff]
    %v1746 = vld [vmem:[#allocation9 + $0xf0] sm:$0xff]
    %v1747 = vld [vmem:[#allocation9 + $0xf8] sm:$0xff]
    %v1748 = vld [vmem:[#allocation9 + $0x108] sm:$0xff]
    %v1749 = vld [vmem:[#allocation9 + $0x110] sm:$0xff]
    %v1750 = vld [vmem:[#allocation9 + $0x120] sm:$0xff]
    %v1751 = vld [vmem:[#allocation9 + $0x128] sm:$0xff]
    %v1752 = vld [vmem:[#allocation9 + $0x138] sm:$0xff]
    %v1753 = vld [vmem:[#allocation9 + $0x140] sm:$0xff]
    %v1754 = vld [vmem:[#allocation9 + $0x150] sm:$0xff]
    %v1755 = vld [vmem:[#allocation9 + $0x158] sm:$0xff]
    %v1756 = vld [vmem:[#allocation9 + $0x168] sm:$0xff]
    %v1757 = vld [vmem:[#allocation9 + $0x170] sm:$0xff]
    %v1758 = vld [vmem:[#allocation9 + $0x10] sm:$0xff]
    %v1759 = vld [vmem:[#allocation9 + $0x28] sm:$0xff]
    %v1760 = vld [vmem:[#allocation9 + $0x40] sm:$0xff]
    %v1761 = vld [vmem:[#allocation9 + $0x58] sm:$0xff]
    %v1762 = vld [vmem:[#allocation9 + $0x70] sm:$0xff]
    %v1763 = vld [vmem:[#allocation9 + $0x88] sm:$0xff]
    %v1764 = vld [vmem:[#allocation9 + $0xa0] sm:$0xff]
    %v1765 = vld [vmem:[#allocation9 + $0xb8] sm:$0xff]
    %v1766 = vld [vmem:[#allocation9 + $0xd0] sm:$0xff]
    %v1767 = vld [vmem:[#allocation9 + $0xe8] sm:$0xff]
    %v1768 = vld [vmem:[#allocation9 + $0x100] sm:$0xff]
    %v1769 = vld [vmem:[#allocation9 + $0x118] sm:$0xff]
    %v1770 = vld [vmem:[#allocation9 + $0x130] sm:$0xff]
    %v1771 = vld [vmem:[#allocation9 + $0x148] sm:$0xff]
    %v1772 = vld [vmem:[#allocation9 + $0x160] sm:$0xff]
    %v1773 = vld [vmem:[#allocation9 + $0x178] sm:$0xff]
    %v1774 = vunpack.c.l.bf16 %v1724
    %v1775 = vunpack.c.h.bf16 %v1724
    %v1776 = vunpack.c.l.bf16 %v1725
    %1777 = vmatpush.msra.mxu0 %v1756
    %1778 = vmatpush.msra.mxu0 %v1754
    %1779 = vmatpush.msra.mxu0 %v1752
    %1780 = vmatpush.msra.mxu0 %v1750
    %1781 = vmatpush.msra.mxu0 %v1748
    %1782 = vmatpush.msra.mxu0 %v1746
    %1783 = vmatpush.msra.mxu0 %v1744
    %1784 = vmatpush.msra.mxu0 %v1742
    %1785 = vmatpush.msra.mxu0 %v1740
    %1786 = vmatpush.msra.mxu0 %v1738
    %1787 = vmatpush.msra.mxu0 %v1736
    %1788 = vmatpush.msra.mxu0 %v1734
    %1789 = vmatpush.msra.mxu0 %v1732
    %1790 = vmatpush.msra.mxu0 %v1730
    %1791 = vmatpush.msra.mxu0 %v1728
    %1792 = vmatpush.msra.mxu0 %v1726
    %1793 = vmatmul.f32.gmra.mxu0 %v1557
    %v1794 = vpop.f32.mrf.mxu0
    %v1795 = vadd.f32 0.0, %v1794
    %1796 = vdwg.mxu0
    %1797 = vmatpush.msra.mxu0 %v1757
    %1798 = vmatpush.msra.mxu0 %v1755
    %1799 = vmatpush.msra.mxu0 %v1753
    %1800 = vmatpush.msra.mxu0 %v1751
    %1801 = vmatpush.msra.mxu0 %v1749
    %1802 = vmatpush.msra.mxu0 %v1747
    %1803 = vmatpush.msra.mxu0 %v1745
    %1804 = vmatpush.msra.mxu0 %v1743
    %1805 = vmatpush.msra.mxu0 %v1741
    %1806 = vmatpush.msra.mxu0 %v1739
    %1807 = vmatpush.msra.mxu0 %v1737
    %1808 = vmatpush.msra.mxu0 %v1735
    %1809 = vmatpush.msra.mxu0 %v1733
    %1810 = vmatpush.msra.mxu0 %v1731
    %1811 = vmatpush.msra.mxu0 %v1729
    %1812 = vmatpush.msra.mxu0 %v1727
    %1813 = vmatmul.f32.gmra.mxu0 %v1557
    %v1814 = vpop.f32.mrf.mxu0
    %v1815 = vadd.f32 0.0, %v1814
    %1816 = vdwg.mxu0
    %v1817 = vadd.f32 %v1774, %v1795
    %v1818 = vxor.u32 %v1817, 2147483648
    %v1819 = vmul.f32 %v1818, 1.442695
    %v1820 = vpow.pop %v1819
    %v1821 = vadd.f32 %v1820, 1.0
    %v1822 = vrcp.pop %v1821
    %v1823 = vmul.f32 %v1821, %v1822
    %v1824 = vsub.f32 1.0, %v1823
    %v1825 = vmul.f32 %v1822, %v1824
    %v1826 = vadd.f32 %v1822, %v1825
    %vm1827 = vweird.f32 %v1821
    %vm1828 = vweird.f32 %v1822
    %vm1829 = vmor %vm1827, %vm1828
    %v1830 = vsel %vm1829, %v1822, %v1826
    %v1831 = vand.u32 2147483647, %v1821
    %vm1832 = vcmp.eq.f32.partialorder %v1831, 8.507059e+37
    %v1833 = vand.u32 %v1821, 2147483648
    %v1834 = vor.u32 1.1754944e-38, %v1833
    %v1835 = vsel %vm1832, %v1834, %v1830
    %v1836 = vmul.f32 1.0, %v1835
    %v1837 = vadd.f32 %v1775, %v1815
    %v1838 = vxor.u32 %v1837, 2147483648
    %v1839 = vmul.f32 %v1838, 1.442695
    %v1840 = vpow.pop %v1839
    %v1841 = vadd.f32 %v1840, 1.0
    %v1842 = vrcp.pop %v1841
    %v1843 = vmul.f32 %v1841, %v1842
    %v1844 = vsub.f32 1.0, %v1843
    %v1845 = vmul.f32 %v1842, %v1844
    %v1846 = vadd.f32 %v1842, %v1845
    %vm1847 = vweird.f32 %v1841
    %vm1848 = vweird.f32 %v1842
    %vm1849 = vmor %vm1847, %vm1848
    %v1850 = vsel %vm1849, %v1842, %v1846
    %v1851 = vand.u32 2147483647, %v1841
    %vm1852 = vcmp.eq.f32.partialorder %v1851, 8.507059e+37
    %v1853 = vand.u32 %v1841, 2147483648
    %v1854 = vor.u32 1.1754944e-38, %v1853
    %v1855 = vsel %vm1852, %v1854, %v1850
    %v1856 = vmul.f32 1.0, %v1855
    %1857 = vmatpush.msra.mxu0 %v1773
    %1858 = vmatpush.msra.mxu0 %v1772
    %1859 = vmatpush.msra.mxu0 %v1771
    %1860 = vmatpush.msra.mxu0 %v1770
    %1861 = vmatpush.msra.mxu0 %v1769
    %1862 = vmatpush.msra.mxu0 %v1768
    %1863 = vmatpush.msra.mxu0 %v1767
    %1864 = vmatpush.msra.mxu0 %v1766
    %1865 = vmatpush.msra.mxu0 %v1765
    %1866 = vmatpush.msra.mxu0 %v1764
    %1867 = vmatpush.msra.mxu0 %v1763
    %1868 = vmatpush.msra.mxu0 %v1762
    %1869 = vmatpush.msra.mxu0 %v1761
    %1870 = vmatpush.msra.mxu0 %v1760
    %1871 = vmatpush.msra.mxu0 %v1759
    %1872 = vmatpush.msra.mxu0 %v1758
    %1873 = vmatmul.f32.gmra.mxu0 %v1557
    %v1874 = vpop.f32.mrf.mxu0
    %v1875 = vadd.f32 %v85, %v1874
    %1876 = vdwg.mxu0
    %v1877 = vmul.f32 %v1836, %v1875
    %v1878 = vadd.f32 %v1776, %v1877
    %v1879 = vtanh.pop %v1878
    %v1880 = vsub.f32 1.0, %v1856
    %v1881 = vmul.f32 %v1880, %v1879
    %v1882 = vmul.f32 %v1856, %v1557
    %v1883 = vadd.f32 %v1881, %v1882
    %s1884 = scalar_lea.vmem [#allocation10], 40
    %1885 = vst [vmem:[%s1884] sm:$0xff] %v1883
    %s1886 = scalar_lea.vmem [#allocation7], 24
    %v1887 = vld [vmem:[%s1886] sm:$0xff]
    %v1888 = vld [vmem:[%s1886 + $0x8] sm:$0xf]
    %v1889 = vld [vmem:[%s258] sm:$0xff]
    %v1890 = vld [vmem:[%s258 + $0x8] sm:$0xff]
    %v1891 = vld [vmem:[%s258 + $0x18] sm:$0xff]
    %v1892 = vld [vmem:[%s258 + $0x20] sm:$0xff]
    %v1893 = vld [vmem:[%s258 + $0x30] sm:$0xff]
    %v1894 = vld [vmem:[%s258 + $0x38] sm:$0xff]
    %v1895 = vld [vmem:[%s258 + $0x48] sm:$0xff]
    %v1896 = vld [vmem:[%s258 + $0x50] sm:$0xff]
    %v1897 = vld [vmem:[%s258 + $0x60] sm:$0xff]
    %v1898 = vld [vmem:[%s258 + $0x68] sm:$0xff]
    %v1899 = vld [vmem:[%s258 + $0x78] sm:$0xff]
    %v1900 = vld [vmem:[%s258 + $0x80] sm:$0xff]
    %v1901 = vld [vmem:[%s258 + $0x90] sm:$0xff]
    %v1902 = vld [vmem:[%s258 + $0x98] sm:$0xff]
    %v1903 = vld [vmem:[%s258 + $0xa8] sm:$0xff]
    %v1904 = vld [vmem:[%s258 + $0xb0] sm:$0xff]
    %v1905 = vld [vmem:[%s258 + $0xc0] sm:$0xff]
    %v1906 = vld [vmem:[%s258 + $0xc8] sm:$0xff]
    %v1907 = vld [vmem:[%s258 + $0xd8] sm:$0xff]
    %v1908 = vld [vmem:[%s258 + $0xe0] sm:$0xff]
    %v1909 = vld [vmem:[%s258 + $0xf0] sm:$0xff]
    %v1910 = vld [vmem:[%s258 + $0xf8] sm:$0xff]
    %v1911 = vld [vmem:[%s258 + $0x108] sm:$0xff]
    %v1912 = vld [vmem:[%s258 + $0x110] sm:$0xff]
    %v1913 = vld [vmem:[%s258 + $0x120] sm:$0xff]
    %v1914 = vld [vmem:[%s258 + $0x128] sm:$0xff]
    %v1915 = vld [vmem:[%s258 + $0x138] sm:$0xff]
    %v1916 = vld [vmem:[%s258 + $0x140] sm:$0xff]
    %v1917 = vld [vmem:[%s258 + $0x150] sm:$0xff]
    %v1918 = vld [vmem:[%s258 + $0x158] sm:$0xff]
    %v1919 = vld [vmem:[%s258 + $0x168] sm:$0xff]
    %v1920 = vld [vmem:[%s258 + $0x170] sm:$0xff]
    %v1921 = vld [vmem:[%s258 + $0x10] sm:$0xff]
    %v1922 = vld [vmem:[%s258 + $0x28] sm:$0xff]
    %v1923 = vld [vmem:[%s258 + $0x40] sm:$0xff]
    %v1924 = vld [vmem:[%s258 + $0x58] sm:$0xff]
    %v1925 = vld [vmem:[%s258 + $0x70] sm:$0xff]
    %v1926 = vld [vmem:[%s258 + $0x88] sm:$0xff]
    %v1927 = vld [vmem:[%s258 + $0xa0] sm:$0xff]
    %v1928 = vld [vmem:[%s258 + $0xb8] sm:$0xff]
    %v1929 = vld [vmem:[%s258 + $0xd0] sm:$0xff]
    %v1930 = vld [vmem:[%s258 + $0xe8] sm:$0xff]
    %v1931 = vld [vmem:[%s258 + $0x100] sm:$0xff]
    %v1932 = vld [vmem:[%s258 + $0x118] sm:$0xff]
    %v1933 = vld [vmem:[%s258 + $0x130] sm:$0xff]
    %v1934 = vld [vmem:[%s258 + $0x148] sm:$0xff]
    %v1935 = vld [vmem:[%s258 + $0x160] sm:$0xff]
    %v1936 = vld [vmem:[%s258 + $0x178] sm:$0xff]
    %v1937 = vunpack.c.l.bf16 %v1887
    %v1938 = vunpack.c.h.bf16 %v1887
    %v1939 = vunpack.c.l.bf16 %v1888
    %1940 = vmatpush.msra.mxu0 %v1919
    %1941 = vmatpush.msra.mxu0 %v1917
    %1942 = vmatpush.msra.mxu0 %v1915
    %1943 = vmatpush.msra.mxu0 %v1913
    %1944 = vmatpush.msra.mxu0 %v1911
    %1945 = vmatpush.msra.mxu0 %v1909
    %1946 = vmatpush.msra.mxu0 %v1907
    %1947 = vmatpush.msra.mxu0 %v1905
    %1948 = vmatpush.msra.mxu0 %v1903
    %1949 = vmatpush.msra.mxu0 %v1901
    %1950 = vmatpush.msra.mxu0 %v1899
    %1951 = vmatpush.msra.mxu0 %v1897
    %1952 = vmatpush.msra.mxu0 %v1895
    %1953 = vmatpush.msra.mxu0 %v1893
    %1954 = vmatpush.msra.mxu0 %v1891
    %1955 = vmatpush.msra.mxu0 %v1889
    %1956 = vmatmul.f32.gmra.mxu0 %v1720
    %v1957 = vpop.f32.mrf.mxu0
    %v1958 = vadd.f32 0.0, %v1957
    %1959 = vdwg.mxu0
    %1960 = vmatpush.msra.mxu0 %v1920
    %1961 = vmatpush.msra.mxu0 %v1918
    %1962 = vmatpush.msra.mxu0 %v1916
    %1963 = vmatpush.msra.mxu0 %v1914
    %1964 = vmatpush.msra.mxu0 %v1912
    %1965 = vmatpush.msra.mxu0 %v1910
    %1966 = vmatpush.msra.mxu0 %v1908
    %1967 = vmatpush.msra.mxu0 %v1906
    %1968 = vmatpush.msra.mxu0 %v1904
    %1969 = vmatpush.msra.mxu0 %v1902
    %1970 = vmatpush.msra.mxu0 %v1900
    %1971 = vmatpush.msra.mxu0 %v1898
    %1972 = vmatpush.msra.mxu0 %v1896
    %1973 = vmatpush.msra.mxu0 %v1894
    %1974 = vmatpush.msra.mxu0 %v1892
    %1975 = vmatpush.msra.mxu0 %v1890
    %1976 = vmatmul.f32.gmra.mxu0 %v1720
    %v1977 = vpop.f32.mrf.mxu0
    %v1978 = vadd.f32 0.0, %v1977
    %1979 = vdwg.mxu0
    %v1980 = vadd.f32 %v1937, %v1958
    %v1981 = vxor.u32 %v1980, 2147483648
    %v1982 = vmul.f32 %v1981, 1.442695
    %v1983 = vpow.pop %v1982
    %v1984 = vadd.f32 %v1983, 1.0
    %v1985 = vrcp.pop %v1984
    %v1986 = vmul.f32 %v1984, %v1985
    %v1987 = vsub.f32 1.0, %v1986
    %v1988 = vmul.f32 %v1985, %v1987
    %v1989 = vadd.f32 %v1985, %v1988
    %vm1990 = vweird.f32 %v1984
    %vm1991 = vweird.f32 %v1985
    %vm1992 = vmor %vm1990, %vm1991
    %v1993 = vsel %vm1992, %v1985, %v1989
    %v1994 = vand.u32 2147483647, %v1984
    %vm1995 = vcmp.eq.f32.partialorder %v1994, 8.507059e+37
    %v1996 = vand.u32 %v1984, 2147483648
    %v1997 = vor.u32 1.1754944e-38, %v1996
    %v1998 = vsel %vm1995, %v1997, %v1993
    %v1999 = vmul.f32 1.0, %v1998
    %v2000 = vadd.f32 %v1938, %v1978
    %v2001 = vxor.u32 %v2000, 2147483648
    %v2002 = vmul.f32 %v2001, 1.442695
    %v2003 = vpow.pop %v2002
    %v2004 = vadd.f32 %v2003, 1.0
    %v2005 = vrcp.pop %v2004
    %v2006 = vmul.f32 %v2004, %v2005
    %v2007 = vsub.f32 1.0, %v2006
    %v2008 = vmul.f32 %v2005, %v2007
    %v2009 = vadd.f32 %v2005, %v2008
    %vm2010 = vweird.f32 %v2004
    %vm2011 = vweird.f32 %v2005
    %vm2012 = vmor %vm2010, %vm2011
    %v2013 = vsel %vm2012, %v2005, %v2009
    %v2014 = vand.u32 2147483647, %v2004
    %vm2015 = vcmp.eq.f32.partialorder %v2014, 8.507059e+37
    %v2016 = vand.u32 %v2004, 2147483648
    %v2017 = vor.u32 1.1754944e-38, %v2016
    %v2018 = vsel %vm2015, %v2017, %v2013
    %v2019 = vmul.f32 1.0, %v2018
    %2020 = vmatpush.msra.mxu0 %v1936
    %2021 = vmatpush.msra.mxu0 %v1935
    %2022 = vmatpush.msra.mxu0 %v1934
    %2023 = vmatpush.msra.mxu0 %v1933
    %2024 = vmatpush.msra.mxu0 %v1932
    %2025 = vmatpush.msra.mxu0 %v1931
    %2026 = vmatpush.msra.mxu0 %v1930
    %2027 = vmatpush.msra.mxu0 %v1929
    %2028 = vmatpush.msra.mxu0 %v1928
    %2029 = vmatpush.msra.mxu0 %v1927
    %2030 = vmatpush.msra.mxu0 %v1926
    %2031 = vmatpush.msra.mxu0 %v1925
    %2032 = vmatpush.msra.mxu0 %v1924
    %2033 = vmatpush.msra.mxu0 %v1923
    %2034 = vmatpush.msra.mxu0 %v1922
    %2035 = vmatpush.msra.mxu0 %v1921
    %2036 = vmatmul.f32.gmra.mxu0 %v1720
    %v2037 = vpop.f32.mrf.mxu0
    %v2038 = vadd.f32 %v90, %v2037
    %2039 = vdwg.mxu0
    %v2040 = vmul.f32 %v1999, %v2038
    %v2041 = vadd.f32 %v1939, %v2040
    %v2042 = vtanh.pop %v2041
    %v2043 = vsub.f32 1.0, %v2019
    %v2044 = vmul.f32 %v2043, %v2042
    %v2045 = vmul.f32 %v2019, %v1720
    %v2046 = vadd.f32 %v2044, %v2045
    %s2047 = scalar_lea.vmem [#allocation11], 16
    %2048 = vst [vmem:[%s2047] sm:$0xff] %v2046
    %s2049 = scalar_lea.vmem [#allocation4], 72
    %v2050 = vld [vmem:[%s2049] sm:$0xff]
    %v2051 = vld [vmem:[%s2049 + $0x8] sm:$0xf]
    %v2052 = vld [vmem:[#allocation9] sm:$0xff]
    %v2053 = vld [vmem:[#allocation9 + $0x8] sm:$0xff]
    %v2054 = vld [vmem:[#allocation9 + $0x18] sm:$0xff]
    %v2055 = vld [vmem:[#allocation9 + $0x20] sm:$0xff]
    %v2056 = vld [vmem:[#allocation9 + $0x30] sm:$0xff]
    %v2057 = vld [vmem:[#allocation9 + $0x38] sm:$0xff]
    %v2058 = vld [vmem:[#allocation9 + $0x48] sm:$0xff]
    %v2059 = vld [vmem:[#allocation9 + $0x50] sm:$0xff]
    %v2060 = vld [vmem:[#allocation9 + $0x60] sm:$0xff]
    %v2061 = vld [vmem:[#allocation9 + $0x68] sm:$0xff]
    %v2062 = vld [vmem:[#allocation9 + $0x78] sm:$0xff]
    %v2063 = vld [vmem:[#allocation9 + $0x80] sm:$0xff]
    %v2064 = vld [vmem:[#allocation9 + $0x90] sm:$0xff]
    %v2065 = vld [vmem:[#allocation9 + $0x98] sm:$0xff]
    %v2066 = vld [vmem:[#allocation9 + $0xa8] sm:$0xff]
    %v2067 = vld [vmem:[#allocation9 + $0xb0] sm:$0xff]
    %v2068 = vld [vmem:[#allocation9 + $0xc0] sm:$0xff]
    %v2069 = vld [vmem:[#allocation9 + $0xc8] sm:$0xff]
    %v2070 = vld [vmem:[#allocation9 + $0xd8] sm:$0xff]
    %v2071 = vld [vmem:[#allocation9 + $0xe0] sm:$0xff]
    %v2072 = vld [vmem:[#allocation9 + $0xf0] sm:$0xff]
    %v2073 = vld [vmem:[#allocation9 + $0xf8] sm:$0xff]
    %v2074 = vld [vmem:[#allocation9 + $0x108] sm:$0xff]
    %v2075 = vld [vmem:[#allocation9 + $0x110] sm:$0xff]
    %v2076 = vld [vmem:[#allocation9 + $0x120] sm:$0xff]
    %v2077 = vld [vmem:[#allocation9 + $0x128] sm:$0xff]
    %v2078 = vld [vmem:[#allocation9 + $0x138] sm:$0xff]
    %v2079 = vld [vmem:[#allocation9 + $0x140] sm:$0xff]
    %v2080 = vld [vmem:[#allocation9 + $0x150] sm:$0xff]
    %v2081 = vld [vmem:[#allocation9 + $0x158] sm:$0xff]
    %v2082 = vld [vmem:[#allocation9 + $0x168] sm:$0xff]
    %v2083 = vld [vmem:[#allocation9 + $0x170] sm:$0xff]
    %v2084 = vld [vmem:[#allocation9 + $0x10] sm:$0xff]
    %v2085 = vld [vmem:[#allocation9 + $0x28] sm:$0xff]
    %v2086 = vld [vmem:[#allocation9 + $0x40] sm:$0xff]
    %v2087 = vld [vmem:[#allocation9 + $0x58] sm:$0xff]
    %v2088 = vld [vmem:[#allocation9 + $0x70] sm:$0xff]
    %v2089 = vld [vmem:[#allocation9 + $0x88] sm:$0xff]
    %v2090 = vld [vmem:[#allocation9 + $0xa0] sm:$0xff]
    %v2091 = vld [vmem:[#allocation9 + $0xb8] sm:$0xff]
    %v2092 = vld [vmem:[#allocation9 + $0xd0] sm:$0xff]
    %v2093 = vld [vmem:[#allocation9 + $0xe8] sm:$0xff]
    %v2094 = vld [vmem:[#allocation9 + $0x100] sm:$0xff]
    %v2095 = vld [vmem:[#allocation9 + $0x118] sm:$0xff]
    %v2096 = vld [vmem:[#allocation9 + $0x130] sm:$0xff]
    %v2097 = vld [vmem:[#allocation9 + $0x148] sm:$0xff]
    %v2098 = vld [vmem:[#allocation9 + $0x160] sm:$0xff]
    %v2099 = vld [vmem:[#allocation9 + $0x178] sm:$0xff]
    %v2100 = vunpack.c.l.bf16 %v2050
    %v2101 = vunpack.c.h.bf16 %v2050
    %v2102 = vunpack.c.l.bf16 %v2051
    %2103 = vmatpush.msra.mxu0 %v2082
    %2104 = vmatpush.msra.mxu0 %v2080
    %2105 = vmatpush.msra.mxu0 %v2078
    %2106 = vmatpush.msra.mxu0 %v2076
    %2107 = vmatpush.msra.mxu0 %v2074
    %2108 = vmatpush.msra.mxu0 %v2072
    %2109 = vmatpush.msra.mxu0 %v2070
    %2110 = vmatpush.msra.mxu0 %v2068
    %2111 = vmatpush.msra.mxu0 %v2066
    %2112 = vmatpush.msra.mxu0 %v2064
    %2113 = vmatpush.msra.mxu0 %v2062
    %2114 = vmatpush.msra.mxu0 %v2060
    %2115 = vmatpush.msra.mxu0 %v2058
    %2116 = vmatpush.msra.mxu0 %v2056
    %2117 = vmatpush.msra.mxu0 %v2054
    %2118 = vmatpush.msra.mxu0 %v2052
    %2119 = vmatmul.f32.gmra.mxu0 %v1883
    %v2120 = vpop.f32.mrf.mxu0
    %v2121 = vadd.f32 0.0, %v2120
    %2122 = vdwg.mxu0
    %2123 = vmatpush.msra.mxu0 %v2083
    %2124 = vmatpush.msra.mxu0 %v2081
    %2125 = vmatpush.msra.mxu0 %v2079
    %2126 = vmatpush.msra.mxu0 %v2077
    %2127 = vmatpush.msra.mxu0 %v2075
    %2128 = vmatpush.msra.mxu0 %v2073
    %2129 = vmatpush.msra.mxu0 %v2071
    %2130 = vmatpush.msra.mxu0 %v2069
    %2131 = vmatpush.msra.mxu0 %v2067
    %2132 = vmatpush.msra.mxu0 %v2065
    %2133 = vmatpush.msra.mxu0 %v2063
    %2134 = vmatpush.msra.mxu0 %v2061
    %2135 = vmatpush.msra.mxu0 %v2059
    %2136 = vmatpush.msra.mxu0 %v2057
    %2137 = vmatpush.msra.mxu0 %v2055
    %2138 = vmatpush.msra.mxu0 %v2053
    %2139 = vmatmul.f32.gmra.mxu0 %v1883
    %v2140 = vpop.f32.mrf.mxu0
    %v2141 = vadd.f32 0.0, %v2140
    %2142 = vdwg.mxu0
    %v2143 = vadd.f32 %v2100, %v2121
    %v2144 = vxor.u32 %v2143, 2147483648
    %v2145 = vmul.f32 %v2144, 1.442695
    %v2146 = vpow.pop %v2145
    %v2147 = vadd.f32 %v2146, 1.0
    %v2148 = vrcp.pop %v2147
    %v2149 = vmul.f32 %v2147, %v2148
    %v2150 = vsub.f32 1.0, %v2149
    %v2151 = vmul.f32 %v2148, %v2150
    %v2152 = vadd.f32 %v2148, %v2151
    %vm2153 = vweird.f32 %v2147
    %vm2154 = vweird.f32 %v2148
    %vm2155 = vmor %vm2153, %vm2154
    %v2156 = vsel %vm2155, %v2148, %v2152
    %v2157 = vand.u32 2147483647, %v2147
    %vm2158 = vcmp.eq.f32.partialorder %v2157, 8.507059e+37
    %v2159 = vand.u32 %v2147, 2147483648
    %v2160 = vor.u32 1.1754944e-38, %v2159
    %v2161 = vsel %vm2158, %v2160, %v2156
    %v2162 = vmul.f32 1.0, %v2161
    %v2163 = vadd.f32 %v2101, %v2141
    %v2164 = vxor.u32 %v2163, 2147483648
    %v2165 = vmul.f32 %v2164, 1.442695
    %v2166 = vpow.pop %v2165
    %v2167 = vadd.f32 %v2166, 1.0
    %v2168 = vrcp.pop %v2167
    %v2169 = vmul.f32 %v2167, %v2168
    %v2170 = vsub.f32 1.0, %v2169
    %v2171 = vmul.f32 %v2168, %v2170
    %v2172 = vadd.f32 %v2168, %v2171
    %vm2173 = vweird.f32 %v2167
    %vm2174 = vweird.f32 %v2168
    %vm2175 = vmor %vm2173, %vm2174
    %v2176 = vsel %vm2175, %v2168, %v2172
    %v2177 = vand.u32 2147483647, %v2167
    %vm2178 = vcmp.eq.f32.partialorder %v2177, 8.507059e+37
    %v2179 = vand.u32 %v2167, 2147483648
    %v2180 = vor.u32 1.1754944e-38, %v2179
    %v2181 = vsel %vm2178, %v2180, %v2176
    %v2182 = vmul.f32 1.0, %v2181
    %2183 = vmatpush.msra.mxu0 %v2099
    %2184 = vmatpush.msra.mxu0 %v2098
    %2185 = vmatpush.msra.mxu0 %v2097
    %2186 = vmatpush.msra.mxu0 %v2096
    %2187 = vmatpush.msra.mxu0 %v2095
    %2188 = vmatpush.msra.mxu0 %v2094
    %2189 = vmatpush.msra.mxu0 %v2093
    %2190 = vmatpush.msra.mxu0 %v2092
    %2191 = vmatpush.msra.mxu0 %v2091
    %2192 = vmatpush.msra.mxu0 %v2090
    %2193 = vmatpush.msra.mxu0 %v2089
    %2194 = vmatpush.msra.mxu0 %v2088
    %2195 = vmatpush.msra.mxu0 %v2087
    %2196 = vmatpush.msra.mxu0 %v2086
    %2197 = vmatpush.msra.mxu0 %v2085
    %2198 = vmatpush.msra.mxu0 %v2084
    %2199 = vmatmul.f32.gmra.mxu0 %v1883
    %v2200 = vpop.f32.mrf.mxu0
    %v2201 = vadd.f32 %v85, %v2200
    %2202 = vdwg.mxu0
    %v2203 = vmul.f32 %v2162, %v2201
    %v2204 = vadd.f32 %v2102, %v2203
    %v2205 = vtanh.pop %v2204
    %v2206 = vsub.f32 1.0, %v2182
    %v2207 = vmul.f32 %v2206, %v2205
    %v2208 = vmul.f32 %v2182, %v1883
    %v2209 = vadd.f32 %v2207, %v2208
    %s2210 = scalar_lea.vmem [#allocation10], 48
    %2211 = vst [vmem:[%s2210] sm:$0xff] %v2209
    %s2212 = scalar_lea.vmem [#allocation7], 12
    %v2213 = vld [vmem:[%s2212] sm:$0xff]
    %v2214 = vld [vmem:[%s2212 + $0x8] sm:$0xf]
    %v2215 = vld [vmem:[%s258] sm:$0xff]
    %v2216 = vld [vmem:[%s258 + $0x8] sm:$0xff]
    %v2217 = vld [vmem:[%s258 + $0x18] sm:$0xff]
    %v2218 = vld [vmem:[%s258 + $0x20] sm:$0xff]
    %v2219 = vld [vmem:[%s258 + $0x30] sm:$0xff]
    %v2220 = vld [vmem:[%s258 + $0x38] sm:$0xff]
    %v2221 = vld [vmem:[%s258 + $0x48] sm:$0xff]
    %v2222 = vld [vmem:[%s258 + $0x50] sm:$0xff]
    %v2223 = vld [vmem:[%s258 + $0x60] sm:$0xff]
    %v2224 = vld [vmem:[%s258 + $0x68] sm:$0xff]
    %v2225 = vld [vmem:[%s258 + $0x78] sm:$0xff]
    %v2226 = vld [vmem:[%s258 + $0x80] sm:$0xff]
    %v2227 = vld [vmem:[%s258 + $0x90] sm:$0xff]
    %v2228 = vld [vmem:[%s258 + $0x98] sm:$0xff]
    %v2229 = vld [vmem:[%s258 + $0xa8] sm:$0xff]
    %v2230 = vld [vmem:[%s258 + $0xb0] sm:$0xff]
    %v2231 = vld [vmem:[%s258 + $0xc0] sm:$0xff]
    %v2232 = vld [vmem:[%s258 + $0xc8] sm:$0xff]
    %v2233 = vld [vmem:[%s258 + $0xd8] sm:$0xff]
    %v2234 = vld [vmem:[%s258 + $0xe0] sm:$0xff]
    %v2235 = vld [vmem:[%s258 + $0xf0] sm:$0xff]
    %v2236 = vld [vmem:[%s258 + $0xf8] sm:$0xff]
    %v2237 = vld [vmem:[%s258 + $0x108] sm:$0xff]
    %v2238 = vld [vmem:[%s258 + $0x110] sm:$0xff]
    %v2239 = vld [vmem:[%s258 + $0x120] sm:$0xff]
    %v2240 = vld [vmem:[%s258 + $0x128] sm:$0xff]
    %v2241 = vld [vmem:[%s258 + $0x138] sm:$0xff]
    %v2242 = vld [vmem:[%s258 + $0x140] sm:$0xff]
    %v2243 = vld [vmem:[%s258 + $0x150] sm:$0xff]
    %v2244 = vld [vmem:[%s258 + $0x158] sm:$0xff]
    %v2245 = vld [vmem:[%s258 + $0x168] sm:$0xff]
    %v2246 = vld [vmem:[%s258 + $0x170] sm:$0xff]
    %v2247 = vld [vmem:[%s258 + $0x10] sm:$0xff]
    %v2248 = vld [vmem:[%s258 + $0x28] sm:$0xff]
    %v2249 = vld [vmem:[%s258 + $0x40] sm:$0xff]
    %v2250 = vld [vmem:[%s258 + $0x58] sm:$0xff]
    %v2251 = vld [vmem:[%s258 + $0x70] sm:$0xff]
    %v2252 = vld [vmem:[%s258 + $0x88] sm:$0xff]
    %v2253 = vld [vmem:[%s258 + $0xa0] sm:$0xff]
    %v2254 = vld [vmem:[%s258 + $0xb8] sm:$0xff]
    %v2255 = vld [vmem:[%s258 + $0xd0] sm:$0xff]
    %v2256 = vld [vmem:[%s258 + $0xe8] sm:$0xff]
    %v2257 = vld [vmem:[%s258 + $0x100] sm:$0xff]
    %v2258 = vld [vmem:[%s258 + $0x118] sm:$0xff]
    %v2259 = vld [vmem:[%s258 + $0x130] sm:$0xff]
    %v2260 = vld [vmem:[%s258 + $0x148] sm:$0xff]
    %v2261 = vld [vmem:[%s258 + $0x160] sm:$0xff]
    %v2262 = vld [vmem:[%s258 + $0x178] sm:$0xff]
    %v2263 = vunpack.c.l.bf16 %v2213
    %v2264 = vunpack.c.h.bf16 %v2213
    %v2265 = vunpack.c.l.bf16 %v2214
    %2266 = vmatpush.msra.mxu0 %v2245
    %2267 = vmatpush.msra.mxu0 %v2243
    %2268 = vmatpush.msra.mxu0 %v2241
    %2269 = vmatpush.msra.mxu0 %v2239
    %2270 = vmatpush.msra.mxu0 %v2237
    %2271 = vmatpush.msra.mxu0 %v2235
    %2272 = vmatpush.msra.mxu0 %v2233
    %2273 = vmatpush.msra.mxu0 %v2231
    %2274 = vmatpush.msra.mxu0 %v2229
    %2275 = vmatpush.msra.mxu0 %v2227
    %2276 = vmatpush.msra.mxu0 %v2225
    %2277 = vmatpush.msra.mxu0 %v2223
    %2278 = vmatpush.msra.mxu0 %v2221
    %2279 = vmatpush.msra.mxu0 %v2219
    %2280 = vmatpush.msra.mxu0 %v2217
    %2281 = vmatpush.msra.mxu0 %v2215
    %2282 = vmatmul.f32.gmra.mxu0 %v2046
    %v2283 = vpop.f32.mrf.mxu0
    %v2284 = vadd.f32 0.0, %v2283
    %2285 = vdwg.mxu0
    %2286 = vmatpush.msra.mxu0 %v2246
    %2287 = vmatpush.msra.mxu0 %v2244
    %2288 = vmatpush.msra.mxu0 %v2242
    %2289 = vmatpush.msra.mxu0 %v2240
    %2290 = vmatpush.msra.mxu0 %v2238
    %2291 = vmatpush.msra.mxu0 %v2236
    %2292 = vmatpush.msra.mxu0 %v2234
    %2293 = vmatpush.msra.mxu0 %v2232
    %2294 = vmatpush.msra.mxu0 %v2230
    %2295 = vmatpush.msra.mxu0 %v2228
    %2296 = vmatpush.msra.mxu0 %v2226
    %2297 = vmatpush.msra.mxu0 %v2224
    %2298 = vmatpush.msra.mxu0 %v2222
    %2299 = vmatpush.msra.mxu0 %v2220
    %2300 = vmatpush.msra.mxu0 %v2218
    %2301 = vmatpush.msra.mxu0 %v2216
    %2302 = vmatmul.f32.gmra.mxu0 %v2046
    %v2303 = vpop.f32.mrf.mxu0
    %v2304 = vadd.f32 0.0, %v2303
    %2305 = vdwg.mxu0
    %v2306 = vadd.f32 %v2263, %v2284
    %v2307 = vxor.u32 %v2306, 2147483648
    %v2308 = vmul.f32 %v2307, 1.442695
    %v2309 = vpow.pop %v2308
    %v2310 = vadd.f32 %v2309, 1.0
    %v2311 = vrcp.pop %v2310
    %v2312 = vmul.f32 %v2310, %v2311
    %v2313 = vsub.f32 1.0, %v2312
    %v2314 = vmul.f32 %v2311, %v2313
    %v2315 = vadd.f32 %v2311, %v2314
    %vm2316 = vweird.f32 %v2310
    %vm2317 = vweird.f32 %v2311
    %vm2318 = vmor %vm2316, %vm2317
    %v2319 = vsel %vm2318, %v2311, %v2315
    %v2320 = vand.u32 2147483647, %v2310
    %vm2321 = vcmp.eq.f32.partialorder %v2320, 8.507059e+37
    %v2322 = vand.u32 %v2310, 2147483648
    %v2323 = vor.u32 1.1754944e-38, %v2322
    %v2324 = vsel %vm2321, %v2323, %v2319
    %v2325 = vmul.f32 1.0, %v2324
    %v2326 = vadd.f32 %v2264, %v2304
    %v2327 = vxor.u32 %v2326, 2147483648
    %v2328 = vmul.f32 %v2327, 1.442695
    %v2329 = vpow.pop %v2328
    %v2330 = vadd.f32 %v2329, 1.0
    %v2331 = vrcp.pop %v2330
    %v2332 = vmul.f32 %v2330, %v2331
    %v2333 = vsub.f32 1.0, %v2332
    %v2334 = vmul.f32 %v2331, %v2333
    %v2335 = vadd.f32 %v2331, %v2334
    %vm2336 = vweird.f32 %v2330
    %vm2337 = vweird.f32 %v2331
    %vm2338 = vmor %vm2336, %vm2337
    %v2339 = vsel %vm2338, %v2331, %v2335
    %v2340 = vand.u32 2147483647, %v2330
    %vm2341 = vcmp.eq.f32.partialorder %v2340, 8.507059e+37
    %v2342 = vand.u32 %v2330, 2147483648
    %v2343 = vor.u32 1.1754944e-38, %v2342
    %v2344 = vsel %vm2341, %v2343, %v2339
    %v2345 = vmul.f32 1.0, %v2344
    %2346 = vmatpush.msra.mxu0 %v2262
    %2347 = vmatpush.msra.mxu0 %v2261
    %2348 = vmatpush.msra.mxu0 %v2260
    %2349 = vmatpush.msra.mxu0 %v2259
    %2350 = vmatpush.msra.mxu0 %v2258
    %2351 = vmatpush.msra.mxu0 %v2257
    %2352 = vmatpush.msra.mxu0 %v2256
    %2353 = vmatpush.msra.mxu0 %v2255
    %2354 = vmatpush.msra.mxu0 %v2254
    %2355 = vmatpush.msra.mxu0 %v2253
    %2356 = vmatpush.msra.mxu0 %v2252
    %2357 = vmatpush.msra.mxu0 %v2251
    %2358 = vmatpush.msra.mxu0 %v2250
    %2359 = vmatpush.msra.mxu0 %v2249
    %2360 = vmatpush.msra.mxu0 %v2248
    %2361 = vmatpush.msra.mxu0 %v2247
    %2362 = vmatmul.f32.gmra.mxu0 %v2046
    %v2363 = vpop.f32.mrf.mxu0
    %v2364 = vadd.f32 %v90, %v2363
    %2365 = vdwg.mxu0
    %v2366 = vmul.f32 %v2325, %v2364
    %v2367 = vadd.f32 %v2265, %v2366
    %v2368 = vtanh.pop %v2367
    %v2369 = vsub.f32 1.0, %v2345
    %v2370 = vmul.f32 %v2369, %v2368
    %v2371 = vmul.f32 %v2345, %v2046
    %v2372 = vadd.f32 %v2370, %v2371
    %s2373 = scalar_lea.vmem [#allocation11], 8
    %2374 = vst [vmem:[%s2373] sm:$0xff] %v2372
    %s2375 = scalar_lea.vmem [#allocation4], 84
    %v2376 = vld [vmem:[%s2375] sm:$0xff]
    %v2377 = vld [vmem:[%s2375 + $0x8] sm:$0xf]
    %v2378 = vld [vmem:[#allocation9] sm:$0xff]
    %v2379 = vld [vmem:[#allocation9 + $0x8] sm:$0xff]
    %v2380 = vld [vmem:[#allocation9 + $0x18] sm:$0xff]
    %v2381 = vld [vmem:[#allocation9 + $0x20] sm:$0xff]
    %v2382 = vld [vmem:[#allocation9 + $0x30] sm:$0xff]
    %v2383 = vld [vmem:[#allocation9 + $0x38] sm:$0xff]
    %v2384 = vld [vmem:[#allocation9 + $0x48] sm:$0xff]
    %v2385 = vld [vmem:[#allocation9 + $0x50] sm:$0xff]
    %v2386 = vld [vmem:[#allocation9 + $0x60] sm:$0xff]
    %v2387 = vld [vmem:[#allocation9 + $0x68] sm:$0xff]
    %v2388 = vld [vmem:[#allocation9 + $0x78] sm:$0xff]
    %v2389 = vld [vmem:[#allocation9 + $0x80] sm:$0xff]
    %v2390 = vld [vmem:[#allocation9 + $0x90] sm:$0xff]
    %v2391 = vld [vmem:[#allocation9 + $0x98] sm:$0xff]
    %v2392 = vld [vmem:[#allocation9 + $0xa8] sm:$0xff]
    %v2393 = vld [vmem:[#allocation9 + $0xb0] sm:$0xff]
    %v2394 = vld [vmem:[#allocation9 + $0xc0] sm:$0xff]
    %v2395 = vld [vmem:[#allocation9 + $0xc8] sm:$0xff]
    %v2396 = vld [vmem:[#allocation9 + $0xd8] sm:$0xff]
    %v2397 = vld [vmem:[#allocation9 + $0xe0] sm:$0xff]
    %v2398 = vld [vmem:[#allocation9 + $0xf0] sm:$0xff]
    %v2399 = vld [vmem:[#allocation9 + $0xf8] sm:$0xff]
    %v2400 = vld [vmem:[#allocation9 + $0x108] sm:$0xff]
    %v2401 = vld [vmem:[#allocation9 + $0x110] sm:$0xff]
    %v2402 = vld [vmem:[#allocation9 + $0x120] sm:$0xff]
    %v2403 = vld [vmem:[#allocation9 + $0x128] sm:$0xff]
    %v2404 = vld [vmem:[#allocation9 + $0x138] sm:$0xff]
    %v2405 = vld [vmem:[#allocation9 + $0x140] sm:$0xff]
    %v2406 = vld [vmem:[#allocation9 + $0x150] sm:$0xff]
    %v2407 = vld [vmem:[#allocation9 + $0x158] sm:$0xff]
    %v2408 = vld [vmem:[#allocation9 + $0x168] sm:$0xff]
    %v2409 = vld [vmem:[#allocation9 + $0x170] sm:$0xff]
    %v2410 = vld [vmem:[#allocation9 + $0x10] sm:$0xff]
    %v2411 = vld [vmem:[#allocation9 + $0x28] sm:$0xff]
    %v2412 = vld [vmem:[#allocation9 + $0x40] sm:$0xff]
    %v2413 = vld [vmem:[#allocation9 + $0x58] sm:$0xff]
    %v2414 = vld [vmem:[#allocation9 + $0x70] sm:$0xff]
    %v2415 = vld [vmem:[#allocation9 + $0x88] sm:$0xff]
    %v2416 = vld [vmem:[#allocation9 + $0xa0] sm:$0xff]
    %v2417 = vld [vmem:[#allocation9 + $0xb8] sm:$0xff]
    %v2418 = vld [vmem:[#allocation9 + $0xd0] sm:$0xff]
    %v2419 = vld [vmem:[#allocation9 + $0xe8] sm:$0xff]
    %v2420 = vld [vmem:[#allocation9 + $0x100] sm:$0xff]
    %v2421 = vld [vmem:[#allocation9 + $0x118] sm:$0xff]
    %v2422 = vld [vmem:[#allocation9 + $0x130] sm:$0xff]
    %v2423 = vld [vmem:[#allocation9 + $0x148] sm:$0xff]
    %v2424 = vld [vmem:[#allocation9 + $0x160] sm:$0xff]
    %v2425 = vld [vmem:[#allocation9 + $0x178] sm:$0xff]
    %v2426 = vunpack.c.l.bf16 %v2376
    %v2427 = vunpack.c.h.bf16 %v2376
    %v2428 = vunpack.c.l.bf16 %v2377
    %2429 = vmatpush.msra.mxu0 %v2408
    %2430 = vmatpush.msra.mxu0 %v2406
    %2431 = vmatpush.msra.mxu0 %v2404
    %2432 = vmatpush.msra.mxu0 %v2402
    %2433 = vmatpush.msra.mxu0 %v2400
    %2434 = vmatpush.msra.mxu0 %v2398
    %2435 = vmatpush.msra.mxu0 %v2396
    %2436 = vmatpush.msra.mxu0 %v2394
    %2437 = vmatpush.msra.mxu0 %v2392
    %2438 = vmatpush.msra.mxu0 %v2390
    %2439 = vmatpush.msra.mxu0 %v2388
    %2440 = vmatpush.msra.mxu0 %v2386
    %2441 = vmatpush.msra.mxu0 %v2384
    %2442 = vmatpush.msra.mxu0 %v2382
    %2443 = vmatpush.msra.mxu0 %v2380
    %2444 = vmatpush.msra.mxu0 %v2378
    %2445 = vmatmul.f32.gmra.mxu0 %v2209
    %v2446 = vpop.f32.mrf.mxu0
    %v2447 = vadd.f32 0.0, %v2446
    %2448 = vdwg.mxu0
    %2449 = vmatpush.msra.mxu0 %v2409
    %2450 = vmatpush.msra.mxu0 %v2407
    %2451 = vmatpush.msra.mxu0 %v2405
    %2452 = vmatpush.msra.mxu0 %v2403
    %2453 = vmatpush.msra.mxu0 %v2401
    %2454 = vmatpush.msra.mxu0 %v2399
    %2455 = vmatpush.msra.mxu0 %v2397
    %2456 = vmatpush.msra.mxu0 %v2395
    %2457 = vmatpush.msra.mxu0 %v2393
    %2458 = vmatpush.msra.mxu0 %v2391
    %2459 = vmatpush.msra.mxu0 %v2389
    %2460 = vmatpush.msra.mxu0 %v2387
    %2461 = vmatpush.msra.mxu0 %v2385
    %2462 = vmatpush.msra.mxu0 %v2383
    %2463 = vmatpush.msra.mxu0 %v2381
    %2464 = vmatpush.msra.mxu0 %v2379
    %2465 = vmatmul.f32.gmra.mxu0 %v2209
    %v2466 = vpop.f32.mrf.mxu0
    %v2467 = vadd.f32 0.0, %v2466
    %2468 = vdwg.mxu0
    %v2469 = vadd.f32 %v2426, %v2447
    %v2470 = vxor.u32 %v2469, 2147483648
    %v2471 = vmul.f32 %v2470, 1.442695
    %v2472 = vpow.pop %v2471
    %v2473 = vadd.f32 %v2472, 1.0
    %v2474 = vrcp.pop %v2473
    %v2475 = vmul.f32 %v2473, %v2474
    %v2476 = vsub.f32 1.0, %v2475
    %v2477 = vmul.f32 %v2474, %v2476
    %v2478 = vadd.f32 %v2474, %v2477
    %vm2479 = vweird.f32 %v2473
    %vm2480 = vweird.f32 %v2474
    %vm2481 = vmor %vm2479, %vm2480
    %v2482 = vsel %vm2481, %v2474, %v2478
    %v2483 = vand.u32 2147483647, %v2473
    %vm2484 = vcmp.eq.f32.partialorder %v2483, 8.507059e+37
    %v2485 = vand.u32 %v2473, 2147483648
    %v2486 = vor.u32 1.1754944e-38, %v2485
    %v2487 = vsel %vm2484, %v2486, %v2482
    %v2488 = vmul.f32 1.0, %v2487
    %v2489 = vadd.f32 %v2427, %v2467
    %v2490 = vxor.u32 %v2489, 2147483648
    %v2491 = vmul.f32 %v2490, 1.442695
    %v2492 = vpow.pop %v2491
    %v2493 = vadd.f32 %v2492, 1.0
    %v2494 = vrcp.pop %v2493
    %v2495 = vmul.f32 %v2493, %v2494
    %v2496 = vsub.f32 1.0, %v2495
    %v2497 = vmul.f32 %v2494, %v2496
    %v2498 = vadd.f32 %v2494, %v2497
    %vm2499 = vweird.f32 %v2493
    %vm2500 = vweird.f32 %v2494
    %vm2501 = vmor %vm2499, %vm2500
    %v2502 = vsel %vm2501, %v2494, %v2498
    %v2503 = vand.u32 2147483647, %v2493
    %vm2504 = vcmp.eq.f32.partialorder %v2503, 8.507059e+37
    %v2505 = vand.u32 %v2493, 2147483648
    %v2506 = vor.u32 1.1754944e-38, %v2505
    %v2507 = vsel %vm2504, %v2506, %v2502
    %v2508 = vmul.f32 1.0, %v2507
    %2509 = vmatpush.msra.mxu0 %v2425
    %2510 = vmatpush.msra.mxu0 %v2424
    %2511 = vmatpush.msra.mxu0 %v2423
    %2512 = vmatpush.msra.mxu0 %v2422
    %2513 = vmatpush.msra.mxu0 %v2421
    %2514 = vmatpush.msra.mxu0 %v2420
    %2515 = vmatpush.msra.mxu0 %v2419
    %2516 = vmatpush.msra.mxu0 %v2418
    %2517 = vmatpush.msra.mxu0 %v2417
    %2518 = vmatpush.msra.mxu0 %v2416
    %2519 = vmatpush.msra.mxu0 %v2415
    %2520 = vmatpush.msra.mxu0 %v2414
    %2521 = vmatpush.msra.mxu0 %v2413
    %2522 = vmatpush.msra.mxu0 %v2412
    %2523 = vmatpush.msra.mxu0 %v2411
    %2524 = vmatpush.msra.mxu0 %v2410
    %2525 = vmatmul.f32.gmra.mxu0 %v2209
    %v2526 = vpop.f32.mrf.mxu0
    %v2527 = vadd.f32 %v85, %v2526
    %2528 = vdwg.mxu0
    %v2529 = vmul.f32 %v2488, %v2527
    %v2530 = vadd.f32 %v2428, %v2529
    %v2531 = vtanh.pop %v2530
    %v2532 = vsub.f32 1.0, %v2508
    %v2533 = vmul.f32 %v2532, %v2531
    %v2534 = vmul.f32 %v2508, %v2209
    %v2535 = vadd.f32 %v2533, %v2534
    %s2536 = scalar_lea.vmem [#allocation10], 56
    %2537 = vst [vmem:[%s2536] sm:$0xff] %v2535
    %v2538 = vld [vmem:[#allocation7] sm:$0xff]
    %v2539 = vld [vmem:[#allocation7 + $0x8] sm:$0xf]
    %v2540 = vld [vmem:[%s258] sm:$0xff]
    %v2541 = vld [vmem:[%s258 + $0x8] sm:$0xff]
    %v2542 = vld [vmem:[%s258 + $0x18] sm:$0xff]
    %v2543 = vld [vmem:[%s258 + $0x20] sm:$0xff]
    %v2544 = vld [vmem:[%s258 + $0x30] sm:$0xff]
    %v2545 = vld [vmem:[%s258 + $0x38] sm:$0xff]
    %v2546 = vld [vmem:[%s258 + $0x48] sm:$0xff]
    %v2547 = vld [vmem:[%s258 + $0x50] sm:$0xff]
    %v2548 = vld [vmem:[%s258 + $0x60] sm:$0xff]
    %v2549 = vld [vmem:[%s258 + $0x68] sm:$0xff]
    %v2550 = vld [vmem:[%s258 + $0x78] sm:$0xff]
    %v2551 = vld [vmem:[%s258 + $0x80] sm:$0xff]
    %v2552 = vld [vmem:[%s258 + $0x90] sm:$0xff]
    %v2553 = vld [vmem:[%s258 + $0x98] sm:$0xff]
    %v2554 = vld [vmem:[%s258 + $0xa8] sm:$0xff]
    %v2555 = vld [vmem:[%s258 + $0xb0] sm:$0xff]
    %v2556 = vld [vmem:[%s258 + $0xc0] sm:$0xff]
    %v2557 = vld [vmem:[%s258 + $0xc8] sm:$0xff]
    %v2558 = vld [vmem:[%s258 + $0xd8] sm:$0xff]
    %v2559 = vld [vmem:[%s258 + $0xe0] sm:$0xff]
    %v2560 = vld [vmem:[%s258 + $0xf0] sm:$0xff]
    %v2561 = vld [vmem:[%s258 + $0xf8] sm:$0xff]
    %v2562 = vld [vmem:[%s258 + $0x108] sm:$0xff]
    %v2563 = vld [vmem:[%s258 + $0x110] sm:$0xff]
    %v2564 = vld [vmem:[%s258 + $0x120] sm:$0xff]
    %v2565 = vld [vmem:[%s258 + $0x128] sm:$0xff]
    %v2566 = vld [vmem:[%s258 + $0x138] sm:$0xff]
    %v2567 = vld [vmem:[%s258 + $0x140] sm:$0xff]
    %v2568 = vld [vmem:[%s258 + $0x150] sm:$0xff]
    %v2569 = vld [vmem:[%s258 + $0x158] sm:$0xff]
    %v2570 = vld [vmem:[%s258 + $0x168] sm:$0xff]
    %v2571 = vld [vmem:[%s258 + $0x170] sm:$0xff]
    %v2572 = vld [vmem:[%s258 + $0x10] sm:$0xff]
    %v2573 = vld [vmem:[%s258 + $0x28] sm:$0xff]
    %v2574 = vld [vmem:[%s258 + $0x40] sm:$0xff]
    %v2575 = vld [vmem:[%s258 + $0x58] sm:$0xff]
    %v2576 = vld [vmem:[%s258 + $0x70] sm:$0xff]
    %v2577 = vld [vmem:[%s258 + $0x88] sm:$0xff]
    %v2578 = vld [vmem:[%s258 + $0xa0] sm:$0xff]
    %v2579 = vld [vmem:[%s258 + $0xb8] sm:$0xff]
    %v2580 = vld [vmem:[%s258 + $0xd0] sm:$0xff]
    %v2581 = vld [vmem:[%s258 + $0xe8] sm:$0xff]
    %v2582 = vld [vmem:[%s258 + $0x100] sm:$0xff]
    %v2583 = vld [vmem:[%s258 + $0x118] sm:$0xff]
    %v2584 = vld [vmem:[%s258 + $0x130] sm:$0xff]
    %v2585 = vld [vmem:[%s258 + $0x148] sm:$0xff]
    %v2586 = vld [vmem:[%s258 + $0x160] sm:$0xff]
    %v2587 = vld [vmem:[%s258 + $0x178] sm:$0xff]
    %v2588 = vunpack.c.l.bf16 %v2538
    %v2589 = vunpack.c.h.bf16 %v2538
    %v2590 = vunpack.c.l.bf16 %v2539
    %2591 = vmatpush.msra.mxu0 %v2570
    %2592 = vmatpush.msra.mxu0 %v2568
    %2593 = vmatpush.msra.mxu0 %v2566
    %2594 = vmatpush.msra.mxu0 %v2564
    %2595 = vmatpush.msra.mxu0 %v2562
    %2596 = vmatpush.msra.mxu0 %v2560
    %2597 = vmatpush.msra.mxu0 %v2558
    %2598 = vmatpush.msra.mxu0 %v2556
    %2599 = vmatpush.msra.mxu0 %v2554
    %2600 = vmatpush.msra.mxu0 %v2552
    %2601 = vmatpush.msra.mxu0 %v2550
    %2602 = vmatpush.msra.mxu0 %v2548
    %2603 = vmatpush.msra.mxu0 %v2546
    %2604 = vmatpush.msra.mxu0 %v2544
    %2605 = vmatpush.msra.mxu0 %v2542
    %2606 = vmatpush.msra.mxu0 %v2540
    %2607 = vmatmul.f32.gmra.mxu0 %v2372
    %v2608 = vpop.f32.mrf.mxu0
    %v2609 = vadd.f32 0.0, %v2608
    %2610 = vdwg.mxu0
    %2611 = vmatpush.msra.mxu0 %v2571
    %2612 = vmatpush.msra.mxu0 %v2569
    %2613 = vmatpush.msra.mxu0 %v2567
    %2614 = vmatpush.msra.mxu0 %v2565
    %2615 = vmatpush.msra.mxu0 %v2563
    %2616 = vmatpush.msra.mxu0 %v2561
    %2617 = vmatpush.msra.mxu0 %v2559
    %2618 = vmatpush.msra.mxu0 %v2557
    %2619 = vmatpush.msra.mxu0 %v2555
    %2620 = vmatpush.msra.mxu0 %v2553
    %2621 = vmatpush.msra.mxu0 %v2551
    %2622 = vmatpush.msra.mxu0 %v2549
    %2623 = vmatpush.msra.mxu0 %v2547
    %2624 = vmatpush.msra.mxu0 %v2545
    %2625 = vmatpush.msra.mxu0 %v2543
    %2626 = vmatpush.msra.mxu0 %v2541
    %2627 = vmatmul.f32.gmra.mxu0 %v2372
    %v2628 = vpop.f32.mrf.mxu0
    %v2629 = vadd.f32 0.0, %v2628
    %2630 = vdwg.mxu0
    %v2631 = vadd.f32 %v2588, %v2609
    %v2632 = vxor.u32 %v2631, 2147483648
    %v2633 = vmul.f32 %v2632, 1.442695
    %v2634 = vpow.pop %v2633
    %v2635 = vadd.f32 %v2634, 1.0
    %v2636 = vrcp.pop %v2635
    %v2637 = vmul.f32 %v2635, %v2636
    %v2638 = vsub.f32 1.0, %v2637
    %v2639 = vmul.f32 %v2636, %v2638
    %v2640 = vadd.f32 %v2636, %v2639
    %vm2641 = vweird.f32 %v2635
    %vm2642 = vweird.f32 %v2636
    %vm2643 = vmor %vm2641, %vm2642
    %v2644 = vsel %vm2643, %v2636, %v2640
    %v2645 = vand.u32 2147483647, %v2635
    %vm2646 = vcmp.eq.f32.partialorder %v2645, 8.507059e+37
    %v2647 = vand.u32 %v2635, 2147483648
    %v2648 = vor.u32 1.1754944e-38, %v2647
    %v2649 = vsel %vm2646, %v2648, %v2644
    %v2650 = vmul.f32 1.0, %v2649
    %v2651 = vadd.f32 %v2589, %v2629
    %v2652 = vxor.u32 %v2651, 2147483648
    %v2653 = vmul.f32 %v2652, 1.442695
    %v2654 = vpow.pop %v2653
    %v2655 = vadd.f32 %v2654, 1.0
    %v2656 = vrcp.pop %v2655
    %v2657 = vmul.f32 %v2655, %v2656
    %v2658 = vsub.f32 1.0, %v2657
    %v2659 = vmul.f32 %v2656, %v2658
    %v2660 = vadd.f32 %v2656, %v2659
    %vm2661 = vweird.f32 %v2655
    %vm2662 = vweird.f32 %v2656
    %vm2663 = vmor %vm2661, %vm2662
    %v2664 = vsel %vm2663, %v2656, %v2660
    %v2665 = vand.u32 2147483647, %v2655
    %vm2666 = vcmp.eq.f32.partialorder %v2665, 8.507059e+37
    %v2667 = vand.u32 %v2655, 2147483648
    %v2668 = vor.u32 1.1754944e-38, %v2667
    %v2669 = vsel %vm2666, %v2668, %v2664
    %v2670 = vmul.f32 1.0, %v2669
    %2671 = vmatpush.msra.mxu0 %v2587
    %2672 = vmatpush.msra.mxu0 %v2586
    %2673 = vmatpush.msra.mxu0 %v2585
    %2674 = vmatpush.msra.mxu0 %v2584
    %2675 = vmatpush.msra.mxu0 %v2583
    %2676 = vmatpush.msra.mxu0 %v2582
    %2677 = vmatpush.msra.mxu0 %v2581
    %2678 = vmatpush.msra.mxu0 %v2580
    %2679 = vmatpush.msra.mxu0 %v2579
    %2680 = vmatpush.msra.mxu0 %v2578
    %2681 = vmatpush.msra.mxu0 %v2577
    %2682 = vmatpush.msra.mxu0 %v2576
    %2683 = vmatpush.msra.mxu0 %v2575
    %2684 = vmatpush.msra.mxu0 %v2574
    %2685 = vmatpush.msra.mxu0 %v2573
    %2686 = vmatpush.msra.mxu0 %v2572
    %2687 = vmatmul.f32.gmra.mxu0 %v2372
    %v2688 = vpop.f32.mrf.mxu0
    %v2689 = vadd.f32 %v90, %v2688
    %2690 = vdwg.mxu0
    %v2691 = vmul.f32 %v2650, %v2689
    %v2692 = vadd.f32 %v2590, %v2691
    %v2693 = vtanh.pop %v2692
    %v2694 = vsub.f32 1.0, %v2670
    %v2695 = vmul.f32 %v2694, %v2693
    %v2696 = vmul.f32 %v2670, %v2372
    %v2697 = vadd.f32 %v2695, %v2696
    %2698 = vst [vmem:[#allocation11] sm:$0xff] %v2697
    %2699 = vst [vmem:[#allocation2] sm:$0xff] %v2535
    %2700 = vst [vmem:[#allocation3] sm:$0xff] %v2697
    // Predicated region
    $region34: #{tpu_custom_call.1} parent=1 // pred_check
      _
    $region35: #{tpu_custom_call.1} parent=1 // pred_check_branch
      %2702 = sbr.rel (0) target = $region37
    $region36: #{tpu_custom_call.1} parent=1 // pred_region
      %2704 = vsyncadd [#allocation6], 0
      %s2705 = sshll.u32 [#allocation10], 4
      %s2706 = int_to_ptr.vmem [resolvable:$true] %s2705
      %s2707 = sshll.u32 %s4, 4
      %s2708 = int_to_ptr.hbm [resolvable:$true] %s2707
      %2713 = dma.vmem_to_hbm [thread:$0]  %s2706, 1024, %s2708, [#allocation6], 128, 128, 8
    $region37: #{tpu_custom_call.1} parent=1 // pred_fallthru
      _
    // Predicated region
    $region38: #{tpu_custom_call.1} parent=1 // pred_check
      _
    $region39: #{tpu_custom_call.1} parent=1 // pred_check_branch
      %2715 = sbr.rel (0) target = $region41
    $region40: #{tpu_custom_call.1} parent=1 // pred_region
      %s2716 = ssub.s32 0, 0
      %s2717 = smul.u32 8, %s2716
      %2719 = vsyncadd [#allocation12], 0
      %s2720 = smul.addr %s2717, 8
      %s2721 = scalar_lea.hbm %s5, %s2720
      %s2722 = sshll.u32 [#allocation11], 4
      %s2723 = int_to_ptr.vmem [resolvable:$true] %s2722
      %s2724 = sshll.u32 %s2721, 4
      %s2725 = int_to_ptr.hbm [resolvable:$true] %s2724
      %2730 = dma.vmem_to_hbm [thread:$0]  %s2723, 1024, %s2725, [#allocation12], 128, 128, 8
    $region41: #{tpu_custom_call.1} parent=1 // pred_fallthru
      _
    // Predicated region
    $region42: #{tpu_custom_call.1} parent=1 // pred_check
      _
    $region43: #{tpu_custom_call.1} parent=1 // pred_check_branch
      %2732 = sbr.rel (0) target = $region45
    $region44: #{tpu_custom_call.1} parent=1 // pred_region
      %2734 = dma.done [#allocation6], 1024
    $region45: #{tpu_custom_call.1} parent=1 // pred_fallthru
      _
    // Predicated region
    $region46: #{tpu_custom_call.1} parent=1 // pred_check
      _
    $region47: #{tpu_custom_call.1} parent=1 // pred_check_branch
      %2736 = sbr.rel (0) target = $region49
    $region48: #{tpu_custom_call.1} parent=1 // pred_region
      %2738 = dma.done [#allocation12], 1024
    $region49: #{tpu_custom_call.1} parent=1 // pred_fallthru
      _
    %2739 = vsyncpa [#allocation5], 1
    %2740 = vsyncpa [#allocation8], 1
    %2741 = vsyncpa [#allocation6], 1
    %2742 = vsyncpa [#allocation12], 1

</llo_original>
